<compile_context>
chip_gen: v7x
topology: tpu7x:2x2x1
jax: 0.10.0
libtpu: 0.0.40
codegen_flags: <defaults>
</compile_context>

<pallas_src>
import functools

import jax
import jax.numpy as jnp
from jax.experimental import pallas as pl
from jax.experimental.pallas import tpu as pltpu


# ---------------------------------------------------------------------------
# Generation-aware VMEM budget (v5e/v6e: 128 MiB physical, v7x: 64 MiB).
# ---------------------------------------------------------------------------
def _vmem_limit_bytes():
    try:
        cap = pltpu.get_tpu_info().vmem_capacity_bytes
        return int(min(cap * 3 // 4, 96 * 1024 * 1024))
    except Exception:
        return 48 * 1024 * 1024


_VMEM_LIMIT = _vmem_limit_bytes()
_NEG_INF = -1e30  # bf16-representable "minus infinity" for maxpool shifts


def _round_up(x, m):
    return (x + m - 1) // m * m


def _compiler_params(semantics):
    return pltpu.CompilerParams(
        dimension_semantics=semantics, vmem_limit_bytes=_VMEM_LIMIT)


# ---------------------------------------------------------------------------
# Fused matmul (1x1 conv + folded BN bias [+ residual] [+ ReLU])
# ---------------------------------------------------------------------------
def _matmul_bias_kernel(a_ref, w_ref, b_ref, o_ref, *, relu):
    acc = jnp.dot(a_ref[...], w_ref[...], preferred_element_type=jnp.float32)
    acc = acc + b_ref[...]
    if relu:
        acc = jnp.maximum(acc, 0.0)
    o_ref[...] = acc.astype(o_ref.dtype)


def _matmul_bias_res_kernel(a_ref, w_ref, b_ref, r_ref, o_ref):
    # Always applies ReLU (matches the ResNet bottleneck epilogue).
    acc = jnp.dot(a_ref[...], w_ref[...], preferred_element_type=jnp.float32)
    acc = acc + b_ref[...] + r_ref[...].astype(jnp.float32)
    o_ref[...] = jnp.maximum(acc, 0.0).astype(o_ref.dtype)


@functools.lru_cache(maxsize=None)
def _build_matmul(M, K, N, has_residual, relu):
    # Bigger TM for small-K layers (fewer ~0.35us grid steps); K stays untiled
    # so the per-step footprint is bounded even under v7x's smaller VMEM.
    if K <= 256:
        TM = 2048
    elif K <= 1024:
        TM = 1024
    else:
        TM = 512
    TM = min(TM, M)
    TN = min(256, N)
    grid = (pl.cdiv(M, TM), pl.cdiv(N, TN))
    in_specs = [
        pl.BlockSpec((TM, K), lambda m, n: (m, 0)),   # bf16 activation rows
        pl.BlockSpec((K, TN), lambda m, n: (0, n)),   # bf16 scale-folded weight
        pl.BlockSpec((1, TN), lambda m, n: (0, n)),   # f32 folded BN bias
    ]
    if has_residual:
        kernel = _matmul_bias_res_kernel
        in_specs.append(pl.BlockSpec((TM, TN), lambda m, n: (m, n)))
    else:
        kernel = functools.partial(_matmul_bias_kernel, relu=relu)
    cost = pl.CostEstimate(
        flops=2 * M * K * N,
        transcendentals=0,
        bytes_accessed=2 * (M * K + K * N * pl.cdiv(M, TM) + 2 * M * N) + 4 * N)
    return jax.jit(pl.pallas_call(
        kernel,
        out_shape=jax.ShapeDtypeStruct((M, N), jnp.bfloat16),
        grid=grid,
        in_specs=in_specs,
        out_specs=pl.BlockSpec((TM, TN), lambda m, n: (m, n)),
        compiler_params=_compiler_params(("parallel", "parallel")),
        cost_estimate=cost,
    ))


# ---------------------------------------------------------------------------
# Direct stride-1 conv kernel (used for the stem, all 3x3/s1 convs and the
# space-to-depth'd 3x3/s2 convs).  Halo pad + width alignment are done in
# VMEM; the true-width output is stored directly (no HBM pad/crop).
# ---------------------------------------------------------------------------
def _direct_conv_kernel(x_ref, w_ref, b_ref, o_ref, *, kh, kw, pad, OWp, pack):
    OH, OW, TN = o_ref.shape
    Hin, Win, C = x_ref.shape
    SH = Hin + 2 * pad
    SW = OWp + kw - 1

    xv = x_ref[...]
    if pad:                                         # top/bottom halo rows
        zrow = jnp.zeros((pad, Win, C), xv.dtype)
        xv = jnp.concatenate([zrow, xv, zrow], axis=0)
    left, right = pad, SW - Win - pad               # left halo + width align
    if left or right:
        pieces = []
        if left:
            pieces.append(jnp.zeros((SH, left, C), xv.dtype))
        pieces.append(xv)
        if right:
            pieces.append(jnp.zeros((SH, right, C), xv.dtype))
        xv = jnp.concatenate(pieces, axis=1)

    acc = jnp.zeros((OH * OWp, TN), jnp.float32)
    for i in range(kh):                             # static unroll over rows
        if pack:
            # kw-tap packing: one dot of K = kw*C per row offset.
            parts = [xv[i:i + OH, j:j + OWp, :] for j in range(kw)]
            a = jnp.concatenate(parts, axis=-1) if kw > 1 else parts[0]
            acc = acc + jnp.dot(a.reshape(OH * OWp, kw * C), w_ref[i],
                                preferred_element_type=jnp.float32)
        else:
            for j in range(kw):
                a = xv[i:i + OH, j:j + OWp, :].reshape(OH * OWp, C)
                acc = acc + jnp.dot(a, w_ref[i, j * C:(j + 1) * C, :],
                                    preferred_element_type=jnp.float32)
    acc = jnp.maximum(acc + b_ref[...], 0.0)
    out = acc.reshape(OH, OWp, TN)
    if OWp != OW:
        out = out[:, :OW, :]                        # slice in VMEM, not HBM
    o_ref[...] = out.astype(o_ref.dtype)


@functools.lru_cache(maxsize=None)
def _build_direct_conv(B, Hin, Win, C, kh, kw, pad, N):
    OH = Hin + 2 * pad - kh + 1
    OW = Win + 2 * pad - kw + 1
    OWp = _round_up(OW, 8)                          # sublane-friendly compute width
    pack = (C % 64 == 0)                            # kw-packing (lane-aligned concat)
    TN = min(256, N)
    nt = pl.cdiv(N, TN)
    kernel = functools.partial(_direct_conv_kernel, kh=kh, kw=kw, pad=pad,
                               OWp=OWp, pack=pack)
    cost = pl.CostEstimate(
        flops=2 * B * OH * OWp * kh * kw * C * N,
        transcendentals=0,
        bytes_accessed=2 * (B * Hin * Win * C + B * kh * kw * C * N
                            + B * OH * OW * N) + 4 * N)
    return jax.jit(pl.pallas_call(
        kernel,
        out_shape=jax.ShapeDtypeStruct((B, OH, OW, N), jnp.bfloat16),
        grid=(B, nt),
        in_specs=[
            pl.BlockSpec((None, Hin, Win, C), lambda b, n: (b, 0, 0, 0)),
            pl.BlockSpec((kh, kw * C, TN), lambda b, n: (0, 0, n)),
            pl.BlockSpec((1, TN), lambda b, n: (0, n)),
        ],
        out_specs=pl.BlockSpec((None, OH, OW, TN), lambda b, n: (b, 0, 0, n)),
        compiler_params=_compiler_params(("parallel", "parallel")),
        cost_estimate=cost,
    ))


def _direct_conv(x, w, b, *, kh, kw, pad):
    B, Hin, Win, C = x.shape
    N = w.shape[-1]
    fn = _build_direct_conv(B, Hin, Win, C, kh, kw, pad, N)
    return fn(x.astype(jnp.bfloat16), w, b)


# ---------------------------------------------------------------------------
# 3x3/s2 max pool: parity planes + in-VMEM shifted max (pure VPU, no im2col)
# ---------------------------------------------------------------------------
def _maxpool_kernel(ee_ref, eo_ref, oe_ref, oo_ref, o_ref):
    ee = ee_ref[...]
    eo = eo_ref[...]
    oe = oe_ref[...]
    oo = oo_ref[...]

    def shift_w(t):   # value at col x becomes value at col x-1 (-inf at x==0)
        fill = jnp.full((t.shape[0], 1, t.shape[2]), _NEG_INF, t.dtype)
        return jnp.concatenate([fill, t[:, :-1, :]], axis=1)

    def shift_h(t):   # value at row y becomes value at row y-1 (-inf at y==0)
        fill = jnp.full((1, t.shape[1], t.shape[2]), _NEG_INF, t.dtype)
        return jnp.concatenate([fill, t[:-1, :, :]], axis=0)

    m = jnp.maximum(ee, eo)
    m = jnp.maximum(m, shift_w(eo))
    m = jnp.maximum(m, oe)
    m = jnp.maximum(m, shift_h(oe))
    m = jnp.maximum(m, oo)
    m = jnp.maximum(m, shift_w(oo))
    oo_u = shift_h(oo)
    m = jnp.maximum(m, oo_u)
    m = jnp.maximum(m, shift_w(oo_u))
    o_ref[...] = m


@functools.lru_cache(maxsize=None)
def _build_maxpool(B, H2, W2, C):
    spec = pl.BlockSpec((None, H2, W2, C), lambda b: (b, 0, 0, 0))
    return jax.jit(pl.pallas_call(
        _maxpool_kernel,
        out_shape=jax.ShapeDtypeStruct((B, H2, W2, C), jnp.bfloat16),
        grid=(B,),
        in_specs=[spec, spec, spec, spec],
        out_specs=spec,
        compiler_params=_compiler_params(("parallel",)),
    ))


def maxpool_3x3_s2(x):
    """MaxPool2d(3, stride=2, padding=1) on NHWC."""
    B, H, W, C = x.shape
    assert H % 2 == 0 and W % 2 == 0
    xr = x.reshape(B, H // 2, 2, W // 2, 2, C)
    ee = xr[:, :, 0, :, 0, :]
    eo = xr[:, :, 0, :, 1, :]
    oe = xr[:, :, 1, :, 0, :]
    oo = xr[:, :, 1, :, 1, :]
    return _build_maxpool(B, H // 2, W // 2, C)(ee, eo, oe, oo)


# ---------------------------------------------------------------------------
# Global average pool (AdaptiveAvgPool2d((1,1)) + flatten(1))
# ---------------------------------------------------------------------------
@functools.lru_cache(maxsize=None)
def _build_avgpool(B, HW, C):
    TC = min(512, C)
    inv = 1.0 / float(HW)

    def kernel(x_ref, o_ref):
        s = jnp.sum(x_ref[...].astype(jnp.float32), axis=1)
        o_ref[...] = (s * inv).astype(o_ref.dtype)

    return jax.jit(pl.pallas_call(
        kernel,
        out_shape=jax.ShapeDtypeStruct((B, C), jnp.float32),
        grid=(pl.cdiv(C, TC),),
        in_specs=[pl.BlockSpec((B, HW, TC), lambda c: (0, 0, c))],
        out_specs=pl.BlockSpec((B, TC), lambda c: (0, c)),
        compiler_params=_compiler_params(("parallel",)),
    ))


def global_avgpool(x):
    B, H, W, C = x.shape
    return _build_avgpool(B, H * W, C)(x.reshape(B, H * W, C))   # (B, C) f32


# ---------------------------------------------------------------------------
# Space-to-depth helpers (fold strided convs into stride-1 direct convs)
# ---------------------------------------------------------------------------
def _space_to_depth(x, pad):
    """Symmetric spatial pad by `pad`, then 2x2 space-to-depth (parity-major)."""
    B, H, W, C = x.shape
    Hp, Wp = H + 2 * pad, W + 2 * pad
    assert Hp % 2 == 0 and Wp % 2 == 0
    xp = jnp.pad(x, ((0, 0), (pad, pad), (pad, pad), (0, 0)))
    xp = xp.reshape(B, Hp // 2, 2, Wp // 2, 2, C).transpose(0, 1, 3, 2, 4, 5)
    return xp.reshape(B, Hp // 2, Wp // 2, 4 * C)


def _s2d_pack_weights(wf, k, cin, cout, c4_pad_to=None):
    """(k*k*cin, cout) folded weight -> s2d + kw-packed form (k2, k2*C4, cout)."""
    ks = (k + 1) // 2 * 2
    k2 = ks // 2
    w4 = wf.reshape(k, k, cin, cout)
    w4 = jnp.pad(w4, ((0, ks - k), (0, ks - k), (0, 0), (0, 0)))
    # (si, pi, sj, pj, c, n) -> (si, sj, pi, pj, c, n), matching the image s2d.
    w4 = w4.reshape(k2, 2, k2, 2, cin, cout).transpose(0, 2, 1, 3, 4, 5)
    w4 = w4.reshape(k2, k2, 4 * cin, cout)
    c4 = 4 * cin if c4_pad_to is None else c4_pad_to
    if c4 != 4 * cin:
        w4 = jnp.pad(w4, ((0, 0), (0, 0), (0, c4 - 4 * cin), (0, 0)))
    return w4.reshape(k2, k2 * c4, cout).astype(jnp.bfloat16)


# ---------------------------------------------------------------------------
# Conv wrappers (thin JAX glue; compute stays in Pallas)
# ---------------------------------------------------------------------------
def conv1x1_bn(x, p, stride=1, residual=None, relu=True):
    B = x.shape[0]
    if stride > 1:
        x = x[:, ::stride, ::stride, :]
    _, H, W, C = x.shape
    a = x.reshape(B * H * W, C).astype(jnp.bfloat16)
    K, N = p["wflat"].shape
    args = [a, p["wflat"], p["bias"]]
    if residual is not None:
        args.append(residual.reshape(B * H * W, N).astype(jnp.bfloat16))
    fn = _build_matmul(B * H * W, K, N, residual is not None, relu)
    return fn(*args).reshape(B, H, W, N)


def conv3x3_bn(x, p, stride):
    if stride == 1:
        return _direct_conv(x, p["wdc"], p["bias"], kh=3, kw=3, pad=1)
    # stride 2: fold to a 2x2 stride-1 conv on the 2x2 space-to-depth image.
    xs = _space_to_depth(x, pad=1)
    return _direct_conv(xs, p["wdc"], p["bias"], kh=2, kw=2, pad=0)


def stem_conv(x, p):
    # 7x7/2 stem -> 4x4 stride-1 conv on s2d(pad3(x)); channels padded 12->64
    # so the kernel operand is lane-friendly and kw-packed (K = 256).
    xs = _space_to_depth(x, pad=3)
    c = xs.shape[-1]
    if c < 64:
        xs = jnp.pad(xs, ((0, 0), (0, 0), (0, 0), (0, 64 - c)))
    return _direct_conv(xs, p["wdc"], p["bias"], kh=4, kw=4, pad=0)


# ---------------------------------------------------------------------------
# Synthetic, deterministic ResNet-101 parameters (folded-BN inference form)
# ---------------------------------------------------------------------------
def _fold_bn_conv(key, cin, cout, k, gamma_scale=1.0):
    wkey, gkey, bkey, mkey, vkey = jax.random.split(key, 5)
    fan_in = k * k * cin
    w = jax.random.normal(wkey, (fan_in, cout), jnp.float32) * jnp.sqrt(2.0 / fan_in)
    gamma = (1.0 + 0.05 * jax.random.normal(gkey, (cout,), jnp.float32)) * gamma_scale
    beta = 0.05 * jax.random.normal(bkey, (cout,), jnp.float32)
    mean = 0.05 * jax.random.normal(mkey, (cout,), jnp.float32)
    var = 1.0 + 0.1 * jax.random.uniform(vkey, (cout,), jnp.float32)
    scale = gamma / jnp.sqrt(var + 1e-5)
    bias = (beta - mean * scale).reshape(1, cout).astype(jnp.float32)
    return w * scale[None, :], bias        # BN scale folded into the weights


def init_resnet101_params(key):
    keys = iter(jax.random.split(key, 256))
    wf, b0 = _fold_bn_conv(next(keys), 3, 64, 7)
    params = {"conv1": {"wdc": _s2d_pack_weights(wf, 7, 3, 64, c4_pad_to=64),
                        "bias": b0}}
    # resnet101 bottleneck config: (blocks, width, first-block stride)
    cfg = [(3, 64, 1), (4, 128, 2), (23, 256, 2), (3, 512, 2)]
    in_ch = 64
    layers = []
    for blocks, width, stride in cfg:
        out_ch = width * 4
        layer = []
        for bidx in range(blocks):
            s = stride if bidx == 0 else 1
            w1, b1 = _fold_bn_conv(next(keys), in_ch, width, 1)
            w2, b2 = _fold_bn_conv(next(keys), width, width, 3)
            # small last-BN gamma keeps the 33-deep residual stack tame
            w3, b3 = _fold_bn_conv(next(keys), width, out_ch, 1, gamma_scale=0.2)
            wdc2 = (w2.reshape(3, 3 * width, width).astype(jnp.bfloat16)
                    if s == 1 else _s2d_pack_weights(w2, 3, width, width))
            blk = {
                "conv1": {"wflat": w1.astype(jnp.bfloat16), "bias": b1},
                "conv2": {"wdc": wdc2, "bias": b2},
                "conv3": {"wflat": w3.astype(jnp.bfloat16), "bias": b3},
                "stride": s,
            }
            if bidx == 0:
                wd, bd = _fold_bn_conv(next(keys), in_ch, out_ch, 1)
                blk["downsample"] = {"wflat": wd.astype(jnp.bfloat16), "bias": bd}
            layer.append(blk)
            in_ch = out_ch
        layers.append(layer)
    params["layers"] = layers
    return params


# ---------------------------------------------------------------------------
# Forward pass == nn.Sequential(resnet101.children()[:9]) then flatten(1)
# ---------------------------------------------------------------------------
def bottleneck(x, blk):
    stride = blk["stride"]
    if "downsample" in blk:
        identity = conv1x1_bn(x, blk["downsample"], stride=stride, relu=False)
    else:
        identity = x
    out = conv1x1_bn(x, blk["conv1"], relu=True)
    out = conv3x3_bn(out, blk["conv2"], stride)
    out = conv1x1_bn(out, blk["conv3"], residual=identity, relu=True)
    return out


def resnet_extractor_forward(x_nchw, params):
    """conv1 -> bn1 -> relu -> maxpool -> layer1..layer4 -> avgpool -> flatten(1)."""
    x = jnp.transpose(x_nchw, (0, 2, 3, 1)).astype(jnp.bfloat16)  # NCHW -> NHWC
    x = stem_conv(x, params["conv1"])                             # 7x7/2 + BN + ReLU
    x = maxpool_3x3_s2(x)                                         # 3x3/2 maxpool
    for layer in params["layers"]:
        for blk in layer:
            x = bottleneck(x, blk)
    return global_avgpool(x)                                      # (B, 2048) f32


if __name__ == "__main__":
    key = jax.random.PRNGKey(0)
    pkey, xkey = jax.random.split(key)
    params = init_resnet101_params(pkey)

    # Small input (module uses 224x224; 64x64 keeps this synthetic run small —
    # the adaptive avgpool still yields a (B, 2048) feature vector).
    x = jax.random.normal(xkey, (2, 3, 64, 64), jnp.float32)      # NCHW like PyTorch

    feats = resnet_extractor_forward(x, params)
    feats = jax.block_until_ready(feats)

    assert feats.shape == (2, 2048), feats.shape
    assert feats.dtype == jnp.float32
    assert bool(jnp.isfinite(feats).all())
    print("KERNEL_OK")
</pallas_src>

<mosaic_0001>
module attributes {stable_mosaic.version = 11 : i64} {
  func.func @_direct_conv_kernel(%arg0: i32, %arg1: i32, %arg2: memref<1x35x35x64xbf16, #tpu.memory_space<vmem>>, %arg3: memref<4x256x64xbf16, #tpu.memory_space<vmem>>, %arg4: memref<1x64xf32, #tpu.memory_space<vmem>>, %arg5: memref<1x32x32x64xbf16, #tpu.memory_space<vmem>>) attributes {dimension_semantics = [#tpu.dimension_semantics<parallel>, #tpu.dimension_semantics<parallel>], iteration_bounds = array<i64: 2, 1>, scalar_prefetch = 0 : i64, scratch_operands = 0 : i64, tpu.core_type = #tpu.core_type<tc>, window_params = [{transform_indices = @transform_0, window_bounds = array<i64: 1, 35, 35, 64>}, {transform_indices = @transform_1, window_bounds = array<i64: 4, 256, 64>}, {transform_indices = @transform_2, window_bounds = array<i64: 1, 64>}, {transform_indices = @transform_3, window_bounds = array<i64: 1, 32, 32, 64>}]} {
    %c0 = arith.constant 0 : index
    %c0_0 = arith.constant 0 : index
    %c0_1 = arith.constant 0 : index
    %c0_2 = arith.constant 0 : index
    %0 = vector.load %arg2[%c0, %c0_0, %c0_1, %c0_2] : memref<1x35x35x64xbf16, #tpu.memory_space<vmem>>, vector<1x35x35x64xbf16>
    %1 = vector.shape_cast %0 : vector<1x35x35x64xbf16> to vector<35x35x64xbf16>
    %cst = arith.constant 0.000000e+00 : f32
    %2 = vector.broadcast %cst : f32 to vector<1024x64xf32>
    %3 = vector.extract_strided_slice %1 {offsets = [0, 0, 0], sizes = [32, 32, 64], strides = [1, 1, 1]} : vector<35x35x64xbf16> to vector<32x32x64xbf16>
    %4 = vector.extract_strided_slice %1 {offsets = [0, 1, 0], sizes = [32, 32, 64], strides = [1, 1, 1]} : vector<35x35x64xbf16> to vector<32x32x64xbf16>
    %5 = vector.extract_strided_slice %1 {offsets = [0, 2, 0], sizes = [32, 32, 64], strides = [1, 1, 1]} : vector<35x35x64xbf16> to vector<32x32x64xbf16>
    %6 = vector.extract_strided_slice %1 {offsets = [0, 3, 0], sizes = [32, 32, 64], strides = [1, 1, 1]} : vector<35x35x64xbf16> to vector<32x32x64xbf16>
    %7 = tpu.concatenate %3, %4, %5, %6 in 2 : vector<32x32x64xbf16>, vector<32x32x64xbf16>, vector<32x32x64xbf16>, vector<32x32x64xbf16> -> vector<32x32x256xbf16>
    %8 = vector.shape_cast %7 : vector<32x32x256xbf16> to vector<1024x256xbf16>
    %c0_3 = arith.constant 0 : index
    %c0_4 = arith.constant 0 : index
    %c0_5 = arith.constant 0 : index
    %9 = vector.load %arg3[%c0_3, %c0_4, %c0_5] : memref<4x256x64xbf16, #tpu.memory_space<vmem>>, vector<1x256x64xbf16>
    %10 = vector.shape_cast %9 : vector<1x256x64xbf16> to vector<256x64xbf16>
    %cst_6 = arith.constant dense<0.000000e+00> : vector<1024x64xf32>
    %11 = tpu.matmul %8, %10, %cst_6 {dimension_numbers = #tpu.dot_dimension_numbers<[1], [0], [0], [1], [0, 0, 1, 1], [], []>} : vector<1024x256xbf16>, vector<256x64xbf16>, vector<1024x64xf32> -> vector<1024x64xf32>
    %12 = arith.addf %2, %11 : vector<1024x64xf32>
    %13 = vector.extract_strided_slice %1 {offsets = [1, 0, 0], sizes = [32, 32, 64], strides = [1, 1, 1]} : vector<35x35x64xbf16> to vector<32x32x64xbf16>
    %14 = vector.extract_strided_slice %1 {offsets = [1, 1, 0], sizes = [32, 32, 64], strides = [1, 1, 1]} : vector<35x35x64xbf16> to vector<32x32x64xbf16>
    %15 = vector.extract_strided_slice %1 {offsets = [1, 2, 0], sizes = [32, 32, 64], strides = [1, 1, 1]} : vector<35x35x64xbf16> to vector<32x32x64xbf16>
    %16 = vector.extract_strided_slice %1 {offsets = [1, 3, 0], sizes = [32, 32, 64], strides = [1, 1, 1]} : vector<35x35x64xbf16> to vector<32x32x64xbf16>
    %17 = tpu.concatenate %13, %14, %15, %16 in 2 : vector<32x32x64xbf16>, vector<32x32x64xbf16>, vector<32x32x64xbf16>, vector<32x32x64xbf16> -> vector<32x32x256xbf16>
    %18 = vector.shape_cast %17 : vector<32x32x256xbf16> to vector<1024x256xbf16>
    %c1 = arith.constant 1 : index
    %c0_7 = arith.constant 0 : index
    %c0_8 = arith.constant 0 : index
    %19 = vector.load %arg3[%c1, %c0_7, %c0_8] : memref<4x256x64xbf16, #tpu.memory_space<vmem>>, vector<1x256x64xbf16>
    %20 = vector.shape_cast %19 : vector<1x256x64xbf16> to vector<256x64xbf16>
    %cst_9 = arith.constant dense<0.000000e+00> : vector<1024x64xf32>
    %21 = tpu.matmul %18, %20, %cst_9 {dimension_numbers = #tpu.dot_dimension_numbers<[1], [0], [0], [1], [0, 0, 1, 1], [], []>} : vector<1024x256xbf16>, vector<256x64xbf16>, vector<1024x64xf32> -> vector<1024x64xf32>
    %22 = arith.addf %12, %21 : vector<1024x64xf32>
    %23 = vector.extract_strided_slice %1 {offsets = [2, 0, 0], sizes = [32, 32, 64], strides = [1, 1, 1]} : vector<35x35x64xbf16> to vector<32x32x64xbf16>
    %24 = vector.extract_strided_slice %1 {offsets = [2, 1, 0], sizes = [32, 32, 64], strides = [1, 1, 1]} : vector<35x35x64xbf16> to vector<32x32x64xbf16>
    %25 = vector.extract_strided_slice %1 {offsets = [2, 2, 0], sizes = [32, 32, 64], strides = [1, 1, 1]} : vector<35x35x64xbf16> to vector<32x32x64xbf16>
    %26 = vector.extract_strided_slice %1 {offsets = [2, 3, 0], sizes = [32, 32, 64], strides = [1, 1, 1]} : vector<35x35x64xbf16> to vector<32x32x64xbf16>
    %27 = tpu.concatenate %23, %24, %25, %26 in 2 : vector<32x32x64xbf16>, vector<32x32x64xbf16>, vector<32x32x64xbf16>, vector<32x32x64xbf16> -> vector<32x32x256xbf16>
    %28 = vector.shape_cast %27 : vector<32x32x256xbf16> to vector<1024x256xbf16>
    %c2 = arith.constant 2 : index
    %c0_10 = arith.constant 0 : index
    %c0_11 = arith.constant 0 : index
    %29 = vector.load %arg3[%c2, %c0_10, %c0_11] : memref<4x256x64xbf16, #tpu.memory_space<vmem>>, vector<1x256x64xbf16>
    %30 = vector.shape_cast %29 : vector<1x256x64xbf16> to vector<256x64xbf16>
    %cst_12 = arith.constant dense<0.000000e+00> : vector<1024x64xf32>
    %31 = tpu.matmul %28, %30, %cst_12 {dimension_numbers = #tpu.dot_dimension_numbers<[1], [0], [0], [1], [0, 0, 1, 1], [], []>} : vector<1024x256xbf16>, vector<256x64xbf16>, vector<1024x64xf32> -> vector<1024x64xf32>
    %32 = arith.addf %22, %31 : vector<1024x64xf32>
    %33 = vector.extract_strided_slice %1 {offsets = [3, 0, 0], sizes = [32, 32, 64], strides = [1, 1, 1]} : vector<35x35x64xbf16> to vector<32x32x64xbf16>
    %34 = vector.extract_strided_slice %1 {offsets = [3, 1, 0], sizes = [32, 32, 64], strides = [1, 1, 1]} : vector<35x35x64xbf16> to vector<32x32x64xbf16>
    %35 = vector.extract_strided_slice %1 {offsets = [3, 2, 0], sizes = [32, 32, 64], strides = [1, 1, 1]} : vector<35x35x64xbf16> to vector<32x32x64xbf16>
    %36 = vector.extract_strided_slice %1 {offsets = [3, 3, 0], sizes = [32, 32, 64], strides = [1, 1, 1]} : vector<35x35x64xbf16> to vector<32x32x64xbf16>
    %37 = tpu.concatenate %33, %34, %35, %36 in 2 : vector<32x32x64xbf16>, vector<32x32x64xbf16>, vector<32x32x64xbf16>, vector<32x32x64xbf16> -> vector<32x32x256xbf16>
    %38 = vector.shape_cast %37 : vector<32x32x256xbf16> to vector<1024x256xbf16>
    %c3 = arith.constant 3 : index
    %c0_13 = arith.constant 0 : index
    %c0_14 = arith.constant 0 : index
    %39 = vector.load %arg3[%c3, %c0_13, %c0_14] : memref<4x256x64xbf16, #tpu.memory_space<vmem>>, vector<1x256x64xbf16>
    %40 = vector.shape_cast %39 : vector<1x256x64xbf16> to vector<256x64xbf16>
    %cst_15 = arith.constant dense<0.000000e+00> : vector<1024x64xf32>
    %41 = tpu.matmul %38, %40, %cst_15 {dimension_numbers = #tpu.dot_dimension_numbers<[1], [0], [0], [1], [0, 0, 1, 1], [], []>} : vector<1024x256xbf16>, vector<256x64xbf16>, vector<1024x64xf32> -> vector<1024x64xf32>
    %42 = arith.addf %32, %41 : vector<1024x64xf32>
    %c0_16 = arith.constant 0 : index
    %c0_17 = arith.constant 0 : index
    %43 = vector.load %arg4[%c0_16, %c0_17] : memref<1x64xf32, #tpu.memory_space<vmem>>, vector<1x64xf32>
    %44 = vector.broadcast %43 : vector<1x64xf32> to vector<1024x64xf32>
    %45 = arith.addf %42, %44 : vector<1024x64xf32>
    %cst_18 = arith.constant 0.000000e+00 : f32
    %46 = vector.broadcast %cst_18 : f32 to vector<1024x64xf32>
    %47 = arith.maximumf %45, %46 : vector<1024x64xf32>
    %48 = vector.shape_cast %47 : vector<1024x64xf32> to vector<32x32x64xf32>
    %49 = arith.truncf %48 : vector<32x32x64xf32> to vector<32x32x64xbf16>
    %c0_19 = arith.constant 0 : index
    %c0_20 = arith.constant 0 : index
    %c0_21 = arith.constant 0 : index
    %c0_22 = arith.constant 0 : index
    %50 = vector.load %arg5[%c0_19, %c0_20, %c0_21, %c0_22] : memref<1x32x32x64xbf16, #tpu.memory_space<vmem>>, vector<1x32x32x64xbf16>
    %51 = vector.shape_cast %50 : vector<1x32x32x64xbf16> to vector<32x32x64xbf16>
    %52 = vector.shape_cast %49 : vector<32x32x64xbf16> to vector<1x32x32x64xbf16>
    tpu.vector_store %arg5[%c0_19, %c0_20, %c0_21, %c0_22], %52 {strides = array<i32>} : memref<1x32x32x64xbf16, #tpu.memory_space<vmem>>, vector<1x32x32x64xbf16>,
    return
  }
  func.func @transform_0(%arg0: i32, %arg1: i32) -> (i32, i32, i32, i32) {
    %c0_i32 = arith.constant 0 : i32
    %c0_i32_0 = arith.constant 0 : i32
    %c0_i32_1 = arith.constant 0 : i32
    %c0_i32_2 = arith.constant 0 : i32
    return %arg0, %c0_i32, %c0_i32_0, %c0_i32_1 : i32, i32, i32, i32
  }
  func.func @transform_1(%arg0: i32, %arg1: i32) -> (i32, i32, i32) {
    %c0_i32 = arith.constant 0 : i32
    %c0_i32_0 = arith.constant 0 : i32
    %c0_i32_1 = arith.constant 0 : i32
    return %c0_i32, %c0_i32_0, %arg1 : i32, i32, i32
  }
  func.func @transform_2(%arg0: i32, %arg1: i32) -> (i32, i32) {
    %c0_i32 = arith.constant 0 : i32
    %c0_i32_0 = arith.constant 0 : i32
    return %c0_i32, %arg1 : i32, i32
  }
  func.func @transform_3(%arg0: i32, %arg1: i32) -> (i32, i32, i32, i32) {
    %c0_i32 = arith.constant 0 : i32
    %c0_i32_0 = arith.constant 0 : i32
    %c0_i32_1 = arith.constant 0 : i32
    return %arg0, %c0_i32, %c0_i32_0, %arg1 : i32, i32, i32, i32
  }
}

</mosaic_0001>

<llo_original>
// kernel: tpu_custom_call.1
$region0: #{tpu_custom_call.1}
  #allocation0 [shape = 'u32[]', space=smem, size = 0x4, offset = 0x4, fixed_abs, tag = 'smem constant byte address 0x4 - core index']
  #allocation1 [shape = 'u32[144,128]{1,0:T(1,128)}', space=vmem, size = 0x12000, scoped, tag = 'internal scratch']
  %s0 = inlined_call_operand.vmem [shape: bf16[2,35,35,64], index: 0, kind: input, shape index: {}]
  %s1 = inlined_call_operand.vmem [shape: bf16[4,256,64], index: 1, kind: input, shape index: {}]
  %s2 = inlined_call_operand.vmem [shape: f32[1,64], index: 2, kind: input, shape index: {}]
  %s3 = inlined_call_operand.hbm [shape: bf16[2,32,32,64], index: 3, kind: output, shape index: {}]
  %s4 = sld [smem:[#allocation0]]
  $region45: #{tpu_custom_call.1} parent=0
    _
  %s6 = ssub.s32 1, %s4
  %s7 = scalar_select 0, %s6, %s4
  $region1: #{tpu_custom_call.1} parent=0
    #allocation2 [shape = 'u8[524288]{0}', space=vmem, size = 0x80000, scoped, tag = 'output window, operand 0']
    #allocation3 [shape = 's32[2]{0}', space=sflag, size = 0x8, scoped, tag = 'scoped memory for tpu_custom_call.1']
    %8 = vsyncpa [#allocation3], 0
    %s9 = scalar_lea.sflag [#allocation3], 1
    %10 = vsyncpa %s9, 0
    loop: start=0, step=1, limit=4
    $region2: #{tpu_custom_call.1} parent=1 // loop_pre_header
      _
    $region3: #{tpu_custom_call.1} parent=1 // loop_header
      %s12 = sphi 0, %s16
      %p13 = scmp.ge.s32.totalorder %s12, 4
      %s19 = sphi 0, %s31
      %s20 = sphi 0, %s27
      %s21 = sphi 0, %s19
      %s22 = sphi 0, %s20
      %s23 = sphi 0, %s21
      %s24 = sphi 0, %s22
      %s34 = sphi 0, %s36
      %s37 = sphi 0, %s34
      %s38 = sphi 0, %s37
      %s54 = sphi 0, %s38
      %s60 = sphi 0, %s62
      %s63 = sphi 0, %s60
      %s64 = sphi 0, %s63
      %s80 = sphi 0, %s64
      %s86 = sphi 0, %s88
      %s89 = sphi 0, %s86
      %s90 = sphi 0, %s89
      %s106 = sphi 0, %s90
      %s114 = sphi 0, %s116
      %s117 = sphi 0, %s114
      %s118 = sphi 0, %s117
      %s134 = sphi 0, %s118
    $region4: #{tpu_custom_call.1} parent=1 // loop_header_branch
      %15 = sbr.rel (%p13) target = $region8
    $region5: #{tpu_custom_call.1} parent=1 // loop_body
      %s17 = ssub.s32 %s12, 1
      %s18 = ssub.s32 %s12, 2
      %s25 = sadd.s32 1, %s20
      %p26 = scmp.ge.s32.totalorder %s25, 1
      %s27 = scalar_select %p26, 0, %s25
      %s28 = sadd.s32 1, %s19
      %s29 = scalar_select %p26, %s28, %s19
      %p30 = scmp.ge.s32.totalorder %s29, 2
      %s31 = scalar_select %p30, 0, %s29
      %s32 = ssub.s32 %s19, %s31
      %p33 = scmp.eq.s32.totalorder %s32, 0
      %s35 = sadd.s32 %s34, 1
      %s36 = scalar_select %p33, %s34, %s35
      %p39 = pneg %p33
      %p40 = scmp.eq.s32.totalorder %s12, 1
      %p41 = por %p39, %p40
      %p42 = scmp.ne.s32.totalorder %s34, %s37
      %p43 = scmp.eq.s32.totalorder %s12, 0
      %p44 = por %p42, %p43
      %p45 = scmp.ne.s32.totalorder %s34, %s37
      %p46 = scmp.eq.s32.totalorder %s17, 1
      %p47 = por %p45, %p46
      %p48 = scmp.ne.s32.totalorder %s37, %s38
      %p49 = scmp.eq.s32.totalorder %s17, 0
      %p50 = por %p48, %p49
      %p51 = scmp.ne.s32.totalorder %s37, %s38
      %p52 = scmp.eq.s32.totalorder %s18, 1
      %p53 = por %p51, %p52
      %p55 = scmp.ne.s32.totalorder %s38, %s54
      %p56 = scmp.eq.s32.totalorder %s18, 0
      %p57 = por %p55, %p56
      %s58 = ssub.s32 %s20, %s27
      %p59 = scmp.eq.s32.totalorder %s58, 0
      %s61 = sadd.s32 %s60, 1
      %s62 = scalar_select %p59, %s60, %s61
      %p65 = pneg %p59
      %p66 = scmp.eq.s32.totalorder %s12, 1
      %p67 = por %p65, %p66
      %p68 = scmp.ne.s32.totalorder %s60, %s63
      %p69 = scmp.eq.s32.totalorder %s12, 0
      %p70 = por %p68, %p69
      %p71 = scmp.ne.s32.totalorder %s60, %s63
      %p72 = scmp.eq.s32.totalorder %s17, 1
      %p73 = por %p71, %p72
      %p74 = scmp.ne.s32.totalorder %s63, %s64
      %p75 = scmp.eq.s32.totalorder %s17, 0
      %p76 = por %p74, %p75
      %p77 = scmp.ne.s32.totalorder %s63, %s64
      %p78 = scmp.eq.s32.totalorder %s18, 1
      %p79 = por %p77, %p78
      %p81 = scmp.ne.s32.totalorder %s64, %s80
      %p82 = scmp.eq.s32.totalorder %s18, 0
      %p83 = por %p81, %p82
      %s84 = ssub.s32 %s20, %s27
      %p85 = scmp.eq.s32.totalorder %s84, 0
      %s87 = sadd.s32 %s86, 1
      %s88 = scalar_select %p85, %s86, %s87
      %p91 = pneg %p85
      %p92 = scmp.eq.s32.totalorder %s12, 1
      %p93 = por %p91, %p92
      %p94 = scmp.ne.s32.totalorder %s86, %s89
      %p95 = scmp.eq.s32.totalorder %s12, 0
      %p96 = por %p94, %p95
      %p97 = scmp.ne.s32.totalorder %s86, %s89
      %p98 = scmp.eq.s32.totalorder %s17, 1
      %p99 = por %p97, %p98
      %p100 = scmp.ne.s32.totalorder %s89, %s90
      %p101 = scmp.eq.s32.totalorder %s17, 0
      %p102 = por %p100, %p101
      %p103 = scmp.ne.s32.totalorder %s89, %s90
      %p104 = scmp.eq.s32.totalorder %s18, 1
      %p105 = por %p103, %p104
      %p107 = scmp.ne.s32.totalorder %s90, %s106
      %p108 = scmp.eq.s32.totalorder %s18, 0
      %p109 = por %p107, %p108
      %s110 = ssub.s32 %s19, %s31
      %s111 = ssub.s32 %s20, %s27
      %s112 = sor.u32 %s110, %s111
      %p113 = scmp.eq.s32.totalorder %s112, 0
      %s115 = sadd.s32 %s114, 1
      %s116 = scalar_select %p113, %s114, %s115
      %p119 = pneg %p113
      %p120 = scmp.eq.s32.totalorder %s12, 1
      %p121 = por %p119, %p120
      %p122 = scmp.ne.s32.totalorder %s114, %s117
      %p123 = scmp.eq.s32.totalorder %s12, 0
      %p124 = por %p122, %p123
      %p125 = scmp.ne.s32.totalorder %s114, %s117
      %p126 = scmp.eq.s32.totalorder %s17, 1
      %p127 = por %p125, %p126
      %p128 = scmp.ne.s32.totalorder %s117, %s118
      %p129 = scmp.eq.s32.totalorder %s17, 0
      %p130 = por %p128, %p129
      %p131 = scmp.ne.s32.totalorder %s117, %s118
      %p132 = scmp.eq.s32.totalorder %s18, 1
      %p133 = por %p131, %p132
      %p135 = scmp.ne.s32.totalorder %s118, %s134
      %p136 = scmp.eq.s32.totalorder %s18, 0
      %p137 = por %p135, %p136
      %p138 = scmp.le.s32.totalorder 1, %s12
      %p139 = scmp.lt.s32.totalorder %s12, 3
      %p140 = pnand %p138, %p139
      %p141 = pneg %p140
      // Predicated region
      $region9: #{tpu_custom_call.1} parent=5 // pred_check
        _
      $region10: #{tpu_custom_call.1} parent=5 // pred_check_branch
        %143 = sbr.rel (%p140) target = $region12
      $region11: #{tpu_custom_call.1} parent=5 // pred_region
        %s144 = ssub.s32 %s12, 1
        // Predicated region
        $region13: #{tpu_custom_call.1} parent=11 // pred_check
          %p145 = pneg %p76
        $region14: #{tpu_custom_call.1} parent=11 // pred_check_branch
          %147 = sbr.rel (%p145) target = $region16
        $region15: #{tpu_custom_call.1} parent=11 // pred_region
          %p148 = scmp.lt.s32.totalorder %s22, 0
          %s149 = scalar_select %p148, %s22, 0
          %s150 = smul.addr %s149, 4
          %s151 = scalar_lea.vmem %s1, %s150
        $region16: #{tpu_custom_call.1} parent=11 // pred_fallthru
          _
        // Predicated region
        $region17: #{tpu_custom_call.1} parent=11 // pred_check
          %p152 = pneg %p102
        $region18: #{tpu_custom_call.1} parent=11 // pred_check_branch
          %154 = sbr.rel (%p152) target = $region20
        $region19: #{tpu_custom_call.1} parent=11 // pred_region
          %p155 = scmp.lt.s32.totalorder %s22, 0
          %s156 = scalar_select %p155, %s22, 0
          %s157 = scalar_lea.vmem %s2, %s156
        $region20: #{tpu_custom_call.1} parent=11 // pred_fallthru
          _
      $region12: #{tpu_custom_call.1} parent=5 // pred_fallthru
        _
      %p158 = scmp.lt.s32.totalorder %s12, 2
      // Predicated region
      $region21: #{tpu_custom_call.1} parent=5 // pred_check
        %p159 = pneg %p158
      $region22: #{tpu_custom_call.1} parent=5 // pred_check_branch
        %161 = sbr.rel (%p159) target = $region24
      $region23: #{tpu_custom_call.1} parent=5 // pred_region
        // Predicated region
        $region25: #{tpu_custom_call.1} parent=23 // pred_check
          %p162 = pneg %p44
        $region26: #{tpu_custom_call.1} parent=23 // pred_check_branch
          %164 = sbr.rel (%p162) target = $region28
        $region27: #{tpu_custom_call.1} parent=23 // pred_region
          %p165 = scmp.lt.s32.totalorder %s19, 1
          %s166 = scalar_select %p165, %s19, 1
          %s167 = smul.addr %s166, 175
          %s168 = smul.addr %s167, 4
          %s169 = scalar_lea.vmem %s0, %s168
        $region28: #{tpu_custom_call.1} parent=23 // pred_fallthru
          _
      $region24: #{tpu_custom_call.1} parent=5 // pred_fallthru
        _
      %p170 = scmp.le.s32.totalorder 1, %s12
      %p171 = scmp.lt.s32.totalorder %s12, 3
      %p172 = pnand %p170, %p171
      %p173 = pneg %p172
      // Predicated region
      $region29: #{tpu_custom_call.1} parent=5 // pred_check
        _
      $region30: #{tpu_custom_call.1} parent=5 // pred_check_branch
        %175 = sbr.rel (%p172) target = $region32
      $region31: #{tpu_custom_call.1} parent=5 // pred_region
        %s176 = ssub.s32 %s12, 1
        %p177 = scmp.lt.s32.totalorder %s21, 1
        %s178 = scalar_select %p177, %s21, 1
        %s179 = smul.addr %s178, 175
        %s180 = smul.addr %s179, 4
        %s181 = scalar_lea.vmem %s0, %s180
        %p182 = pneg %p50
        %p183 = pneg %p47
        %p184 = scmp.lt.s32.totalorder %s22, 0
        %s185 = scalar_select %p184, %s22, 0
        %s186 = smul.addr %s185, 4
        %s187 = scalar_lea.vmem %s1, %s186
        %p188 = pneg %p76
        %p189 = pneg %p73
        %p190 = scmp.lt.s32.totalorder %s22, 0
        %s191 = scalar_select %p190, %s22, 0
        %s192 = scalar_lea.vmem %s2, %s191
        %p193 = pneg %p102
        %p194 = pneg %p99
        %p195 = pneg %p130
        %p196 = pneg %p127
        %s197 = sand.u32 %s117, 1
        %s198 = scalar_lea.sflag [#allocation3], %s197
        %s199 = sand.u32 %s117, 1
        %s200 = smul.addr %s199, 512
        %s201 = scalar_lea.vmem [#allocation2], %s200
        %p202 = scmp.lt.s32.totalorder %s21, 1
        %s203 = scalar_select %p202, %s21, 1
        %s204 = smul.addr %s203, 175
        %s205 = smul.addr %s204, 4
        %s206 = scalar_lea.vmem %s0, %s205
        %p207 = scmp.lt.s32.totalorder %s22, 0
        %s208 = scalar_select %p207, %s22, 0
        %s209 = smul.addr %s208, 4
        %s210 = scalar_lea.vmem %s1, %s209
        %p211 = scmp.lt.s32.totalorder %s22, 0
        %s212 = scalar_select %p211, %s22, 0
        %s213 = scalar_lea.vmem %s2, %s212
        %v215 = vld [vmem:[%s206] sm:$0xf]
        %v216 = vld [vmem:[%s206 + $0x4] sm:$0xf]
        %v217 = vld [vmem:[%s206 + $0x8] sm:$0xf]
        %v218 = vld [vmem:[%s206 + $0xc] sm:$0xf]
        %v219 = vld [vmem:[%s206 + $0x10] sm:$0x3]
        %v220 = vld [vmem:[%s206 + $0x14] sm:$0xf]
        %v221 = vld [vmem:[%s206 + $0x18] sm:$0xf]
        %v222 = vld [vmem:[%s206 + $0x1c] sm:$0xf]
        %v223 = vld [vmem:[%s206 + $0x20] sm:$0xf]
        %v224 = vld [vmem:[%s206 + $0x24] sm:$0x3]
        %v225 = vld [vmem:[%s206 + $0x28] sm:$0xf]
        %v226 = vld [vmem:[%s206 + $0x2c] sm:$0xf]
        %v227 = vld [vmem:[%s206 + $0x30] sm:$0xf]
        %v228 = vld [vmem:[%s206 + $0x34] sm:$0xf]
        %v229 = vld [vmem:[%s206 + $0x38] sm:$0x3]
        %v230 = vld [vmem:[%s206 + $0x3c] sm:$0xf]
        %v231 = vld [vmem:[%s206 + $0x40] sm:$0xf]
        %v232 = vld [vmem:[%s206 + $0x44] sm:$0xf]
        %v233 = vld [vmem:[%s206 + $0x48] sm:$0xf]
        %v234 = vld [vmem:[%s206 + $0x4c] sm:$0x3]
        %v235 = vld [vmem:[%s206 + $0x50] sm:$0xf]
        %v236 = vld [vmem:[%s206 + $0x54] sm:$0xf]
        %v237 = vld [vmem:[%s206 + $0x58] sm:$0xf]
        %v238 = vld [vmem:[%s206 + $0x5c] sm:$0xf]
        %v239 = vld [vmem:[%s206 + $0x60] sm:$0x3]
        %v240 = vld [vmem:[%s206 + $0x64] sm:$0xf]
        %v241 = vld [vmem:[%s206 + $0x68] sm:$0xf]
        %v242 = vld [vmem:[%s206 + $0x6c] sm:$0xf]
        %v243 = vld [vmem:[%s206 + $0x70] sm:$0xf]
        %v244 = vld [vmem:[%s206 + $0x74] sm:$0x3]
        %v245 = vld [vmem:[%s206 + $0x78] sm:$0xf]
        %v246 = vld [vmem:[%s206 + $0x7c] sm:$0xf]
        %v247 = vld [vmem:[%s206 + $0x80] sm:$0xf]
        %v248 = vld [vmem:[%s206 + $0x84] sm:$0xf]
        %v249 = vld [vmem:[%s206 + $0x88] sm:$0x3]
        %v250 = vld [vmem:[%s206 + $0x8c] sm:$0xf]
        %v251 = vld [vmem:[%s206 + $0x90] sm:$0xf]
        %v252 = vld [vmem:[%s206 + $0x94] sm:$0xf]
        %v253 = vld [vmem:[%s206 + $0x98] sm:$0xf]
        %v254 = vld [vmem:[%s206 + $0x9c] sm:$0x3]
        %v255 = vld [vmem:[%s206 + $0xa0] sm:$0xf]
        %v256 = vld [vmem:[%s206 + $0xa4] sm:$0xf]
        %v257 = vld [vmem:[%s206 + $0xa8] sm:$0xf]
        %v258 = vld [vmem:[%s206 + $0xac] sm:$0xf]
        %v259 = vld [vmem:[%s206 + $0xb0] sm:$0x3]
        %v260 = vld [vmem:[%s206 + $0xb4] sm:$0xf]
        %v261 = vld [vmem:[%s206 + $0xb8] sm:$0xf]
        %v262 = vld [vmem:[%s206 + $0xbc] sm:$0xf]
        %v263 = vld [vmem:[%s206 + $0xc0] sm:$0xf]
        %v264 = vld [vmem:[%s206 + $0xc4] sm:$0x3]
        %v265 = vld [vmem:[%s206 + $0xc8] sm:$0xf]
        %v266 = vld [vmem:[%s206 + $0xcc] sm:$0xf]
        %v267 = vld [vmem:[%s206 + $0xd0] sm:$0xf]
        %v268 = vld [vmem:[%s206 + $0xd4] sm:$0xf]
        %v269 = vld [vmem:[%s206 + $0xd8] sm:$0x3]
        %v270 = vld [vmem:[%s206 + $0xdc] sm:$0xf]
        %v271 = vld [vmem:[%s206 + $0xe0] sm:$0xf]
        %v272 = vld [vmem:[%s206 + $0xe4] sm:$0xf]
        %v273 = vld [vmem:[%s206 + $0xe8] sm:$0xf]
        %v274 = vld [vmem:[%s206 + $0xec] sm:$0x3]
        %v275 = vld [vmem:[%s206 + $0xf0] sm:$0xf]
        %v276 = vld [vmem:[%s206 + $0xf4] sm:$0xf]
        %v277 = vld [vmem:[%s206 + $0xf8] sm:$0xf]
        %v278 = vld [vmem:[%s206 + $0xfc] sm:$0xf]
        %v279 = vld [vmem:[%s206 + $0x100] sm:$0x3]
        %v280 = vld [vmem:[%s206 + $0x104] sm:$0xf]
        %v281 = vld [vmem:[%s206 + $0x108] sm:$0xf]
        %v282 = vld [vmem:[%s206 + $0x10c] sm:$0xf]
        %v283 = vld [vmem:[%s206 + $0x110] sm:$0xf]
        %v284 = vld [vmem:[%s206 + $0x114] sm:$0x3]
        %v285 = vld [vmem:[%s206 + $0x118] sm:$0xf]
        %v286 = vld [vmem:[%s206 + $0x11c] sm:$0xf]
        %v287 = vld [vmem:[%s206 + $0x120] sm:$0xf]
        %v288 = vld [vmem:[%s206 + $0x124] sm:$0xf]
        %v289 = vld [vmem:[%s206 + $0x128] sm:$0x3]
        %v290 = vld [vmem:[%s206 + $0x12c] sm:$0xf]
        %v291 = vld [vmem:[%s206 + $0x130] sm:$0xf]
        %v292 = vld [vmem:[%s206 + $0x134] sm:$0xf]
        %v293 = vld [vmem:[%s206 + $0x138] sm:$0xf]
        %v294 = vld [vmem:[%s206 + $0x13c] sm:$0x3]
        %v295 = vld [vmem:[%s206 + $0x140] sm:$0xf]
        %v296 = vld [vmem:[%s206 + $0x144] sm:$0xf]
        %v297 = vld [vmem:[%s206 + $0x148] sm:$0xf]
        %v298 = vld [vmem:[%s206 + $0x14c] sm:$0xf]
        %v299 = vld [vmem:[%s206 + $0x150] sm:$0x3]
        %v300 = vld [vmem:[%s206 + $0x154] sm:$0xf]
        %v301 = vld [vmem:[%s206 + $0x158] sm:$0xf]
        %v302 = vld [vmem:[%s206 + $0x15c] sm:$0xf]
        %v303 = vld [vmem:[%s206 + $0x160] sm:$0xf]
        %v304 = vld [vmem:[%s206 + $0x164] sm:$0x3]
        %v305 = vld [vmem:[%s206 + $0x168] sm:$0xf]
        %v306 = vld [vmem:[%s206 + $0x16c] sm:$0xf]
        %v307 = vld [vmem:[%s206 + $0x170] sm:$0xf]
        %v308 = vld [vmem:[%s206 + $0x174] sm:$0xf]
        %v309 = vld [vmem:[%s206 + $0x178] sm:$0x3]
        %v310 = vld [vmem:[%s206 + $0x17c] sm:$0xf]
        %v311 = vld [vmem:[%s206 + $0x180] sm:$0xf]
        %v312 = vld [vmem:[%s206 + $0x184] sm:$0xf]
        %v313 = vld [vmem:[%s206 + $0x188] sm:$0xf]
        %v314 = vld [vmem:[%s206 + $0x18c] sm:$0x3]
        %v315 = vld [vmem:[%s206 + $0x190] sm:$0xf]
        %v316 = vld [vmem:[%s206 + $0x194] sm:$0xf]
        %v317 = vld [vmem:[%s206 + $0x198] sm:$0xf]
        %v318 = vld [vmem:[%s206 + $0x19c] sm:$0xf]
        %v319 = vld [vmem:[%s206 + $0x1a0] sm:$0x3]
        %v320 = vld [vmem:[%s206 + $0x1a4] sm:$0xf]
        %v321 = vld [vmem:[%s206 + $0x1a8] sm:$0xf]
        %v322 = vld [vmem:[%s206 + $0x1ac] sm:$0xf]
        %v323 = vld [vmem:[%s206 + $0x1b0] sm:$0xf]
        %v324 = vld [vmem:[%s206 + $0x1b4] sm:$0x3]
        %v325 = vld [vmem:[%s206 + $0x1b8] sm:$0xf]
        %v326 = vld [vmem:[%s206 + $0x1bc] sm:$0xf]
        %v327 = vld [vmem:[%s206 + $0x1c0] sm:$0xf]
        %v328 = vld [vmem:[%s206 + $0x1c4] sm:$0xf]
        %v329 = vld [vmem:[%s206 + $0x1c8] sm:$0x3]
        %v330 = vld [vmem:[%s206 + $0x1cc] sm:$0xf]
        %v331 = vld [vmem:[%s206 + $0x1d0] sm:$0xf]
        %v332 = vld [vmem:[%s206 + $0x1d4] sm:$0xf]
        %v333 = vld [vmem:[%s206 + $0x1d8] sm:$0xf]
        %v334 = vld [vmem:[%s206 + $0x1dc] sm:$0x3]
        %v335 = vld [vmem:[%s206 + $0x1e0] sm:$0xf]
        %v336 = vld [vmem:[%s206 + $0x1e4] sm:$0xf]
        %v337 = vld [vmem:[%s206 + $0x1e8] sm:$0xf]
        %v338 = vld [vmem:[%s206 + $0x1ec] sm:$0xf]
        %v339 = vld [vmem:[%s206 + $0x1f0] sm:$0x3]
        %v340 = vld [vmem:[%s206 + $0x1f4] sm:$0xf]
        %v341 = vld [vmem:[%s206 + $0x1f8] sm:$0xf]
        %v342 = vld [vmem:[%s206 + $0x1fc] sm:$0xf]
        %v343 = vld [vmem:[%s206 + $0x200] sm:$0xf]
        %v344 = vld [vmem:[%s206 + $0x204] sm:$0x3]
        %v345 = vld [vmem:[%s206 + $0x208] sm:$0xf]
        %v346 = vld [vmem:[%s206 + $0x20c] sm:$0xf]
        %v347 = vld [vmem:[%s206 + $0x210] sm:$0xf]
        %v348 = vld [vmem:[%s206 + $0x214] sm:$0xf]
        %v349 = vld [vmem:[%s206 + $0x218] sm:$0x3]
        %v350 = vld [vmem:[%s206 + $0x21c] sm:$0xf]
        %v351 = vld [vmem:[%s206 + $0x220] sm:$0xf]
        %v352 = vld [vmem:[%s206 + $0x224] sm:$0xf]
        %v353 = vld [vmem:[%s206 + $0x228] sm:$0xf]
        %v354 = vld [vmem:[%s206 + $0x22c] sm:$0x3]
        %v355 = vld [vmem:[%s206 + $0x230] sm:$0xf]
        %v356 = vld [vmem:[%s206 + $0x234] sm:$0xf]
        %v357 = vld [vmem:[%s206 + $0x238] sm:$0xf]
        %v358 = vld [vmem:[%s206 + $0x23c] sm:$0xf]
        %v359 = vld [vmem:[%s206 + $0x240] sm:$0x3]
        %v360 = vld [vmem:[%s206 + $0x244] sm:$0xf]
        %v361 = vld [vmem:[%s206 + $0x248] sm:$0xf]
        %v362 = vld [vmem:[%s206 + $0x24c] sm:$0xf]
        %v363 = vld [vmem:[%s206 + $0x250] sm:$0xf]
        %v364 = vld [vmem:[%s206 + $0x254] sm:$0x3]
        %v365 = vld [vmem:[%s206 + $0x258] sm:$0xf]
        %v366 = vld [vmem:[%s206 + $0x25c] sm:$0xf]
        %v367 = vld [vmem:[%s206 + $0x260] sm:$0xf]
        %v368 = vld [vmem:[%s206 + $0x264] sm:$0xf]
        %v369 = vld [vmem:[%s206 + $0x268] sm:$0x3]
        %v370 = vld [vmem:[%s206 + $0x26c] sm:$0xf]
        %v371 = vld [vmem:[%s206 + $0x270] sm:$0xf]
        %v372 = vld [vmem:[%s206 + $0x274] sm:$0xf]
        %v373 = vld [vmem:[%s206 + $0x278] sm:$0xf]
        %v374 = vld [vmem:[%s206 + $0x27c] sm:$0x3]
        %v375 = vld [vmem:[%s206 + $0x280] sm:$0xf]
        %v376 = vld [vmem:[%s206 + $0x284] sm:$0xf]
        %v377 = vld [vmem:[%s206 + $0x288] sm:$0xf]
        %v378 = vld [vmem:[%s206 + $0x28c] sm:$0xf]
        %v379 = vld [vmem:[%s206 + $0x290] sm:$0x3]
        %v380 = vld [vmem:[%s206 + $0x294] sm:$0xf]
        %v381 = vld [vmem:[%s206 + $0x298] sm:$0xf]
        %v382 = vld [vmem:[%s206 + $0x29c] sm:$0xf]
        %v383 = vld [vmem:[%s206 + $0x2a0] sm:$0xf]
        %v384 = vld [vmem:[%s206 + $0x2a4] sm:$0x3]
        %v385 = vld [vmem:[%s206 + $0x2a8] sm:$0xf]
        %v386 = vld [vmem:[%s206 + $0x2ac] sm:$0xf]
        %v387 = vld [vmem:[%s206 + $0x2b0] sm:$0xf]
        %v388 = vld [vmem:[%s206 + $0x2b4] sm:$0xf]
        %v389 = vld [vmem:[%s206 + $0x2b8] sm:$0x3]
        %v518 = vunpack.c.l.b16 %v215
        %v519 = vunpack.c.l.b16 %v216
        %v520 = vunpack.c.l.b16 %v217
        %v521 = vunpack.c.l.b16 %v218
        %v522 = vunpack.c.l.b16 %v220
        %v523 = vunpack.c.l.b16 %v221
        %v524 = vunpack.c.l.b16 %v222
        %v525 = vunpack.c.l.b16 %v223
        %v526 = vunpack.c.l.b16 %v225
        %v527 = vunpack.c.l.b16 %v226
        %v528 = vunpack.c.l.b16 %v227
        %v529 = vunpack.c.l.b16 %v228
        %v530 = vunpack.c.l.b16 %v230
        %v531 = vunpack.c.l.b16 %v231
        %v532 = vunpack.c.l.b16 %v232
        %v533 = vunpack.c.l.b16 %v233
        %v534 = vunpack.c.l.b16 %v235
        %v535 = vunpack.c.l.b16 %v236
        %v536 = vunpack.c.l.b16 %v237
        %v537 = vunpack.c.l.b16 %v238
        %v538 = vunpack.c.l.b16 %v240
        %v539 = vunpack.c.l.b16 %v241
        %v540 = vunpack.c.l.b16 %v242
        %v541 = vunpack.c.l.b16 %v243
        %v542 = vunpack.c.l.b16 %v245
        %v543 = vunpack.c.l.b16 %v246
        %v544 = vunpack.c.l.b16 %v247
        %v545 = vunpack.c.l.b16 %v248
        %v546 = vunpack.c.l.b16 %v250
        %v547 = vunpack.c.l.b16 %v251
        %v548 = vunpack.c.l.b16 %v252
        %v549 = vunpack.c.l.b16 %v253
        %v550 = vunpack.c.l.b16 %v255
        %v551 = vunpack.c.l.b16 %v256
        %v552 = vunpack.c.l.b16 %v257
        %v553 = vunpack.c.l.b16 %v258
        %v554 = vunpack.c.l.b16 %v260
        %v555 = vunpack.c.l.b16 %v261
        %v556 = vunpack.c.l.b16 %v262
        %v557 = vunpack.c.l.b16 %v263
        %v558 = vunpack.c.l.b16 %v265
        %v559 = vunpack.c.l.b16 %v266
        %v560 = vunpack.c.l.b16 %v267
        %v561 = vunpack.c.l.b16 %v268
        %v562 = vunpack.c.l.b16 %v270
        %v563 = vunpack.c.l.b16 %v271
        %v564 = vunpack.c.l.b16 %v272
        %v565 = vunpack.c.l.b16 %v273
        %v566 = vunpack.c.l.b16 %v275
        %v567 = vunpack.c.l.b16 %v276
        %v568 = vunpack.c.l.b16 %v277
        %v569 = vunpack.c.l.b16 %v278
        %v570 = vunpack.c.l.b16 %v280
        %v571 = vunpack.c.l.b16 %v281
        %v572 = vunpack.c.l.b16 %v282
        %v573 = vunpack.c.l.b16 %v283
        %v574 = vunpack.c.l.b16 %v285
        %v575 = vunpack.c.l.b16 %v286
        %v576 = vunpack.c.l.b16 %v287
        %v577 = vunpack.c.l.b16 %v288
        %v578 = vunpack.c.l.b16 %v290
        %v579 = vunpack.c.l.b16 %v291
        %v580 = vunpack.c.l.b16 %v292
        %v581 = vunpack.c.l.b16 %v293
        %v582 = vunpack.c.l.b16 %v295
        %v583 = vunpack.c.l.b16 %v296
        %v584 = vunpack.c.l.b16 %v297
        %v585 = vunpack.c.l.b16 %v298
        %v586 = vunpack.c.l.b16 %v300
        %v587 = vunpack.c.l.b16 %v301
        %v588 = vunpack.c.l.b16 %v302
        %v589 = vunpack.c.l.b16 %v303
        %v590 = vunpack.c.l.b16 %v305
        %v591 = vunpack.c.l.b16 %v306
        %v592 = vunpack.c.l.b16 %v307
        %v593 = vunpack.c.l.b16 %v308
        %v594 = vunpack.c.l.b16 %v310
        %v595 = vunpack.c.l.b16 %v311
        %v596 = vunpack.c.l.b16 %v312
        %v597 = vunpack.c.l.b16 %v313
        %v598 = vunpack.c.l.b16 %v315
        %v599 = vunpack.c.l.b16 %v316
        %v600 = vunpack.c.l.b16 %v317
        %v601 = vunpack.c.l.b16 %v318
        %v602 = vunpack.c.l.b16 %v320
        %v603 = vunpack.c.l.b16 %v321
        %v604 = vunpack.c.l.b16 %v322
        %v605 = vunpack.c.l.b16 %v323
        %v606 = vunpack.c.l.b16 %v325
        %v607 = vunpack.c.l.b16 %v326
        %v608 = vunpack.c.l.b16 %v327
        %v609 = vunpack.c.l.b16 %v328
        %v610 = vunpack.c.l.b16 %v330
        %v611 = vunpack.c.l.b16 %v331
        %v612 = vunpack.c.l.b16 %v332
        %v613 = vunpack.c.l.b16 %v333
        %v614 = vunpack.c.l.b16 %v335
        %v615 = vunpack.c.l.b16 %v336
        %v616 = vunpack.c.l.b16 %v337
        %v617 = vunpack.c.l.b16 %v338
        %v618 = vunpack.c.l.b16 %v340
        %v619 = vunpack.c.l.b16 %v341
        %v620 = vunpack.c.l.b16 %v342
        %v621 = vunpack.c.l.b16 %v343
        %v622 = vunpack.c.l.b16 %v345
        %v623 = vunpack.c.l.b16 %v346
        %v624 = vunpack.c.l.b16 %v347
        %v625 = vunpack.c.l.b16 %v348
        %v626 = vunpack.c.l.b16 %v350
        %v627 = vunpack.c.l.b16 %v351
        %v628 = vunpack.c.l.b16 %v352
        %v629 = vunpack.c.l.b16 %v353
        %v630 = vunpack.c.l.b16 %v355
        %v631 = vunpack.c.l.b16 %v356
        %v632 = vunpack.c.l.b16 %v357
        %v633 = vunpack.c.l.b16 %v358
        %v634 = vunpack.c.l.b16 %v360
        %v635 = vunpack.c.l.b16 %v361
        %v636 = vunpack.c.l.b16 %v362
        %v637 = vunpack.c.l.b16 %v363
        %v638 = vunpack.c.l.b16 %v365
        %v639 = vunpack.c.l.b16 %v366
        %v640 = vunpack.c.l.b16 %v367
        %v641 = vunpack.c.l.b16 %v368
        %v642 = vunpack.c.l.b16 %v370
        %v643 = vunpack.c.l.b16 %v371
        %v644 = vunpack.c.l.b16 %v372
        %v645 = vunpack.c.l.b16 %v373
        %v646 = vpack.c.b16 %v519, %v518
        %v647 = vpack.c.b16 %v521, %v520
        %v648 = vpack.c.b16 %v523, %v522
        %v649 = vpack.c.b16 %v525, %v524
        %v650 = vpack.c.b16 %v527, %v526
        %v651 = vpack.c.b16 %v529, %v528
        %v652 = vpack.c.b16 %v531, %v530
        %v653 = vpack.c.b16 %v533, %v532
        %v654 = vpack.c.b16 %v535, %v534
        %v655 = vpack.c.b16 %v537, %v536
        %v656 = vpack.c.b16 %v539, %v538
        %v657 = vpack.c.b16 %v541, %v540
        %v658 = vpack.c.b16 %v543, %v542
        %v659 = vpack.c.b16 %v545, %v544
        %v660 = vpack.c.b16 %v547, %v546
        %v661 = vpack.c.b16 %v549, %v548
        %v662 = vpack.c.b16 %v551, %v550
        %v663 = vpack.c.b16 %v553, %v552
        %v664 = vpack.c.b16 %v555, %v554
        %v665 = vpack.c.b16 %v557, %v556
        %v666 = vpack.c.b16 %v559, %v558
        %v667 = vpack.c.b16 %v561, %v560
        %v668 = vpack.c.b16 %v563, %v562
        %v669 = vpack.c.b16 %v565, %v564
        %v670 = vpack.c.b16 %v567, %v566
        %v671 = vpack.c.b16 %v569, %v568
        %v672 = vpack.c.b16 %v571, %v570
        %v673 = vpack.c.b16 %v573, %v572
        %v674 = vpack.c.b16 %v575, %v574
        %v675 = vpack.c.b16 %v577, %v576
        %v676 = vpack.c.b16 %v579, %v578
        %v677 = vpack.c.b16 %v581, %v580
        %v678 = vpack.c.b16 %v583, %v582
        %v679 = vpack.c.b16 %v585, %v584
        %v680 = vpack.c.b16 %v587, %v586
        %v681 = vpack.c.b16 %v589, %v588
        %v682 = vpack.c.b16 %v591, %v590
        %v683 = vpack.c.b16 %v593, %v592
        %v684 = vpack.c.b16 %v595, %v594
        %v685 = vpack.c.b16 %v597, %v596
        %v686 = vpack.c.b16 %v599, %v598
        %v687 = vpack.c.b16 %v601, %v600
        %v688 = vpack.c.b16 %v603, %v602
        %v689 = vpack.c.b16 %v605, %v604
        %v690 = vpack.c.b16 %v607, %v606
        %v691 = vpack.c.b16 %v609, %v608
        %v692 = vpack.c.b16 %v611, %v610
        %v693 = vpack.c.b16 %v613, %v612
        %v694 = vpack.c.b16 %v615, %v614
        %v695 = vpack.c.b16 %v617, %v616
        %v696 = vpack.c.b16 %v619, %v618
        %v697 = vpack.c.b16 %v621, %v620
        %v698 = vpack.c.b16 %v623, %v622
        %v699 = vpack.c.b16 %v625, %v624
        %v700 = vpack.c.b16 %v627, %v626
        %v701 = vpack.c.b16 %v629, %v628
        %v702 = vpack.c.b16 %v631, %v630
        %v703 = vpack.c.b16 %v633, %v632
        %v704 = vpack.c.b16 %v635, %v634
        %v705 = vpack.c.b16 %v637, %v636
        %v706 = vpack.c.b16 %v639, %v638
        %v707 = vpack.c.b16 %v641, %v640
        %v708 = vpack.c.b16 %v643, %v642
        %v709 = vpack.c.b16 %v645, %v644
        %v742 = vunpack.c.l.b16 %v219
        %v743 = vunpack.c.l.b16 %v224
        %v744 = vunpack.c.l.b16 %v229
        %v745 = vunpack.c.l.b16 %v234
        %v746 = vunpack.c.l.b16 %v239
        %v747 = vunpack.c.l.b16 %v244
        %v748 = vunpack.c.l.b16 %v249
        %v749 = vunpack.c.l.b16 %v254
        %v750 = vunpack.c.l.b16 %v259
        %v751 = vunpack.c.l.b16 %v264
        %v752 = vunpack.c.l.b16 %v269
        %v753 = vunpack.c.l.b16 %v274
        %v754 = vunpack.c.l.b16 %v279
        %v755 = vunpack.c.l.b16 %v284
        %v756 = vunpack.c.l.b16 %v289
        %v757 = vunpack.c.l.b16 %v294
        %v758 = vunpack.c.l.b16 %v299
        %v759 = vunpack.c.l.b16 %v304
        %v760 = vunpack.c.l.b16 %v309
        %v761 = vunpack.c.l.b16 %v314
        %v762 = vunpack.c.l.b16 %v319
        %v763 = vunpack.c.l.b16 %v324
        %v764 = vunpack.c.l.b16 %v329
        %v765 = vunpack.c.l.b16 %v334
        %v766 = vunpack.c.l.b16 %v339
        %v767 = vunpack.c.l.b16 %v344
        %v768 = vunpack.c.l.b16 %v349
        %v769 = vunpack.c.l.b16 %v354
        %v770 = vunpack.c.l.b16 %v359
        %v771 = vunpack.c.l.b16 %v364
        %v772 = vunpack.c.l.b16 %v369
        %v773 = vunpack.c.l.b16 %v374
        %v774 = vpack.c.b16 %v742, %v742
        %v775 = vpack.c.b16 %v743, %v743
        %v776 = vpack.c.b16 %v744, %v744
        %v777 = vpack.c.b16 %v745, %v745
        %v778 = vpack.c.b16 %v746, %v746
        %v779 = vpack.c.b16 %v747, %v747
        %v780 = vpack.c.b16 %v748, %v748
        %v781 = vpack.c.b16 %v749, %v749
        %v782 = vpack.c.b16 %v750, %v750
        %v783 = vpack.c.b16 %v751, %v751
        %v784 = vpack.c.b16 %v752, %v752
        %v785 = vpack.c.b16 %v753, %v753
        %v786 = vpack.c.b16 %v754, %v754
        %v787 = vpack.c.b16 %v755, %v755
        %v788 = vpack.c.b16 %v756, %v756
        %v789 = vpack.c.b16 %v757, %v757
        %v790 = vpack.c.b16 %v758, %v758
        %v791 = vpack.c.b16 %v759, %v759
        %v792 = vpack.c.b16 %v760, %v760
        %v793 = vpack.c.b16 %v761, %v761
        %v794 = vpack.c.b16 %v762, %v762
        %v795 = vpack.c.b16 %v763, %v763
        %v796 = vpack.c.b16 %v764, %v764
        %v797 = vpack.c.b16 %v765, %v765
        %v798 = vpack.c.b16 %v766, %v766
        %v799 = vpack.c.b16 %v767, %v767
        %v800 = vpack.c.b16 %v768, %v768
        %v801 = vpack.c.b16 %v769, %v769
        %v802 = vpack.c.b16 %v770, %v770
        %v803 = vpack.c.b16 %v771, %v771
        %v804 = vpack.c.b16 %v772, %v772
        %v805 = vpack.c.b16 %v773, %v773
        %vm806 = vsmask.f32 7424
        %v808 = vshrl.u32 %v646, 16
        %v810 = vshll.u32 %v646, 16
        %v812 = vrot.slane %v810, 1
        %v813 = vor.u32 %v808, %v812
        %v815 = vshll.u32 %v647, 16
        %v817 = vrot.slane %v815, 1
        %v818 = vsel %vm806, %v813, %v817
        %v819 = vshrl.u32 %v647, 16
        %v821 = vor.u32 %v819, %v817
        %v823 = vshll.u32 %v774, 16
        %v825 = vrot.slane %v823, 1
        %v826 = vsel %vm806, %v821, %v825
        %v828 = vshrl.u32 %v648, 16
        %v830 = vshll.u32 %v648, 16
        %v832 = vrot.slane %v830, 1
        %v833 = vor.u32 %v828, %v832
        %v835 = vshll.u32 %v649, 16
        %v837 = vrot.slane %v835, 1
        %v838 = vsel %vm806, %v833, %v837
        %v839 = vshrl.u32 %v649, 16
        %v841 = vor.u32 %v839, %v837
        %v843 = vshll.u32 %v775, 16
        %v845 = vrot.slane %v843, 1
        %v846 = vsel %vm806, %v841, %v845
        %v848 = vshrl.u32 %v650, 16
        %v850 = vshll.u32 %v650, 16
        %v852 = vrot.slane %v850, 1
        %v853 = vor.u32 %v848, %v852
        %v855 = vshll.u32 %v651, 16
        %v857 = vrot.slane %v855, 1
        %v858 = vsel %vm806, %v853, %v857
        %v859 = vshrl.u32 %v651, 16
        %v861 = vor.u32 %v859, %v857
        %v863 = vshll.u32 %v776, 16
        %v865 = vrot.slane %v863, 1
        %v866 = vsel %vm806, %v861, %v865
        %v868 = vshrl.u32 %v652, 16
        %v870 = vshll.u32 %v652, 16
        %v872 = vrot.slane %v870, 1
        %v873 = vor.u32 %v868, %v872
        %v875 = vshll.u32 %v653, 16
        %v877 = vrot.slane %v875, 1
        %v878 = vsel %vm806, %v873, %v877
        %v879 = vshrl.u32 %v653, 16
        %v881 = vor.u32 %v879, %v877
        %v883 = vshll.u32 %v777, 16
        %v885 = vrot.slane %v883, 1
        %v886 = vsel %vm806, %v881, %v885
        %v888 = vshrl.u32 %v654, 16
        %v890 = vshll.u32 %v654, 16
        %v892 = vrot.slane %v890, 1
        %v893 = vor.u32 %v888, %v892
        %v895 = vshll.u32 %v655, 16
        %v897 = vrot.slane %v895, 1
        %v898 = vsel %vm806, %v893, %v897
        %v899 = vshrl.u32 %v655, 16
        %v901 = vor.u32 %v899, %v897
        %v903 = vshll.u32 %v778, 16
        %v905 = vrot.slane %v903, 1
        %v906 = vsel %vm806, %v901, %v905
        %v908 = vshrl.u32 %v656, 16
        %v910 = vshll.u32 %v656, 16
        %v912 = vrot.slane %v910, 1
        %v913 = vor.u32 %v908, %v912
        %v915 = vshll.u32 %v657, 16
        %v917 = vrot.slane %v915, 1
        %v918 = vsel %vm806, %v913, %v917
        %v919 = vshrl.u32 %v657, 16
        %v921 = vor.u32 %v919, %v917
        %v923 = vshll.u32 %v779, 16
        %v925 = vrot.slane %v923, 1
        %v926 = vsel %vm806, %v921, %v925
        %v928 = vshrl.u32 %v658, 16
        %v930 = vshll.u32 %v658, 16
        %v932 = vrot.slane %v930, 1
        %v933 = vor.u32 %v928, %v932
        %v935 = vshll.u32 %v659, 16
        %v937 = vrot.slane %v935, 1
        %v938 = vsel %vm806, %v933, %v937
        %v939 = vshrl.u32 %v659, 16
        %v941 = vor.u32 %v939, %v937
        %v943 = vshll.u32 %v780, 16
        %v945 = vrot.slane %v943, 1
        %v946 = vsel %vm806, %v941, %v945
        %v948 = vshrl.u32 %v660, 16
        %v950 = vshll.u32 %v660, 16
        %v952 = vrot.slane %v950, 1
        %v953 = vor.u32 %v948, %v952
        %v955 = vshll.u32 %v661, 16
        %v957 = vrot.slane %v955, 1
        %v958 = vsel %vm806, %v953, %v957
        %v959 = vshrl.u32 %v661, 16
        %v961 = vor.u32 %v959, %v957
        %v963 = vshll.u32 %v781, 16
        %v965 = vrot.slane %v963, 1
        %v966 = vsel %vm806, %v961, %v965
        %v968 = vshrl.u32 %v662, 16
        %v970 = vshll.u32 %v662, 16
        %v972 = vrot.slane %v970, 1
        %v973 = vor.u32 %v968, %v972
        %v975 = vshll.u32 %v663, 16
        %v977 = vrot.slane %v975, 1
        %v978 = vsel %vm806, %v973, %v977
        %v979 = vshrl.u32 %v663, 16
        %v981 = vor.u32 %v979, %v977
        %v983 = vshll.u32 %v782, 16
        %v985 = vrot.slane %v983, 1
        %v986 = vsel %vm806, %v981, %v985
        %v988 = vshrl.u32 %v664, 16
        %v990 = vshll.u32 %v664, 16
        %v992 = vrot.slane %v990, 1
        %v993 = vor.u32 %v988, %v992
        %v995 = vshll.u32 %v665, 16
        %v997 = vrot.slane %v995, 1
        %v998 = vsel %vm806, %v993, %v997
        %v999 = vshrl.u32 %v665, 16
        %v1001 = vor.u32 %v999, %v997
        %v1003 = vshll.u32 %v783, 16
        %v1005 = vrot.slane %v1003, 1
        %v1006 = vsel %vm806, %v1001, %v1005
        %v1008 = vshrl.u32 %v666, 16
        %v1010 = vshll.u32 %v666, 16
        %v1012 = vrot.slane %v1010, 1
        %v1013 = vor.u32 %v1008, %v1012
        %v1015 = vshll.u32 %v667, 16
        %v1017 = vrot.slane %v1015, 1
        %v1018 = vsel %vm806, %v1013, %v1017
        %v1019 = vshrl.u32 %v667, 16
        %v1021 = vor.u32 %v1019, %v1017
        %v1023 = vshll.u32 %v784, 16
        %v1025 = vrot.slane %v1023, 1
        %v1026 = vsel %vm806, %v1021, %v1025
        %v1028 = vshrl.u32 %v668, 16
        %v1030 = vshll.u32 %v668, 16
        %v1032 = vrot.slane %v1030, 1
        %v1033 = vor.u32 %v1028, %v1032
        %v1035 = vshll.u32 %v669, 16
        %v1037 = vrot.slane %v1035, 1
        %v1038 = vsel %vm806, %v1033, %v1037
        %v1039 = vshrl.u32 %v669, 16
        %v1041 = vor.u32 %v1039, %v1037
        %v1043 = vshll.u32 %v785, 16
        %v1045 = vrot.slane %v1043, 1
        %v1046 = vsel %vm806, %v1041, %v1045
        %v1048 = vshrl.u32 %v670, 16
        %v1050 = vshll.u32 %v670, 16
        %v1052 = vrot.slane %v1050, 1
        %v1053 = vor.u32 %v1048, %v1052
        %v1055 = vshll.u32 %v671, 16
        %v1057 = vrot.slane %v1055, 1
        %v1058 = vsel %vm806, %v1053, %v1057
        %v1059 = vshrl.u32 %v671, 16
        %v1061 = vor.u32 %v1059, %v1057
        %v1063 = vshll.u32 %v786, 16
        %v1065 = vrot.slane %v1063, 1
        %v1066 = vsel %vm806, %v1061, %v1065
        %v1068 = vshrl.u32 %v672, 16
        %v1070 = vshll.u32 %v672, 16
        %v1072 = vrot.slane %v1070, 1
        %v1073 = vor.u32 %v1068, %v1072
        %v1075 = vshll.u32 %v673, 16
        %v1077 = vrot.slane %v1075, 1
        %v1078 = vsel %vm806, %v1073, %v1077
        %v1079 = vshrl.u32 %v673, 16
        %v1081 = vor.u32 %v1079, %v1077
        %v1083 = vshll.u32 %v787, 16
        %v1085 = vrot.slane %v1083, 1
        %v1086 = vsel %vm806, %v1081, %v1085
        %v1088 = vshrl.u32 %v674, 16
        %v1090 = vshll.u32 %v674, 16
        %v1092 = vrot.slane %v1090, 1
        %v1093 = vor.u32 %v1088, %v1092
        %v1095 = vshll.u32 %v675, 16
        %v1097 = vrot.slane %v1095, 1
        %v1098 = vsel %vm806, %v1093, %v1097
        %v1099 = vshrl.u32 %v675, 16
        %v1101 = vor.u32 %v1099, %v1097
        %v1103 = vshll.u32 %v788, 16
        %v1105 = vrot.slane %v1103, 1
        %v1106 = vsel %vm806, %v1101, %v1105
        %v1108 = vshrl.u32 %v676, 16
        %v1110 = vshll.u32 %v676, 16
        %v1112 = vrot.slane %v1110, 1
        %v1113 = vor.u32 %v1108, %v1112
        %v1115 = vshll.u32 %v677, 16
        %v1117 = vrot.slane %v1115, 1
        %v1118 = vsel %vm806, %v1113, %v1117
        %v1119 = vshrl.u32 %v677, 16
        %v1121 = vor.u32 %v1119, %v1117
        %v1123 = vshll.u32 %v789, 16
        %v1125 = vrot.slane %v1123, 1
        %v1126 = vsel %vm806, %v1121, %v1125
        %v1128 = vshrl.u32 %v678, 16
        %v1130 = vshll.u32 %v678, 16
        %v1132 = vrot.slane %v1130, 1
        %v1133 = vor.u32 %v1128, %v1132
        %v1135 = vshll.u32 %v679, 16
        %v1137 = vrot.slane %v1135, 1
        %v1138 = vsel %vm806, %v1133, %v1137
        %v1139 = vshrl.u32 %v679, 16
        %v1141 = vor.u32 %v1139, %v1137
        %v1143 = vshll.u32 %v790, 16
        %v1145 = vrot.slane %v1143, 1
        %v1146 = vsel %vm806, %v1141, %v1145
        %v1148 = vshrl.u32 %v680, 16
        %v1150 = vshll.u32 %v680, 16
        %v1152 = vrot.slane %v1150, 1
        %v1153 = vor.u32 %v1148, %v1152
        %v1155 = vshll.u32 %v681, 16
        %v1157 = vrot.slane %v1155, 1
        %v1158 = vsel %vm806, %v1153, %v1157
        %v1159 = vshrl.u32 %v681, 16
        %v1161 = vor.u32 %v1159, %v1157
        %v1163 = vshll.u32 %v791, 16
        %v1165 = vrot.slane %v1163, 1
        %v1166 = vsel %vm806, %v1161, %v1165
        %v1168 = vshrl.u32 %v682, 16
        %v1170 = vshll.u32 %v682, 16
        %v1172 = vrot.slane %v1170, 1
        %v1173 = vor.u32 %v1168, %v1172
        %v1175 = vshll.u32 %v683, 16
        %v1177 = vrot.slane %v1175, 1
        %v1178 = vsel %vm806, %v1173, %v1177
        %v1179 = vshrl.u32 %v683, 16
        %v1181 = vor.u32 %v1179, %v1177
        %v1183 = vshll.u32 %v792, 16
        %v1185 = vrot.slane %v1183, 1
        %v1186 = vsel %vm806, %v1181, %v1185
        %v1188 = vshrl.u32 %v684, 16
        %v1190 = vshll.u32 %v684, 16
        %v1192 = vrot.slane %v1190, 1
        %v1193 = vor.u32 %v1188, %v1192
        %v1195 = vshll.u32 %v685, 16
        %v1197 = vrot.slane %v1195, 1
        %v1198 = vsel %vm806, %v1193, %v1197
        %v1199 = vshrl.u32 %v685, 16
        %v1201 = vor.u32 %v1199, %v1197
        %v1203 = vshll.u32 %v793, 16
        %v1205 = vrot.slane %v1203, 1
        %v1206 = vsel %vm806, %v1201, %v1205
        %v1208 = vshrl.u32 %v686, 16
        %v1210 = vshll.u32 %v686, 16
        %v1212 = vrot.slane %v1210, 1
        %v1213 = vor.u32 %v1208, %v1212
        %v1215 = vshll.u32 %v687, 16
        %v1217 = vrot.slane %v1215, 1
        %v1218 = vsel %vm806, %v1213, %v1217
        %v1219 = vshrl.u32 %v687, 16
        %v1221 = vor.u32 %v1219, %v1217
        %v1223 = vshll.u32 %v794, 16
        %v1225 = vrot.slane %v1223, 1
        %v1226 = vsel %vm806, %v1221, %v1225
        %v1228 = vshrl.u32 %v688, 16
        %v1230 = vshll.u32 %v688, 16
        %v1232 = vrot.slane %v1230, 1
        %v1233 = vor.u32 %v1228, %v1232
        %v1235 = vshll.u32 %v689, 16
        %v1237 = vrot.slane %v1235, 1
        %v1238 = vsel %vm806, %v1233, %v1237
        %v1239 = vshrl.u32 %v689, 16
        %v1241 = vor.u32 %v1239, %v1237
        %v1243 = vshll.u32 %v795, 16
        %v1245 = vrot.slane %v1243, 1
        %v1246 = vsel %vm806, %v1241, %v1245
        %v1248 = vshrl.u32 %v690, 16
        %v1250 = vshll.u32 %v690, 16
        %v1252 = vrot.slane %v1250, 1
        %v1253 = vor.u32 %v1248, %v1252
        %v1255 = vshll.u32 %v691, 16
        %v1257 = vrot.slane %v1255, 1
        %v1258 = vsel %vm806, %v1253, %v1257
        %v1259 = vshrl.u32 %v691, 16
        %v1261 = vor.u32 %v1259, %v1257
        %v1263 = vshll.u32 %v796, 16
        %v1265 = vrot.slane %v1263, 1
        %v1266 = vsel %vm806, %v1261, %v1265
        %v1268 = vshrl.u32 %v692, 16
        %v1270 = vshll.u32 %v692, 16
        %v1272 = vrot.slane %v1270, 1
        %v1273 = vor.u32 %v1268, %v1272
        %v1275 = vshll.u32 %v693, 16
        %v1277 = vrot.slane %v1275, 1
        %v1278 = vsel %vm806, %v1273, %v1277
        %v1279 = vshrl.u32 %v693, 16
        %v1281 = vor.u32 %v1279, %v1277
        %v1283 = vshll.u32 %v797, 16
        %v1285 = vrot.slane %v1283, 1
        %v1286 = vsel %vm806, %v1281, %v1285
        %v1288 = vshrl.u32 %v694, 16
        %v1290 = vshll.u32 %v694, 16
        %v1292 = vrot.slane %v1290, 1
        %v1293 = vor.u32 %v1288, %v1292
        %v1295 = vshll.u32 %v695, 16
        %v1297 = vrot.slane %v1295, 1
        %v1298 = vsel %vm806, %v1293, %v1297
        %v1299 = vshrl.u32 %v695, 16
        %v1301 = vor.u32 %v1299, %v1297
        %v1303 = vshll.u32 %v798, 16
        %v1305 = vrot.slane %v1303, 1
        %v1306 = vsel %vm806, %v1301, %v1305
        %v1308 = vshrl.u32 %v696, 16
        %v1310 = vshll.u32 %v696, 16
        %v1312 = vrot.slane %v1310, 1
        %v1313 = vor.u32 %v1308, %v1312
        %v1315 = vshll.u32 %v697, 16
        %v1317 = vrot.slane %v1315, 1
        %v1318 = vsel %vm806, %v1313, %v1317
        %v1319 = vshrl.u32 %v697, 16
        %v1321 = vor.u32 %v1319, %v1317
        %v1323 = vshll.u32 %v799, 16
        %v1325 = vrot.slane %v1323, 1
        %v1326 = vsel %vm806, %v1321, %v1325
        %v1328 = vshrl.u32 %v698, 16
        %v1330 = vshll.u32 %v698, 16
        %v1332 = vrot.slane %v1330, 1
        %v1333 = vor.u32 %v1328, %v1332
        %v1335 = vshll.u32 %v699, 16
        %v1337 = vrot.slane %v1335, 1
        %v1338 = vsel %vm806, %v1333, %v1337
        %v1339 = vshrl.u32 %v699, 16
        %v1341 = vor.u32 %v1339, %v1337
        %v1343 = vshll.u32 %v800, 16
        %v1345 = vrot.slane %v1343, 1
        %v1346 = vsel %vm806, %v1341, %v1345
        %v1348 = vshrl.u32 %v700, 16
        %v1350 = vshll.u32 %v700, 16
        %v1352 = vrot.slane %v1350, 1
        %v1353 = vor.u32 %v1348, %v1352
        %v1355 = vshll.u32 %v701, 16
        %v1357 = vrot.slane %v1355, 1
        %v1358 = vsel %vm806, %v1353, %v1357
        %v1359 = vshrl.u32 %v701, 16
        %v1361 = vor.u32 %v1359, %v1357
        %v1363 = vshll.u32 %v801, 16
        %v1365 = vrot.slane %v1363, 1
        %v1366 = vsel %vm806, %v1361, %v1365
        %v1368 = vshrl.u32 %v702, 16
        %v1370 = vshll.u32 %v702, 16
        %v1372 = vrot.slane %v1370, 1
        %v1373 = vor.u32 %v1368, %v1372
        %v1375 = vshll.u32 %v703, 16
        %v1377 = vrot.slane %v1375, 1
        %v1378 = vsel %vm806, %v1373, %v1377
        %v1379 = vshrl.u32 %v703, 16
        %v1381 = vor.u32 %v1379, %v1377
        %v1383 = vshll.u32 %v802, 16
        %v1385 = vrot.slane %v1383, 1
        %v1386 = vsel %vm806, %v1381, %v1385
        %v1388 = vshrl.u32 %v704, 16
        %v1390 = vshll.u32 %v704, 16
        %v1392 = vrot.slane %v1390, 1
        %v1393 = vor.u32 %v1388, %v1392
        %v1395 = vshll.u32 %v705, 16
        %v1397 = vrot.slane %v1395, 1
        %v1398 = vsel %vm806, %v1393, %v1397
        %v1399 = vshrl.u32 %v705, 16
        %v1401 = vor.u32 %v1399, %v1397
        %v1403 = vshll.u32 %v803, 16
        %v1405 = vrot.slane %v1403, 1
        %v1406 = vsel %vm806, %v1401, %v1405
        %v1408 = vshrl.u32 %v706, 16
        %v1410 = vshll.u32 %v706, 16
        %v1412 = vrot.slane %v1410, 1
        %v1413 = vor.u32 %v1408, %v1412
        %v1415 = vshll.u32 %v707, 16
        %v1417 = vrot.slane %v1415, 1
        %v1418 = vsel %vm806, %v1413, %v1417
        %v1419 = vshrl.u32 %v707, 16
        %v1421 = vor.u32 %v1419, %v1417
        %v1423 = vshll.u32 %v804, 16
        %v1425 = vrot.slane %v1423, 1
        %v1426 = vsel %vm806, %v1421, %v1425
        %v1428 = vshrl.u32 %v708, 16
        %v1430 = vshll.u32 %v708, 16
        %v1432 = vrot.slane %v1430, 1
        %v1433 = vor.u32 %v1428, %v1432
        %v1435 = vshll.u32 %v709, 16
        %v1437 = vrot.slane %v1435, 1
        %v1438 = vsel %vm806, %v1433, %v1437
        %v1439 = vshrl.u32 %v709, 16
        %v1441 = vor.u32 %v1439, %v1437
        %v1443 = vshll.u32 %v805, 16
        %v1445 = vrot.slane %v1443, 1
        %v1446 = vsel %vm806, %v1441, %v1445
        %1447 = vrot.lane.b32.xlu0 %v818, 64
        %v1448 = vpop.permute.xlu0 %1447
        %1449 = vrot.lane.b32.xlu0 %v826, 64
        %v1450 = vpop.permute.xlu0 %1449
        %1451 = vrot.lane.b32.xlu0 %v838, 64
        %v1452 = vpop.permute.xlu0 %1451
        %1453 = vrot.lane.b32.xlu0 %v846, 64
        %v1454 = vpop.permute.xlu0 %1453
        %1455 = vrot.lane.b32.xlu0 %v858, 64
        %v1456 = vpop.permute.xlu0 %1455
        %1457 = vrot.lane.b32.xlu0 %v866, 64
        %v1458 = vpop.permute.xlu0 %1457
        %1459 = vrot.lane.b32.xlu0 %v878, 64
        %v1460 = vpop.permute.xlu0 %1459
        %1461 = vrot.lane.b32.xlu0 %v886, 64
        %v1462 = vpop.permute.xlu0 %1461
        %1463 = vrot.lane.b32.xlu0 %v898, 64
        %v1464 = vpop.permute.xlu0 %1463
        %1465 = vrot.lane.b32.xlu0 %v906, 64
        %v1466 = vpop.permute.xlu0 %1465
        %1467 = vrot.lane.b32.xlu0 %v918, 64
        %v1468 = vpop.permute.xlu0 %1467
        %1469 = vrot.lane.b32.xlu0 %v926, 64
        %v1470 = vpop.permute.xlu0 %1469
        %1471 = vrot.lane.b32.xlu0 %v938, 64
        %v1472 = vpop.permute.xlu0 %1471
        %1473 = vrot.lane.b32.xlu0 %v946, 64
        %v1474 = vpop.permute.xlu0 %1473
        %1475 = vrot.lane.b32.xlu0 %v958, 64
        %v1476 = vpop.permute.xlu0 %1475
        %1477 = vrot.lane.b32.xlu0 %v966, 64
        %v1478 = vpop.permute.xlu0 %1477
        %1479 = vrot.lane.b32.xlu0 %v978, 64
        %v1480 = vpop.permute.xlu0 %1479
        %1481 = vrot.lane.b32.xlu0 %v986, 64
        %v1482 = vpop.permute.xlu0 %1481
        %1483 = vrot.lane.b32.xlu0 %v998, 64
        %v1484 = vpop.permute.xlu0 %1483
        %1485 = vrot.lane.b32.xlu0 %v1006, 64
        %v1486 = vpop.permute.xlu0 %1485
        %1487 = vrot.lane.b32.xlu0 %v1018, 64
        %v1488 = vpop.permute.xlu0 %1487
        %1489 = vrot.lane.b32.xlu0 %v1026, 64
        %v1490 = vpop.permute.xlu0 %1489
        %1491 = vrot.lane.b32.xlu0 %v1038, 64
        %v1492 = vpop.permute.xlu0 %1491
        %1493 = vrot.lane.b32.xlu0 %v1046, 64
        %v1494 = vpop.permute.xlu0 %1493
        %1495 = vrot.lane.b32.xlu0 %v1058, 64
        %v1496 = vpop.permute.xlu0 %1495
        %1497 = vrot.lane.b32.xlu0 %v1066, 64
        %v1498 = vpop.permute.xlu0 %1497
        %1499 = vrot.lane.b32.xlu0 %v1078, 64
        %v1500 = vpop.permute.xlu0 %1499
        %1501 = vrot.lane.b32.xlu0 %v1086, 64
        %v1502 = vpop.permute.xlu0 %1501
        %1503 = vrot.lane.b32.xlu0 %v1098, 64
        %v1504 = vpop.permute.xlu0 %1503
        %1505 = vrot.lane.b32.xlu0 %v1106, 64
        %v1506 = vpop.permute.xlu0 %1505
        %1507 = vrot.lane.b32.xlu0 %v1118, 64
        %v1508 = vpop.permute.xlu0 %1507
        %1509 = vrot.lane.b32.xlu0 %v1126, 64
        %v1510 = vpop.permute.xlu0 %1509
        %1511 = vrot.lane.b32.xlu0 %v1138, 64
        %v1512 = vpop.permute.xlu0 %1511
        %1513 = vrot.lane.b32.xlu0 %v1146, 64
        %v1514 = vpop.permute.xlu0 %1513
        %1515 = vrot.lane.b32.xlu0 %v1158, 64
        %v1516 = vpop.permute.xlu0 %1515
        %1517 = vrot.lane.b32.xlu0 %v1166, 64
        %v1518 = vpop.permute.xlu0 %1517
        %1519 = vrot.lane.b32.xlu0 %v1178, 64
        %v1520 = vpop.permute.xlu0 %1519
        %1521 = vrot.lane.b32.xlu0 %v1186, 64
        %v1522 = vpop.permute.xlu0 %1521
        %1523 = vrot.lane.b32.xlu0 %v1198, 64
        %v1524 = vpop.permute.xlu0 %1523
        %1525 = vrot.lane.b32.xlu0 %v1206, 64
        %v1526 = vpop.permute.xlu0 %1525
        %1527 = vrot.lane.b32.xlu0 %v1218, 64
        %v1528 = vpop.permute.xlu0 %1527
        %1529 = vrot.lane.b32.xlu0 %v1226, 64
        %v1530 = vpop.permute.xlu0 %1529
        %1531 = vrot.lane.b32.xlu0 %v1238, 64
        %v1532 = vpop.permute.xlu0 %1531
        %1533 = vrot.lane.b32.xlu0 %v1246, 64
        %v1534 = vpop.permute.xlu0 %1533
        %1535 = vrot.lane.b32.xlu0 %v1258, 64
        %v1536 = vpop.permute.xlu0 %1535
        %1537 = vrot.lane.b32.xlu0 %v1266, 64
        %v1538 = vpop.permute.xlu0 %1537
        %1539 = vrot.lane.b32.xlu0 %v1278, 64
        %v1540 = vpop.permute.xlu0 %1539
        %1541 = vrot.lane.b32.xlu0 %v1286, 64
        %v1542 = vpop.permute.xlu0 %1541
        %1543 = vrot.lane.b32.xlu0 %v1298, 64
        %v1544 = vpop.permute.xlu0 %1543
        %1545 = vrot.lane.b32.xlu0 %v1306, 64
        %v1546 = vpop.permute.xlu0 %1545
        %1547 = vrot.lane.b32.xlu0 %v1318, 64
        %v1548 = vpop.permute.xlu0 %1547
        %1549 = vrot.lane.b32.xlu0 %v1326, 64
        %v1550 = vpop.permute.xlu0 %1549
        %1551 = vrot.lane.b32.xlu0 %v1338, 64
        %v1552 = vpop.permute.xlu0 %1551
        %1553 = vrot.lane.b32.xlu0 %v1346, 64
        %v1554 = vpop.permute.xlu0 %1553
        %1555 = vrot.lane.b32.xlu0 %v1358, 64
        %v1556 = vpop.permute.xlu0 %1555
        %1557 = vrot.lane.b32.xlu0 %v1366, 64
        %v1558 = vpop.permute.xlu0 %1557
        %1559 = vrot.lane.b32.xlu0 %v1378, 64
        %v1560 = vpop.permute.xlu0 %1559
        %1561 = vrot.lane.b32.xlu0 %v1386, 64
        %v1562 = vpop.permute.xlu0 %1561
        %1563 = vrot.lane.b32.xlu0 %v1398, 64
        %v1564 = vpop.permute.xlu0 %1563
        %1565 = vrot.lane.b32.xlu0 %v1406, 64
        %v1566 = vpop.permute.xlu0 %1565
        %1567 = vrot.lane.b32.xlu0 %v1418, 64
        %v1568 = vpop.permute.xlu0 %1567
        %1569 = vrot.lane.b32.xlu0 %v1426, 64
        %v1570 = vpop.permute.xlu0 %1569
        %1571 = vrot.lane.b32.xlu0 %v1438, 64
        %v1572 = vpop.permute.xlu0 %1571
        %1573 = vrot.lane.b32.xlu0 %v1446, 64
        %v1574 = vpop.permute.xlu0 %1573
        %vm1575 = vcmask 1046528
        %v1576 = vrot.slane %v646, 1
        %v1577 = vrot.slane %v647, 1
        %v1578 = vsel %vm1575, %v1576, %v1577
        %v1579 = vrot.slane %v774, 1
        %v1580 = vsel %vm1575, %v1577, %v1579
        %v1581 = vrot.slane %v648, 1
        %v1582 = vrot.slane %v649, 1
        %v1583 = vsel %vm1575, %v1581, %v1582
        %v1584 = vrot.slane %v775, 1
        %v1585 = vsel %vm1575, %v1582, %v1584
        %v1586 = vrot.slane %v650, 1
        %v1587 = vrot.slane %v651, 1
        %v1588 = vsel %vm1575, %v1586, %v1587
        %v1589 = vrot.slane %v776, 1
        %v1590 = vsel %vm1575, %v1587, %v1589
        %v1591 = vrot.slane %v652, 1
        %v1592 = vrot.slane %v653, 1
        %v1593 = vsel %vm1575, %v1591, %v1592
        %v1594 = vrot.slane %v777, 1
        %v1595 = vsel %vm1575, %v1592, %v1594
        %v1596 = vrot.slane %v654, 1
        %v1597 = vrot.slane %v655, 1
        %v1598 = vsel %vm1575, %v1596, %v1597
        %v1599 = vrot.slane %v778, 1
        %v1600 = vsel %vm1575, %v1597, %v1599
        %v1601 = vrot.slane %v656, 1
        %v1602 = vrot.slane %v657, 1
        %v1603 = vsel %vm1575, %v1601, %v1602
        %v1604 = vrot.slane %v779, 1
        %v1605 = vsel %vm1575, %v1602, %v1604
        %v1606 = vrot.slane %v658, 1
        %v1607 = vrot.slane %v659, 1
        %v1608 = vsel %vm1575, %v1606, %v1607
        %v1609 = vrot.slane %v780, 1
        %v1610 = vsel %vm1575, %v1607, %v1609
        %v1611 = vrot.slane %v660, 1
        %v1612 = vrot.slane %v661, 1
        %v1613 = vsel %vm1575, %v1611, %v1612
        %v1614 = vrot.slane %v781, 1
        %v1615 = vsel %vm1575, %v1612, %v1614
        %v1616 = vrot.slane %v662, 1
        %v1617 = vrot.slane %v663, 1
        %v1618 = vsel %vm1575, %v1616, %v1617
        %v1619 = vrot.slane %v782, 1
        %v1620 = vsel %vm1575, %v1617, %v1619
        %v1621 = vrot.slane %v664, 1
        %v1622 = vrot.slane %v665, 1
        %v1623 = vsel %vm1575, %v1621, %v1622
        %v1624 = vrot.slane %v783, 1
        %v1625 = vsel %vm1575, %v1622, %v1624
        %v1626 = vrot.slane %v666, 1
        %v1627 = vrot.slane %v667, 1
        %v1628 = vsel %vm1575, %v1626, %v1627
        %v1629 = vrot.slane %v784, 1
        %v1630 = vsel %vm1575, %v1627, %v1629
        %v1631 = vrot.slane %v668, 1
        %v1632 = vrot.slane %v669, 1
        %v1633 = vsel %vm1575, %v1631, %v1632
        %v1634 = vrot.slane %v785, 1
        %v1635 = vsel %vm1575, %v1632, %v1634
        %v1636 = vrot.slane %v670, 1
        %v1637 = vrot.slane %v671, 1
        %v1638 = vsel %vm1575, %v1636, %v1637
        %v1639 = vrot.slane %v786, 1
        %v1640 = vsel %vm1575, %v1637, %v1639
        %v1641 = vrot.slane %v672, 1
        %v1642 = vrot.slane %v673, 1
        %v1643 = vsel %vm1575, %v1641, %v1642
        %v1644 = vrot.slane %v787, 1
        %v1645 = vsel %vm1575, %v1642, %v1644
        %v1646 = vrot.slane %v674, 1
        %v1647 = vrot.slane %v675, 1
        %v1648 = vsel %vm1575, %v1646, %v1647
        %v1649 = vrot.slane %v788, 1
        %v1650 = vsel %vm1575, %v1647, %v1649
        %v1651 = vrot.slane %v676, 1
        %v1652 = vrot.slane %v677, 1
        %v1653 = vsel %vm1575, %v1651, %v1652
        %v1654 = vrot.slane %v789, 1
        %v1655 = vsel %vm1575, %v1652, %v1654
        %v1656 = vrot.slane %v678, 1
        %v1657 = vrot.slane %v679, 1
        %v1658 = vsel %vm1575, %v1656, %v1657
        %v1659 = vrot.slane %v790, 1
        %v1660 = vsel %vm1575, %v1657, %v1659
        %v1661 = vrot.slane %v680, 1
        %v1662 = vrot.slane %v681, 1
        %v1663 = vsel %vm1575, %v1661, %v1662
        %v1664 = vrot.slane %v791, 1
        %v1665 = vsel %vm1575, %v1662, %v1664
        %v1666 = vrot.slane %v682, 1
        %v1667 = vrot.slane %v683, 1
        %v1668 = vsel %vm1575, %v1666, %v1667
        %v1669 = vrot.slane %v792, 1
        %v1670 = vsel %vm1575, %v1667, %v1669
        %v1671 = vrot.slane %v684, 1
        %v1672 = vrot.slane %v685, 1
        %v1673 = vsel %vm1575, %v1671, %v1672
        %v1674 = vrot.slane %v793, 1
        %v1675 = vsel %vm1575, %v1672, %v1674
        %v1676 = vrot.slane %v686, 1
        %v1677 = vrot.slane %v687, 1
        %v1678 = vsel %vm1575, %v1676, %v1677
        %v1679 = vrot.slane %v794, 1
        %v1680 = vsel %vm1575, %v1677, %v1679
        %v1681 = vrot.slane %v688, 1
        %v1682 = vrot.slane %v689, 1
        %v1683 = vsel %vm1575, %v1681, %v1682
        %v1684 = vrot.slane %v795, 1
        %v1685 = vsel %vm1575, %v1682, %v1684
        %v1686 = vrot.slane %v690, 1
        %v1687 = vrot.slane %v691, 1
        %v1688 = vsel %vm1575, %v1686, %v1687
        %v1689 = vrot.slane %v796, 1
        %v1690 = vsel %vm1575, %v1687, %v1689
        %v1691 = vrot.slane %v692, 1
        %v1692 = vrot.slane %v693, 1
        %v1693 = vsel %vm1575, %v1691, %v1692
        %v1694 = vrot.slane %v797, 1
        %v1695 = vsel %vm1575, %v1692, %v1694
        %v1696 = vrot.slane %v694, 1
        %v1697 = vrot.slane %v695, 1
        %v1698 = vsel %vm1575, %v1696, %v1697
        %v1699 = vrot.slane %v798, 1
        %v1700 = vsel %vm1575, %v1697, %v1699
        %v1701 = vrot.slane %v696, 1
        %v1702 = vrot.slane %v697, 1
        %v1703 = vsel %vm1575, %v1701, %v1702
        %v1704 = vrot.slane %v799, 1
        %v1705 = vsel %vm1575, %v1702, %v1704
        %v1706 = vrot.slane %v698, 1
        %v1707 = vrot.slane %v699, 1
        %v1708 = vsel %vm1575, %v1706, %v1707
        %v1709 = vrot.slane %v800, 1
        %v1710 = vsel %vm1575, %v1707, %v1709
        %v1711 = vrot.slane %v700, 1
        %v1712 = vrot.slane %v701, 1
        %v1713 = vsel %vm1575, %v1711, %v1712
        %v1714 = vrot.slane %v801, 1
        %v1715 = vsel %vm1575, %v1712, %v1714
        %v1716 = vrot.slane %v702, 1
        %v1717 = vrot.slane %v703, 1
        %v1718 = vsel %vm1575, %v1716, %v1717
        %v1719 = vrot.slane %v802, 1
        %v1720 = vsel %vm1575, %v1717, %v1719
        %v1721 = vrot.slane %v704, 1
        %v1722 = vrot.slane %v705, 1
        %v1723 = vsel %vm1575, %v1721, %v1722
        %v1724 = vrot.slane %v803, 1
        %v1725 = vsel %vm1575, %v1722, %v1724
        %v1726 = vrot.slane %v706, 1
        %v1727 = vrot.slane %v707, 1
        %v1728 = vsel %vm1575, %v1726, %v1727
        %v1729 = vrot.slane %v804, 1
        %v1730 = vsel %vm1575, %v1727, %v1729
        %v1731 = vrot.slane %v708, 1
        %v1732 = vrot.slane %v709, 1
        %v1733 = vsel %vm1575, %v1731, %v1732
        %v1734 = vrot.slane %v805, 1
        %v1735 = vsel %vm1575, %v1732, %v1734
        %vm1736 = vsmask.f32 6400
        %v1737 = vrot.slane %v808, 1
        %v1738 = vrot.slane %v810, 2
        %v1739 = vor.u32 %v1737, %v1738
        %v1740 = vrot.slane %v819, 1
        %v1741 = vrot.slane %v815, 2
        %v1742 = vor.u32 %v1740, %v1741
        %v1743 = vsel %vm1736, %v1739, %v1742
        %v1744 = vshrl.u32 %v774, 16
        %v1746 = vrot.slane %v1744, 1
        %v1747 = vrot.slane %v823, 2
        %v1748 = vor.u32 %v1746, %v1747
        %v1749 = vsel %vm1736, %v1742, %v1748
        %v1750 = vrot.slane %v828, 1
        %v1751 = vrot.slane %v830, 2
        %v1752 = vor.u32 %v1750, %v1751
        %v1753 = vrot.slane %v839, 1
        %v1754 = vrot.slane %v835, 2
        %v1755 = vor.u32 %v1753, %v1754
        %v1756 = vsel %vm1736, %v1752, %v1755
        %v1757 = vshrl.u32 %v775, 16
        %v1759 = vrot.slane %v1757, 1
        %v1760 = vrot.slane %v843, 2
        %v1761 = vor.u32 %v1759, %v1760
        %v1762 = vsel %vm1736, %v1755, %v1761
        %v1763 = vrot.slane %v848, 1
        %v1764 = vrot.slane %v850, 2
        %v1765 = vor.u32 %v1763, %v1764
        %v1766 = vrot.slane %v859, 1
        %v1767 = vrot.slane %v855, 2
        %v1768 = vor.u32 %v1766, %v1767
        %v1769 = vsel %vm1736, %v1765, %v1768
        %v1770 = vshrl.u32 %v776, 16
        %v1772 = vrot.slane %v1770, 1
        %v1773 = vrot.slane %v863, 2
        %v1774 = vor.u32 %v1772, %v1773
        %v1775 = vsel %vm1736, %v1768, %v1774
        %v1776 = vrot.slane %v868, 1
        %v1777 = vrot.slane %v870, 2
        %v1778 = vor.u32 %v1776, %v1777
        %v1779 = vrot.slane %v879, 1
        %v1780 = vrot.slane %v875, 2
        %v1781 = vor.u32 %v1779, %v1780
        %v1782 = vsel %vm1736, %v1778, %v1781
        %v1783 = vshrl.u32 %v777, 16
        %v1785 = vrot.slane %v1783, 1
        %v1786 = vrot.slane %v883, 2
        %v1787 = vor.u32 %v1785, %v1786
        %v1788 = vsel %vm1736, %v1781, %v1787
        %v1789 = vrot.slane %v888, 1
        %v1790 = vrot.slane %v890, 2
        %v1791 = vor.u32 %v1789, %v1790
        %v1792 = vrot.slane %v899, 1
        %v1793 = vrot.slane %v895, 2
        %v1794 = vor.u32 %v1792, %v1793
        %v1795 = vsel %vm1736, %v1791, %v1794
        %v1796 = vshrl.u32 %v778, 16
        %v1798 = vrot.slane %v1796, 1
        %v1799 = vrot.slane %v903, 2
        %v1800 = vor.u32 %v1798, %v1799
        %v1801 = vsel %vm1736, %v1794, %v1800
        %v1802 = vrot.slane %v908, 1
        %v1803 = vrot.slane %v910, 2
        %v1804 = vor.u32 %v1802, %v1803
        %v1805 = vrot.slane %v919, 1
        %v1806 = vrot.slane %v915, 2
        %v1807 = vor.u32 %v1805, %v1806
        %v1808 = vsel %vm1736, %v1804, %v1807
        %v1809 = vshrl.u32 %v779, 16
        %v1811 = vrot.slane %v1809, 1
        %v1812 = vrot.slane %v923, 2
        %v1813 = vor.u32 %v1811, %v1812
        %v1814 = vsel %vm1736, %v1807, %v1813
        %v1815 = vrot.slane %v928, 1
        %v1816 = vrot.slane %v930, 2
        %v1817 = vor.u32 %v1815, %v1816
        %v1818 = vrot.slane %v939, 1
        %v1819 = vrot.slane %v935, 2
        %v1820 = vor.u32 %v1818, %v1819
        %v1821 = vsel %vm1736, %v1817, %v1820
        %v1822 = vshrl.u32 %v780, 16
        %v1824 = vrot.slane %v1822, 1
        %v1825 = vrot.slane %v943, 2
        %v1826 = vor.u32 %v1824, %v1825
        %v1827 = vsel %vm1736, %v1820, %v1826
        %v1828 = vrot.slane %v948, 1
        %v1829 = vrot.slane %v950, 2
        %v1830 = vor.u32 %v1828, %v1829
        %v1831 = vrot.slane %v959, 1
        %v1832 = vrot.slane %v955, 2
        %v1833 = vor.u32 %v1831, %v1832
        %v1834 = vsel %vm1736, %v1830, %v1833
        %v1835 = vshrl.u32 %v781, 16
        %v1837 = vrot.slane %v1835, 1
        %v1838 = vrot.slane %v963, 2
        %v1839 = vor.u32 %v1837, %v1838
        %v1840 = vsel %vm1736, %v1833, %v1839
        %v1841 = vrot.slane %v968, 1
        %v1842 = vrot.slane %v970, 2
        %v1843 = vor.u32 %v1841, %v1842
        %v1844 = vrot.slane %v979, 1
        %v1845 = vrot.slane %v975, 2
        %v1846 = vor.u32 %v1844, %v1845
        %v1847 = vsel %vm1736, %v1843, %v1846
        %v1848 = vshrl.u32 %v782, 16
        %v1850 = vrot.slane %v1848, 1
        %v1851 = vrot.slane %v983, 2
        %v1852 = vor.u32 %v1850, %v1851
        %v1853 = vsel %vm1736, %v1846, %v1852
        %v1854 = vrot.slane %v988, 1
        %v1855 = vrot.slane %v990, 2
        %v1856 = vor.u32 %v1854, %v1855
        %v1857 = vrot.slane %v999, 1
        %v1858 = vrot.slane %v995, 2
        %v1859 = vor.u32 %v1857, %v1858
        %v1860 = vsel %vm1736, %v1856, %v1859
        %v1861 = vshrl.u32 %v783, 16
        %v1863 = vrot.slane %v1861, 1
        %v1864 = vrot.slane %v1003, 2
        %v1865 = vor.u32 %v1863, %v1864
        %v1866 = vsel %vm1736, %v1859, %v1865
        %v1867 = vrot.slane %v1008, 1
        %v1868 = vrot.slane %v1010, 2
        %v1869 = vor.u32 %v1867, %v1868
        %v1870 = vrot.slane %v1019, 1
        %v1871 = vrot.slane %v1015, 2
        %v1872 = vor.u32 %v1870, %v1871
        %v1873 = vsel %vm1736, %v1869, %v1872
        %v1874 = vshrl.u32 %v784, 16
        %v1876 = vrot.slane %v1874, 1
        %v1877 = vrot.slane %v1023, 2
        %v1878 = vor.u32 %v1876, %v1877
        %v1879 = vsel %vm1736, %v1872, %v1878
        %v1880 = vrot.slane %v1028, 1
        %v1881 = vrot.slane %v1030, 2
        %v1882 = vor.u32 %v1880, %v1881
        %v1883 = vrot.slane %v1039, 1
        %v1884 = vrot.slane %v1035, 2
        %v1885 = vor.u32 %v1883, %v1884
        %v1886 = vsel %vm1736, %v1882, %v1885
        %v1887 = vshrl.u32 %v785, 16
        %v1889 = vrot.slane %v1887, 1
        %v1890 = vrot.slane %v1043, 2
        %v1891 = vor.u32 %v1889, %v1890
        %v1892 = vsel %vm1736, %v1885, %v1891
        %v1893 = vrot.slane %v1048, 1
        %v1894 = vrot.slane %v1050, 2
        %v1895 = vor.u32 %v1893, %v1894
        %v1896 = vrot.slane %v1059, 1
        %v1897 = vrot.slane %v1055, 2
        %v1898 = vor.u32 %v1896, %v1897
        %v1899 = vsel %vm1736, %v1895, %v1898
        %v1900 = vshrl.u32 %v786, 16
        %v1902 = vrot.slane %v1900, 1
        %v1903 = vrot.slane %v1063, 2
        %v1904 = vor.u32 %v1902, %v1903
        %v1905 = vsel %vm1736, %v1898, %v1904
        %v1906 = vrot.slane %v1068, 1
        %v1907 = vrot.slane %v1070, 2
        %v1908 = vor.u32 %v1906, %v1907
        %v1909 = vrot.slane %v1079, 1
        %v1910 = vrot.slane %v1075, 2
        %v1911 = vor.u32 %v1909, %v1910
        %v1912 = vsel %vm1736, %v1908, %v1911
        %v1913 = vshrl.u32 %v787, 16
        %v1915 = vrot.slane %v1913, 1
        %v1916 = vrot.slane %v1083, 2
        %v1917 = vor.u32 %v1915, %v1916
        %v1918 = vsel %vm1736, %v1911, %v1917
        %v1919 = vrot.slane %v1088, 1
        %v1920 = vrot.slane %v1090, 2
        %v1921 = vor.u32 %v1919, %v1920
        %v1922 = vrot.slane %v1099, 1
        %v1923 = vrot.slane %v1095, 2
        %v1924 = vor.u32 %v1922, %v1923
        %v1925 = vsel %vm1736, %v1921, %v1924
        %v1926 = vshrl.u32 %v788, 16
        %v1928 = vrot.slane %v1926, 1
        %v1929 = vrot.slane %v1103, 2
        %v1930 = vor.u32 %v1928, %v1929
        %v1931 = vsel %vm1736, %v1924, %v1930
        %v1932 = vrot.slane %v1108, 1
        %v1933 = vrot.slane %v1110, 2
        %v1934 = vor.u32 %v1932, %v1933
        %v1935 = vrot.slane %v1119, 1
        %v1936 = vrot.slane %v1115, 2
        %v1937 = vor.u32 %v1935, %v1936
        %v1938 = vsel %vm1736, %v1934, %v1937
        %v1939 = vshrl.u32 %v789, 16
        %v1941 = vrot.slane %v1939, 1
        %v1942 = vrot.slane %v1123, 2
        %v1943 = vor.u32 %v1941, %v1942
        %v1944 = vsel %vm1736, %v1937, %v1943
        %v1945 = vrot.slane %v1128, 1
        %v1946 = vrot.slane %v1130, 2
        %v1947 = vor.u32 %v1945, %v1946
        %v1948 = vrot.slane %v1139, 1
        %v1949 = vrot.slane %v1135, 2
        %v1950 = vor.u32 %v1948, %v1949
        %v1951 = vsel %vm1736, %v1947, %v1950
        %v1952 = vshrl.u32 %v790, 16
        %v1954 = vrot.slane %v1952, 1
        %v1955 = vrot.slane %v1143, 2
        %v1956 = vor.u32 %v1954, %v1955
        %v1957 = vsel %vm1736, %v1950, %v1956
        %v1958 = vrot.slane %v1148, 1
        %v1959 = vrot.slane %v1150, 2
        %v1960 = vor.u32 %v1958, %v1959
        %v1961 = vrot.slane %v1159, 1
        %v1962 = vrot.slane %v1155, 2
        %v1963 = vor.u32 %v1961, %v1962
        %v1964 = vsel %vm1736, %v1960, %v1963
        %v1965 = vshrl.u32 %v791, 16
        %v1967 = vrot.slane %v1965, 1
        %v1968 = vrot.slane %v1163, 2
        %v1969 = vor.u32 %v1967, %v1968
        %v1970 = vsel %vm1736, %v1963, %v1969
        %v1971 = vrot.slane %v1168, 1
        %v1972 = vrot.slane %v1170, 2
        %v1973 = vor.u32 %v1971, %v1972
        %v1974 = vrot.slane %v1179, 1
        %v1975 = vrot.slane %v1175, 2
        %v1976 = vor.u32 %v1974, %v1975
        %v1977 = vsel %vm1736, %v1973, %v1976
        %v1978 = vshrl.u32 %v792, 16
        %v1980 = vrot.slane %v1978, 1
        %v1981 = vrot.slane %v1183, 2
        %v1982 = vor.u32 %v1980, %v1981
        %v1983 = vsel %vm1736, %v1976, %v1982
        %v1984 = vrot.slane %v1188, 1
        %v1985 = vrot.slane %v1190, 2
        %v1986 = vor.u32 %v1984, %v1985
        %v1987 = vrot.slane %v1199, 1
        %v1988 = vrot.slane %v1195, 2
        %v1989 = vor.u32 %v1987, %v1988
        %v1990 = vsel %vm1736, %v1986, %v1989
        %v1991 = vshrl.u32 %v793, 16
        %v1993 = vrot.slane %v1991, 1
        %v1994 = vrot.slane %v1203, 2
        %v1995 = vor.u32 %v1993, %v1994
        %v1996 = vsel %vm1736, %v1989, %v1995
        %v1997 = vrot.slane %v1208, 1
        %v1998 = vrot.slane %v1210, 2
        %v1999 = vor.u32 %v1997, %v1998
        %v2000 = vrot.slane %v1219, 1
        %v2001 = vrot.slane %v1215, 2
        %v2002 = vor.u32 %v2000, %v2001
        %v2003 = vsel %vm1736, %v1999, %v2002
        %v2004 = vshrl.u32 %v794, 16
        %v2006 = vrot.slane %v2004, 1
        %v2007 = vrot.slane %v1223, 2
        %v2008 = vor.u32 %v2006, %v2007
        %v2009 = vsel %vm1736, %v2002, %v2008
        %v2010 = vrot.slane %v1228, 1
        %v2011 = vrot.slane %v1230, 2
        %v2012 = vor.u32 %v2010, %v2011
        %v2013 = vrot.slane %v1239, 1
        %v2014 = vrot.slane %v1235, 2
        %v2015 = vor.u32 %v2013, %v2014
        %v2016 = vsel %vm1736, %v2012, %v2015
        %v2017 = vshrl.u32 %v795, 16
        %v2019 = vrot.slane %v2017, 1
        %v2020 = vrot.slane %v1243, 2
        %v2021 = vor.u32 %v2019, %v2020
        %v2022 = vsel %vm1736, %v2015, %v2021
        %v2023 = vrot.slane %v1248, 1
        %v2024 = vrot.slane %v1250, 2
        %v2025 = vor.u32 %v2023, %v2024
        %v2026 = vrot.slane %v1259, 1
        %v2027 = vrot.slane %v1255, 2
        %v2028 = vor.u32 %v2026, %v2027
        %v2029 = vsel %vm1736, %v2025, %v2028
        %v2030 = vshrl.u32 %v796, 16
        %v2032 = vrot.slane %v2030, 1
        %v2033 = vrot.slane %v1263, 2
        %v2034 = vor.u32 %v2032, %v2033
        %v2035 = vsel %vm1736, %v2028, %v2034
        %v2036 = vrot.slane %v1268, 1
        %v2037 = vrot.slane %v1270, 2
        %v2038 = vor.u32 %v2036, %v2037
        %v2039 = vrot.slane %v1279, 1
        %v2040 = vrot.slane %v1275, 2
        %v2041 = vor.u32 %v2039, %v2040
        %v2042 = vsel %vm1736, %v2038, %v2041
        %v2043 = vshrl.u32 %v797, 16
        %v2045 = vrot.slane %v2043, 1
        %v2046 = vrot.slane %v1283, 2
        %v2047 = vor.u32 %v2045, %v2046
        %v2048 = vsel %vm1736, %v2041, %v2047
        %v2049 = vrot.slane %v1288, 1
        %v2050 = vrot.slane %v1290, 2
        %v2051 = vor.u32 %v2049, %v2050
        %v2052 = vrot.slane %v1299, 1
        %v2053 = vrot.slane %v1295, 2
        %v2054 = vor.u32 %v2052, %v2053
        %v2055 = vsel %vm1736, %v2051, %v2054
        %v2056 = vshrl.u32 %v798, 16
        %v2058 = vrot.slane %v2056, 1
        %v2059 = vrot.slane %v1303, 2
        %v2060 = vor.u32 %v2058, %v2059
        %v2061 = vsel %vm1736, %v2054, %v2060
        %v2062 = vrot.slane %v1308, 1
        %v2063 = vrot.slane %v1310, 2
        %v2064 = vor.u32 %v2062, %v2063
        %v2065 = vrot.slane %v1319, 1
        %v2066 = vrot.slane %v1315, 2
        %v2067 = vor.u32 %v2065, %v2066
        %v2068 = vsel %vm1736, %v2064, %v2067
        %v2069 = vshrl.u32 %v799, 16
        %v2071 = vrot.slane %v2069, 1
        %v2072 = vrot.slane %v1323, 2
        %v2073 = vor.u32 %v2071, %v2072
        %v2074 = vsel %vm1736, %v2067, %v2073
        %v2075 = vrot.slane %v1328, 1
        %v2076 = vrot.slane %v1330, 2
        %v2077 = vor.u32 %v2075, %v2076
        %v2078 = vrot.slane %v1339, 1
        %v2079 = vrot.slane %v1335, 2
        %v2080 = vor.u32 %v2078, %v2079
        %v2081 = vsel %vm1736, %v2077, %v2080
        %v2082 = vshrl.u32 %v800, 16
        %v2084 = vrot.slane %v2082, 1
        %v2085 = vrot.slane %v1343, 2
        %v2086 = vor.u32 %v2084, %v2085
        %v2087 = vsel %vm1736, %v2080, %v2086
        %v2088 = vrot.slane %v1348, 1
        %v2089 = vrot.slane %v1350, 2
        %v2090 = vor.u32 %v2088, %v2089
        %v2091 = vrot.slane %v1359, 1
        %v2092 = vrot.slane %v1355, 2
        %v2093 = vor.u32 %v2091, %v2092
        %v2094 = vsel %vm1736, %v2090, %v2093
        %v2095 = vshrl.u32 %v801, 16
        %v2097 = vrot.slane %v2095, 1
        %v2098 = vrot.slane %v1363, 2
        %v2099 = vor.u32 %v2097, %v2098
        %v2100 = vsel %vm1736, %v2093, %v2099
        %v2101 = vrot.slane %v1368, 1
        %v2102 = vrot.slane %v1370, 2
        %v2103 = vor.u32 %v2101, %v2102
        %v2104 = vrot.slane %v1379, 1
        %v2105 = vrot.slane %v1375, 2
        %v2106 = vor.u32 %v2104, %v2105
        %v2107 = vsel %vm1736, %v2103, %v2106
        %v2108 = vshrl.u32 %v802, 16
        %v2110 = vrot.slane %v2108, 1
        %v2111 = vrot.slane %v1383, 2
        %v2112 = vor.u32 %v2110, %v2111
        %v2113 = vsel %vm1736, %v2106, %v2112
        %v2114 = vrot.slane %v1388, 1
        %v2115 = vrot.slane %v1390, 2
        %v2116 = vor.u32 %v2114, %v2115
        %v2117 = vrot.slane %v1399, 1
        %v2118 = vrot.slane %v1395, 2
        %v2119 = vor.u32 %v2117, %v2118
        %v2120 = vsel %vm1736, %v2116, %v2119
        %v2121 = vshrl.u32 %v803, 16
        %v2123 = vrot.slane %v2121, 1
        %v2124 = vrot.slane %v1403, 2
        %v2125 = vor.u32 %v2123, %v2124
        %v2126 = vsel %vm1736, %v2119, %v2125
        %v2127 = vrot.slane %v1408, 1
        %v2128 = vrot.slane %v1410, 2
        %v2129 = vor.u32 %v2127, %v2128
        %v2130 = vrot.slane %v1419, 1
        %v2131 = vrot.slane %v1415, 2
        %v2132 = vor.u32 %v2130, %v2131
        %v2133 = vsel %vm1736, %v2129, %v2132
        %v2134 = vshrl.u32 %v804, 16
        %v2136 = vrot.slane %v2134, 1
        %v2137 = vrot.slane %v1423, 2
        %v2138 = vor.u32 %v2136, %v2137
        %v2139 = vsel %vm1736, %v2132, %v2138
        %v2140 = vrot.slane %v1428, 1
        %v2141 = vrot.slane %v1430, 2
        %v2142 = vor.u32 %v2140, %v2141
        %v2143 = vrot.slane %v1439, 1
        %v2144 = vrot.slane %v1435, 2
        %v2145 = vor.u32 %v2143, %v2144
        %v2146 = vsel %vm1736, %v2142, %v2145
        %v2147 = vshrl.u32 %v805, 16
        %v2149 = vrot.slane %v2147, 1
        %v2150 = vrot.slane %v1443, 2
        %v2151 = vor.u32 %v2149, %v2150
        %v2152 = vsel %vm1736, %v2145, %v2151
        %2153 = vrot.lane.b32.xlu0 %v1743, 64
        %v2154 = vpop.permute.xlu0 %2153
        %2155 = vrot.lane.b32.xlu0 %v1749, 64
        %v2156 = vpop.permute.xlu0 %2155
        %2157 = vrot.lane.b32.xlu0 %v1756, 64
        %v2158 = vpop.permute.xlu0 %2157
        %2159 = vrot.lane.b32.xlu0 %v1762, 64
        %v2160 = vpop.permute.xlu0 %2159
        %2161 = vrot.lane.b32.xlu0 %v1769, 64
        %v2162 = vpop.permute.xlu0 %2161
        %2163 = vrot.lane.b32.xlu0 %v1775, 64
        %v2164 = vpop.permute.xlu0 %2163
        %2165 = vrot.lane.b32.xlu0 %v1782, 64
        %v2166 = vpop.permute.xlu0 %2165
        %2167 = vrot.lane.b32.xlu0 %v1788, 64
        %v2168 = vpop.permute.xlu0 %2167
        %2169 = vrot.lane.b32.xlu0 %v1795, 64
        %v2170 = vpop.permute.xlu0 %2169
        %2171 = vrot.lane.b32.xlu0 %v1801, 64
        %v2172 = vpop.permute.xlu0 %2171
        %2173 = vrot.lane.b32.xlu0 %v1808, 64
        %v2174 = vpop.permute.xlu0 %2173
        %2175 = vrot.lane.b32.xlu0 %v1814, 64
        %v2176 = vpop.permute.xlu0 %2175
        %2177 = vrot.lane.b32.xlu0 %v1821, 64
        %v2178 = vpop.permute.xlu0 %2177
        %2179 = vrot.lane.b32.xlu0 %v1827, 64
        %v2180 = vpop.permute.xlu0 %2179
        %2181 = vrot.lane.b32.xlu0 %v1834, 64
        %v2182 = vpop.permute.xlu0 %2181
        %2183 = vrot.lane.b32.xlu0 %v1840, 64
        %v2184 = vpop.permute.xlu0 %2183
        %2185 = vrot.lane.b32.xlu0 %v1847, 64
        %v2186 = vpop.permute.xlu0 %2185
        %2187 = vrot.lane.b32.xlu0 %v1853, 64
        %v2188 = vpop.permute.xlu0 %2187
        %2189 = vrot.lane.b32.xlu0 %v1860, 64
        %v2190 = vpop.permute.xlu0 %2189
        %2191 = vrot.lane.b32.xlu0 %v1866, 64
        %v2192 = vpop.permute.xlu0 %2191
        %2193 = vrot.lane.b32.xlu0 %v1873, 64
        %v2194 = vpop.permute.xlu0 %2193
        %2195 = vrot.lane.b32.xlu0 %v1879, 64
        %v2196 = vpop.permute.xlu0 %2195
        %2197 = vrot.lane.b32.xlu0 %v1886, 64
        %v2198 = vpop.permute.xlu0 %2197
        %2199 = vrot.lane.b32.xlu0 %v1892, 64
        %v2200 = vpop.permute.xlu0 %2199
        %2201 = vrot.lane.b32.xlu0 %v1899, 64
        %v2202 = vpop.permute.xlu0 %2201
        %2203 = vrot.lane.b32.xlu0 %v1905, 64
        %v2204 = vpop.permute.xlu0 %2203
        %2205 = vrot.lane.b32.xlu0 %v1912, 64
        %v2206 = vpop.permute.xlu0 %2205
        %2207 = vrot.lane.b32.xlu0 %v1918, 64
        %v2208 = vpop.permute.xlu0 %2207
        %2209 = vrot.lane.b32.xlu0 %v1925, 64
        %v2210 = vpop.permute.xlu0 %2209
        %2211 = vrot.lane.b32.xlu0 %v1931, 64
        %v2212 = vpop.permute.xlu0 %2211
        %2213 = vrot.lane.b32.xlu0 %v1938, 64
        %v2214 = vpop.permute.xlu0 %2213
        %2215 = vrot.lane.b32.xlu0 %v1944, 64
        %v2216 = vpop.permute.xlu0 %2215
        %2217 = vrot.lane.b32.xlu0 %v1951, 64
        %v2218 = vpop.permute.xlu0 %2217
        %2219 = vrot.lane.b32.xlu0 %v1957, 64
        %v2220 = vpop.permute.xlu0 %2219
        %2221 = vrot.lane.b32.xlu0 %v1964, 64
        %v2222 = vpop.permute.xlu0 %2221
        %2223 = vrot.lane.b32.xlu0 %v1970, 64
        %v2224 = vpop.permute.xlu0 %2223
        %2225 = vrot.lane.b32.xlu0 %v1977, 64
        %v2226 = vpop.permute.xlu0 %2225
        %2227 = vrot.lane.b32.xlu0 %v1983, 64
        %v2228 = vpop.permute.xlu0 %2227
        %2229 = vrot.lane.b32.xlu0 %v1990, 64
        %v2230 = vpop.permute.xlu0 %2229
        %2231 = vrot.lane.b32.xlu0 %v1996, 64
        %v2232 = vpop.permute.xlu0 %2231
        %2233 = vrot.lane.b32.xlu0 %v2003, 64
        %v2234 = vpop.permute.xlu0 %2233
        %2235 = vrot.lane.b32.xlu0 %v2009, 64
        %v2236 = vpop.permute.xlu0 %2235
        %2237 = vrot.lane.b32.xlu0 %v2016, 64
        %v2238 = vpop.permute.xlu0 %2237
        %2239 = vrot.lane.b32.xlu0 %v2022, 64
        %v2240 = vpop.permute.xlu0 %2239
        %2241 = vrot.lane.b32.xlu0 %v2029, 64
        %v2242 = vpop.permute.xlu0 %2241
        %2243 = vrot.lane.b32.xlu0 %v2035, 64
        %v2244 = vpop.permute.xlu0 %2243
        %2245 = vrot.lane.b32.xlu0 %v2042, 64
        %v2246 = vpop.permute.xlu0 %2245
        %2247 = vrot.lane.b32.xlu0 %v2048, 64
        %v2248 = vpop.permute.xlu0 %2247
        %2249 = vrot.lane.b32.xlu0 %v2055, 64
        %v2250 = vpop.permute.xlu0 %2249
        %2251 = vrot.lane.b32.xlu0 %v2061, 64
        %v2252 = vpop.permute.xlu0 %2251
        %2253 = vrot.lane.b32.xlu0 %v2068, 64
        %v2254 = vpop.permute.xlu0 %2253
        %2255 = vrot.lane.b32.xlu0 %v2074, 64
        %v2256 = vpop.permute.xlu0 %2255
        %2257 = vrot.lane.b32.xlu0 %v2081, 64
        %v2258 = vpop.permute.xlu0 %2257
        %2259 = vrot.lane.b32.xlu0 %v2087, 64
        %v2260 = vpop.permute.xlu0 %2259
        %2261 = vrot.lane.b32.xlu0 %v2094, 64
        %v2262 = vpop.permute.xlu0 %2261
        %2263 = vrot.lane.b32.xlu0 %v2100, 64
        %v2264 = vpop.permute.xlu0 %2263
        %2265 = vrot.lane.b32.xlu0 %v2107, 64
        %v2266 = vpop.permute.xlu0 %2265
        %2267 = vrot.lane.b32.xlu0 %v2113, 64
        %v2268 = vpop.permute.xlu0 %2267
        %2269 = vrot.lane.b32.xlu0 %v2120, 64
        %v2270 = vpop.permute.xlu0 %2269
        %2271 = vrot.lane.b32.xlu0 %v2126, 64
        %v2272 = vpop.permute.xlu0 %2271
        %2273 = vrot.lane.b32.xlu0 %v2133, 64
        %v2274 = vpop.permute.xlu0 %2273
        %2275 = vrot.lane.b32.xlu0 %v2139, 64
        %v2276 = vpop.permute.xlu0 %2275
        %2277 = vrot.lane.b32.xlu0 %v2146, 64
        %v2278 = vpop.permute.xlu0 %2277
        %2279 = vrot.lane.b32.xlu0 %v2152, 64
        %v2280 = vpop.permute.xlu0 %2279
        %vm2281 = vcmask 523264
        %v2283 = vsel %vm2281, %v646, %v1448
        %v2286 = vsel %vm2281, %v647, %v1450
        %v2289 = vsel %vm2281, %v648, %v1452
        %v2292 = vsel %vm2281, %v649, %v1454
        %v2295 = vsel %vm2281, %v650, %v1456
        %v2298 = vsel %vm2281, %v651, %v1458
        %v2301 = vsel %vm2281, %v652, %v1460
        %v2304 = vsel %vm2281, %v653, %v1462
        %v2307 = vsel %vm2281, %v654, %v1464
        %v2310 = vsel %vm2281, %v655, %v1466
        %v2313 = vsel %vm2281, %v656, %v1468
        %v2316 = vsel %vm2281, %v657, %v1470
        %v2319 = vsel %vm2281, %v658, %v1472
        %v2322 = vsel %vm2281, %v659, %v1474
        %v2325 = vsel %vm2281, %v660, %v1476
        %v2328 = vsel %vm2281, %v661, %v1478
        %v2331 = vsel %vm2281, %v662, %v1480
        %v2334 = vsel %vm2281, %v663, %v1482
        %v2337 = vsel %vm2281, %v664, %v1484
        %v2340 = vsel %vm2281, %v665, %v1486
        %v2343 = vsel %vm2281, %v666, %v1488
        %v2346 = vsel %vm2281, %v667, %v1490
        %v2349 = vsel %vm2281, %v668, %v1492
        %v2352 = vsel %vm2281, %v669, %v1494
        %v2355 = vsel %vm2281, %v670, %v1496
        %v2358 = vsel %vm2281, %v671, %v1498
        %v2361 = vsel %vm2281, %v672, %v1500
        %v2364 = vsel %vm2281, %v673, %v1502
        %v2367 = vsel %vm2281, %v674, %v1504
        %v2370 = vsel %vm2281, %v675, %v1506
        %v2373 = vsel %vm2281, %v676, %v1508
        %v2376 = vsel %vm2281, %v677, %v1510
        %v2379 = vsel %vm2281, %v678, %v1512
        %v2382 = vsel %vm2281, %v679, %v1514
        %v2385 = vsel %vm2281, %v680, %v1516
        %v2388 = vsel %vm2281, %v681, %v1518
        %v2391 = vsel %vm2281, %v682, %v1520
        %v2394 = vsel %vm2281, %v683, %v1522
        %v2397 = vsel %vm2281, %v684, %v1524
        %v2400 = vsel %vm2281, %v685, %v1526
        %v2403 = vsel %vm2281, %v686, %v1528
        %v2406 = vsel %vm2281, %v687, %v1530
        %v2409 = vsel %vm2281, %v688, %v1532
        %v2412 = vsel %vm2281, %v689, %v1534
        %v2415 = vsel %vm2281, %v690, %v1536
        %v2418 = vsel %vm2281, %v691, %v1538
        %v2421 = vsel %vm2281, %v692, %v1540
        %v2424 = vsel %vm2281, %v693, %v1542
        %v2427 = vsel %vm2281, %v694, %v1544
        %v2430 = vsel %vm2281, %v695, %v1546
        %v2433 = vsel %vm2281, %v696, %v1548
        %v2436 = vsel %vm2281, %v697, %v1550
        %v2439 = vsel %vm2281, %v698, %v1552
        %v2442 = vsel %vm2281, %v699, %v1554
        %v2445 = vsel %vm2281, %v700, %v1556
        %v2448 = vsel %vm2281, %v701, %v1558
        %v2451 = vsel %vm2281, %v702, %v1560
        %v2454 = vsel %vm2281, %v703, %v1562
        %v2457 = vsel %vm2281, %v704, %v1564
        %v2460 = vsel %vm2281, %v705, %v1566
        %v2463 = vsel %vm2281, %v706, %v1568
        %v2466 = vsel %vm2281, %v707, %v1570
        %v2469 = vsel %vm2281, %v708, %v1572
        %v2472 = vsel %vm2281, %v709, %v1574
        %v2476 = vsel %vm2281, %v1578, %v2154
        %v2480 = vsel %vm2281, %v1580, %v2156
        %v2484 = vsel %vm2281, %v1583, %v2158
        %v2488 = vsel %vm2281, %v1585, %v2160
        %v2492 = vsel %vm2281, %v1588, %v2162
        %v2496 = vsel %vm2281, %v1590, %v2164
        %v2500 = vsel %vm2281, %v1593, %v2166
        %v2504 = vsel %vm2281, %v1595, %v2168
        %v2508 = vsel %vm2281, %v1598, %v2170
        %v2512 = vsel %vm2281, %v1600, %v2172
        %v2516 = vsel %vm2281, %v1603, %v2174
        %v2520 = vsel %vm2281, %v1605, %v2176
        %v2524 = vsel %vm2281, %v1608, %v2178
        %v2528 = vsel %vm2281, %v1610, %v2180
        %v2532 = vsel %vm2281, %v1613, %v2182
        %v2536 = vsel %vm2281, %v1615, %v2184
        %v2540 = vsel %vm2281, %v1618, %v2186
        %v2544 = vsel %vm2281, %v1620, %v2188
        %v2548 = vsel %vm2281, %v1623, %v2190
        %v2552 = vsel %vm2281, %v1625, %v2192
        %v2556 = vsel %vm2281, %v1628, %v2194
        %v2560 = vsel %vm2281, %v1630, %v2196
        %v2564 = vsel %vm2281, %v1633, %v2198
        %v2568 = vsel %vm2281, %v1635, %v2200
        %v2572 = vsel %vm2281, %v1638, %v2202
        %v2576 = vsel %vm2281, %v1640, %v2204
        %v2580 = vsel %vm2281, %v1643, %v2206
        %v2584 = vsel %vm2281, %v1645, %v2208
        %v2588 = vsel %vm2281, %v1648, %v2210
        %v2592 = vsel %vm2281, %v1650, %v2212
        %v2596 = vsel %vm2281, %v1653, %v2214
        %v2600 = vsel %vm2281, %v1655, %v2216
        %v2604 = vsel %vm2281, %v1658, %v2218
        %v2608 = vsel %vm2281, %v1660, %v2220
        %v2612 = vsel %vm2281, %v1663, %v2222
        %v2616 = vsel %vm2281, %v1665, %v2224
        %v2620 = vsel %vm2281, %v1668, %v2226
        %v2624 = vsel %vm2281, %v1670, %v2228
        %v2628 = vsel %vm2281, %v1673, %v2230
        %v2632 = vsel %vm2281, %v1675, %v2232
        %v2636 = vsel %vm2281, %v1678, %v2234
        %v2640 = vsel %vm2281, %v1680, %v2236
        %v2644 = vsel %vm2281, %v1683, %v2238
        %v2648 = vsel %vm2281, %v1685, %v2240
        %v2652 = vsel %vm2281, %v1688, %v2242
        %v2656 = vsel %vm2281, %v1690, %v2244
        %v2660 = vsel %vm2281, %v1693, %v2246
        %v2664 = vsel %vm2281, %v1695, %v2248
        %v2668 = vsel %vm2281, %v1698, %v2250
        %v2672 = vsel %vm2281, %v1700, %v2252
        %v2676 = vsel %vm2281, %v1703, %v2254
        %v2680 = vsel %vm2281, %v1705, %v2256
        %v2684 = vsel %vm2281, %v1708, %v2258
        %v2688 = vsel %vm2281, %v1710, %v2260
        %v2692 = vsel %vm2281, %v1713, %v2262
        %v2696 = vsel %vm2281, %v1715, %v2264
        %v2700 = vsel %vm2281, %v1718, %v2266
        %v2704 = vsel %vm2281, %v1720, %v2268
        %v2708 = vsel %vm2281, %v1723, %v2270
        %v2712 = vsel %vm2281, %v1725, %v2272
        %v2716 = vsel %vm2281, %v1728, %v2274
        %v2720 = vsel %vm2281, %v1730, %v2276
        %v2724 = vsel %vm2281, %v1733, %v2278
        %v2728 = vsel %vm2281, %v1735, %v2280
        %v2730 = vld [vmem:[%s210] sm:$0xf]
        %v2731 = vld [vmem:[%s210 + $0x4] sm:$0xf]
        %v2732 = vld [vmem:[%s210 + $0x8] sm:$0xf]
        %v2733 = vld [vmem:[%s210 + $0xc] sm:$0xf]
        %v2734 = vld [vmem:[%s210 + $0x10] sm:$0xf]
        %v2735 = vld [vmem:[%s210 + $0x14] sm:$0xf]
        %v2736 = vld [vmem:[%s210 + $0x18] sm:$0xf]
        %v2737 = vld [vmem:[%s210 + $0x1c] sm:$0xf]
        %v2738 = vld [vmem:[%s210 + $0x20] sm:$0xf]
        %v2739 = vld [vmem:[%s210 + $0x24] sm:$0xf]
        %v2740 = vld [vmem:[%s210 + $0x28] sm:$0xf]
        %v2741 = vld [vmem:[%s210 + $0x2c] sm:$0xf]
        %v2742 = vld [vmem:[%s210 + $0x30] sm:$0xf]
        %v2743 = vld [vmem:[%s210 + $0x34] sm:$0xf]
        %v2744 = vld [vmem:[%s210 + $0x38] sm:$0xf]
        %v2745 = vld [vmem:[%s210 + $0x3c] sm:$0xf]
        %v2746 = vld [vmem:[%s210 + $0x40] sm:$0xf]
        %v2747 = vld [vmem:[%s210 + $0x44] sm:$0xf]
        %v2748 = vld [vmem:[%s210 + $0x48] sm:$0xf]
        %v2749 = vld [vmem:[%s210 + $0x4c] sm:$0xf]
        %v2750 = vld [vmem:[%s210 + $0x50] sm:$0xf]
        %v2751 = vld [vmem:[%s210 + $0x54] sm:$0xf]
        %v2752 = vld [vmem:[%s210 + $0x58] sm:$0xf]
        %v2753 = vld [vmem:[%s210 + $0x5c] sm:$0xf]
        %v2754 = vld [vmem:[%s210 + $0x60] sm:$0xf]
        %v2755 = vld [vmem:[%s210 + $0x64] sm:$0xf]
        %v2756 = vld [vmem:[%s210 + $0x68] sm:$0xf]
        %v2757 = vld [vmem:[%s210 + $0x6c] sm:$0xf]
        %v2758 = vld [vmem:[%s210 + $0x70] sm:$0xf]
        %v2759 = vld [vmem:[%s210 + $0x74] sm:$0xf]
        %v2760 = vld [vmem:[%s210 + $0x78] sm:$0xf]
        %v2761 = vld [vmem:[%s210 + $0x7c] sm:$0xf]
        %v2766 = vunpack.c.l.b16 %v375
        %v2767 = vunpack.c.l.b16 %v376
        %v2768 = vunpack.c.l.b16 %v377
        %v2769 = vunpack.c.l.b16 %v378
        %v2770 = vpack.c.b16 %v2767, %v2766
        %v2771 = vpack.c.b16 %v2769, %v2768
        %v2773 = vunpack.c.l.b16 %v379
        %v2774 = vpack.c.b16 %v2773, %v2773
        %v2776 = vshrl.u32 %v2770, 16
        %v2778 = vshll.u32 %v2770, 16
        %v2780 = vrot.slane %v2778, 1
        %v2781 = vor.u32 %v2776, %v2780
        %v2783 = vshll.u32 %v2771, 16
        %v2785 = vrot.slane %v2783, 1
        %v2786 = vsel %vm806, %v2781, %v2785
        %v2787 = vshrl.u32 %v2771, 16
        %v2789 = vor.u32 %v2787, %v2785
        %v2791 = vshll.u32 %v2774, 16
        %v2793 = vrot.slane %v2791, 1
        %v2794 = vsel %vm806, %v2789, %v2793
        %2795 = vrot.lane.b32.xlu0 %v2786, 64
        %v2796 = vpop.permute.xlu0 %2795
        %2797 = vrot.lane.b32.xlu0 %v2794, 64
        %v2798 = vpop.permute.xlu0 %2797
        %v2799 = vrot.slane %v2770, 1
        %v2800 = vrot.slane %v2771, 1
        %v2801 = vsel %vm1575, %v2799, %v2800
        %v2802 = vrot.slane %v2774, 1
        %v2803 = vsel %vm1575, %v2800, %v2802
        %v2804 = vrot.slane %v2776, 1
        %v2805 = vrot.slane %v2778, 2
        %v2806 = vor.u32 %v2804, %v2805
        %v2807 = vrot.slane %v2787, 1
        %v2808 = vrot.slane %v2783, 2
        %v2809 = vor.u32 %v2807, %v2808
        %v2810 = vsel %vm1736, %v2806, %v2809
        %v2811 = vshrl.u32 %v2774, 16
        %v2813 = vrot.slane %v2811, 1
        %v2814 = vrot.slane %v2791, 2
        %v2815 = vor.u32 %v2813, %v2814
        %v2816 = vsel %vm1736, %v2809, %v2815
        %2817 = vrot.lane.b32.xlu0 %v2810, 64
        %v2818 = vpop.permute.xlu0 %2817
        %2819 = vrot.lane.b32.xlu0 %v2816, 64
        %v2820 = vpop.permute.xlu0 %2819
        %v2822 = vsel %vm2281, %v2770, %v2796
        %v2825 = vsel %vm2281, %v2771, %v2798
        %v2829 = vsel %vm2281, %v2801, %v2818
        %v2833 = vsel %vm2281, %v2803, %v2820
        %s2835 = scalar_lea.vmem %s210, 128
        %v2836 = vld [vmem:[%s2835] sm:$0xf]
        %v2837 = vld [vmem:[%s2835 + $0x4] sm:$0xf]
        %v2838 = vld [vmem:[%s2835 + $0x8] sm:$0xf]
        %v2839 = vld [vmem:[%s2835 + $0xc] sm:$0xf]
        %v2840 = vld [vmem:[%s2835 + $0x10] sm:$0xf]
        %v2841 = vld [vmem:[%s2835 + $0x14] sm:$0xf]
        %v2842 = vld [vmem:[%s2835 + $0x18] sm:$0xf]
        %v2843 = vld [vmem:[%s2835 + $0x1c] sm:$0xf]
        %v2844 = vld [vmem:[%s2835 + $0x20] sm:$0xf]
        %v2845 = vld [vmem:[%s2835 + $0x24] sm:$0xf]
        %v2846 = vld [vmem:[%s2835 + $0x28] sm:$0xf]
        %v2847 = vld [vmem:[%s2835 + $0x2c] sm:$0xf]
        %v2848 = vld [vmem:[%s2835 + $0x30] sm:$0xf]
        %v2849 = vld [vmem:[%s2835 + $0x34] sm:$0xf]
        %v2850 = vld [vmem:[%s2835 + $0x38] sm:$0xf]
        %v2851 = vld [vmem:[%s2835 + $0x3c] sm:$0xf]
        %v2852 = vld [vmem:[%s2835 + $0x40] sm:$0xf]
        %v2853 = vld [vmem:[%s2835 + $0x44] sm:$0xf]
        %v2854 = vld [vmem:[%s2835 + $0x48] sm:$0xf]
        %v2855 = vld [vmem:[%s2835 + $0x4c] sm:$0xf]
        %v2856 = vld [vmem:[%s2835 + $0x50] sm:$0xf]
        %v2857 = vld [vmem:[%s2835 + $0x54] sm:$0xf]
        %v2858 = vld [vmem:[%s2835 + $0x58] sm:$0xf]
        %v2859 = vld [vmem:[%s2835 + $0x5c] sm:$0xf]
        %v2860 = vld [vmem:[%s2835 + $0x60] sm:$0xf]
        %v2861 = vld [vmem:[%s2835 + $0x64] sm:$0xf]
        %v2862 = vld [vmem:[%s2835 + $0x68] sm:$0xf]
        %v2863 = vld [vmem:[%s2835 + $0x6c] sm:$0xf]
        %v2864 = vld [vmem:[%s2835 + $0x70] sm:$0xf]
        %v2865 = vld [vmem:[%s2835 + $0x74] sm:$0xf]
        %v2866 = vld [vmem:[%s2835 + $0x78] sm:$0xf]
        %v2867 = vld [vmem:[%s2835 + $0x7c] sm:$0xf]
        %v2900 = vunpack.c.l.b16 %v2836
        %v2901 = vunpack.c.l.b16 %v2837
        %v2902 = vunpack.c.l.b16 %v2838
        %v2903 = vunpack.c.l.b16 %v2839
        %v2904 = vunpack.c.l.b16 %v2840
        %v2905 = vunpack.c.l.b16 %v2841
        %v2906 = vunpack.c.l.b16 %v2842
        %v2907 = vunpack.c.l.b16 %v2843
        %v2908 = vunpack.c.l.b16 %v2844
        %v2909 = vunpack.c.l.b16 %v2845
        %v2910 = vunpack.c.l.b16 %v2846
        %v2911 = vunpack.c.l.b16 %v2847
        %v2912 = vunpack.c.l.b16 %v2848
        %v2913 = vunpack.c.l.b16 %v2849
        %v2914 = vunpack.c.l.b16 %v2850
        %v2915 = vunpack.c.l.b16 %v2851
        %v2916 = vunpack.c.l.b16 %v2852
        %v2917 = vunpack.c.l.b16 %v2853
        %v2918 = vunpack.c.l.b16 %v2854
        %v2919 = vunpack.c.l.b16 %v2855
        %v2920 = vunpack.c.l.b16 %v2856
        %v2921 = vunpack.c.l.b16 %v2857
        %v2922 = vunpack.c.l.b16 %v2858
        %v2923 = vunpack.c.l.b16 %v2859
        %v2924 = vunpack.c.l.b16 %v2860
        %v2925 = vunpack.c.l.b16 %v2861
        %v2926 = vunpack.c.l.b16 %v2862
        %v2927 = vunpack.c.l.b16 %v2863
        %v2928 = vunpack.c.l.b16 %v2864
        %v2929 = vunpack.c.l.b16 %v2865
        %v2930 = vunpack.c.l.b16 %v2866
        %v2931 = vunpack.c.l.b16 %v2867
        %v2932 = vpack.c.b16 %v2901, %v2900
        %v2933 = vpack.c.b16 %v2903, %v2902
        %v2934 = vpack.c.b16 %v2905, %v2904
        %v2935 = vpack.c.b16 %v2907, %v2906
        %v2936 = vpack.c.b16 %v2909, %v2908
        %v2937 = vpack.c.b16 %v2911, %v2910
        %v2938 = vpack.c.b16 %v2913, %v2912
        %v2939 = vpack.c.b16 %v2915, %v2914
        %v2940 = vpack.c.b16 %v2917, %v2916
        %v2941 = vpack.c.b16 %v2919, %v2918
        %v2942 = vpack.c.b16 %v2921, %v2920
        %v2943 = vpack.c.b16 %v2923, %v2922
        %v2944 = vpack.c.b16 %v2925, %v2924
        %v2945 = vpack.c.b16 %v2927, %v2926
        %v2946 = vpack.c.b16 %v2929, %v2928
        %v2947 = vpack.c.b16 %v2931, %v2930
        %2964 = vmatprep.subr.bf16.mxu0 0
        %2965 = vmatpush1.bf16.msra.mxu0 %v2932
        %2966 = vmatprep.subr.bf16.mxu0 0
        %2967 = vmatpush1.bf16.msra.mxu0 %v2933
        %2968 = vmatprep.subr.bf16.mxu0 0
        %2969 = vmatpush1.bf16.msra.mxu0 %v2934
        %2970 = vmatprep.subr.bf16.mxu0 0
        %2971 = vmatpush1.bf16.msra.mxu0 %v2935
        %2972 = vmatprep.subr.bf16.mxu0 0
        %2973 = vmatpush1.bf16.msra.mxu0 %v2936
        %2974 = vmatprep.subr.bf16.mxu0 0
        %2975 = vmatpush1.bf16.msra.mxu0 %v2937
        %2976 = vmatprep.subr.bf16.mxu0 0
        %2977 = vmatpush1.bf16.msra.mxu0 %v2938
        %2978 = vmatprep.subr.bf16.mxu0 0
        %2979 = vmatpush1.bf16.msra.mxu0 %v2939
        %2980 = vmatprep.subr.bf16.mxu0 0
        %2981 = vmatpush1.bf16.msra.mxu0 %v2940
        %2982 = vmatprep.subr.bf16.mxu0 0
        %2983 = vmatpush1.bf16.msra.mxu0 %v2941
        %2984 = vmatprep.subr.bf16.mxu0 0
        %2985 = vmatpush1.bf16.msra.mxu0 %v2942
        %2986 = vmatprep.subr.bf16.mxu0 0
        %2987 = vmatpush1.bf16.msra.mxu0 %v2943
        %2988 = vmatprep.subr.bf16.mxu0 0
        %2989 = vmatpush1.bf16.msra.mxu0 %v2944
        %2990 = vmatprep.subr.bf16.mxu0 0
        %2991 = vmatpush1.bf16.msra.mxu0 %v2945
        %2992 = vmatprep.subr.bf16.mxu0 0
        %2993 = vmatpush1.bf16.msra.mxu0 %v2946
        %2994 = vmatprep.subr.bf16.mxu0 0
        %2995 = vmatpush1.bf16.msra.mxu0 %v2947
        %2996 = vmatprep.mubr.bf16.mxu0 %v2484
        %2997 = vmatmul.mubr.bf16.gmra.mrb[0].mxu0 %v2289
        %v2998 = vpop.f32.mrb[0].mxu0
        %v2999 = vadd.f32 0.0, %v2998
        %v3000 = vpop.f32.mrb[0].mxu0
        %v3001 = vpop.f32.mrb[0].mxu0
        %v3002 = vadd.f32 0.0, %v3001
        %v3003 = vpop.f32.mrb[0].mxu0
        %3004 = vmatprep.mubr.bf16.mxu0 %v2488
        %3005 = vmatmul.mubr.bf16.gmra.mrb[0].mxu0 %v2292
        %v3006 = vpop.f32.mrb[0].mxu0
        %v3007 = vadd.f32 0.0, %v3006
        %v3008 = vpop.f32.mrb[0].mxu0
        %v3009 = vpop.f32.mrb[0].mxu0
        %v3010 = vadd.f32 0.0, %v3009
        %v3011 = vpop.f32.mrb[0].mxu0
        %3012 = vmatprep.mubr.bf16.mxu0 %v2492
        %3013 = vmatmul.mubr.bf16.gmra.mrb[0].mxu0 %v2295
        %v3014 = vpop.f32.mrb[0].mxu0
        %v3015 = vadd.f32 0.0, %v3014
        %v3016 = vpop.f32.mrb[0].mxu0
        %v3017 = vpop.f32.mrb[0].mxu0
        %v3018 = vadd.f32 0.0, %v3017
        %v3019 = vpop.f32.mrb[0].mxu0
        %3020 = vmatprep.mubr.bf16.mxu0 %v2496
        %3021 = vmatmul.mubr.bf16.gmra.mrb[0].mxu0 %v2298
        %v3022 = vpop.f32.mrb[0].mxu0
        %v3023 = vadd.f32 0.0, %v3022
        %v3024 = vpop.f32.mrb[0].mxu0
        %v3025 = vpop.f32.mrb[0].mxu0
        %v3026 = vadd.f32 0.0, %v3025
        %v3027 = vpop.f32.mrb[0].mxu0
        %3028 = vmatprep.mubr.bf16.mxu0 %v2500
        %3029 = vmatmul.mubr.bf16.gmra.mrb[0].mxu0 %v2301
        %v3030 = vpop.f32.mrb[0].mxu0
        %v3031 = vadd.f32 0.0, %v3030
        %v3032 = vpop.f32.mrb[0].mxu0
        %v3033 = vpop.f32.mrb[0].mxu0
        %v3034 = vadd.f32 0.0, %v3033
        %v3035 = vpop.f32.mrb[0].mxu0
        %3036 = vmatprep.mubr.bf16.mxu0 %v2504
        %3037 = vmatmul.mubr.bf16.gmra.mrb[0].mxu0 %v2304
        %v3038 = vpop.f32.mrb[0].mxu0
        %v3039 = vadd.f32 0.0, %v3038
        %v3040 = vpop.f32.mrb[0].mxu0
        %v3041 = vpop.f32.mrb[0].mxu0
        %v3042 = vadd.f32 0.0, %v3041
        %v3043 = vpop.f32.mrb[0].mxu0
        %3044 = vmatprep.mubr.bf16.mxu0 %v2508
        %3045 = vmatmul.mubr.bf16.gmra.mrb[0].mxu0 %v2307
        %v3046 = vpop.f32.mrb[0].mxu0
        %v3047 = vadd.f32 0.0, %v3046
        %v3048 = vpop.f32.mrb[0].mxu0
        %v3049 = vpop.f32.mrb[0].mxu0
        %v3050 = vadd.f32 0.0, %v3049
        %v3051 = vpop.f32.mrb[0].mxu0
        %3052 = vmatprep.mubr.bf16.mxu0 %v2512
        %3053 = vmatmul.mubr.bf16.gmra.mrb[0].mxu0 %v2310
        %v3054 = vpop.f32.mrb[0].mxu0
        %v3055 = vadd.f32 0.0, %v3054
        %v3056 = vpop.f32.mrb[0].mxu0
        %v3057 = vpop.f32.mrb[0].mxu0
        %v3058 = vadd.f32 0.0, %v3057
        %v3059 = vpop.f32.mrb[0].mxu0
        %3060 = vmatprep.mubr.bf16.mxu0 %v2516
        %3061 = vmatmul.mubr.bf16.gmra.mrb[0].mxu0 %v2313
        %v3062 = vpop.f32.mrb[0].mxu0
        %v3063 = vadd.f32 0.0, %v3062
        %v3064 = vpop.f32.mrb[0].mxu0
        %v3065 = vpop.f32.mrb[0].mxu0
        %v3066 = vadd.f32 0.0, %v3065
        %v3067 = vpop.f32.mrb[0].mxu0
        %3068 = vmatprep.mubr.bf16.mxu0 %v2520
        %3069 = vmatmul.mubr.bf16.gmra.mrb[0].mxu0 %v2316
        %v3070 = vpop.f32.mrb[0].mxu0
        %v3071 = vadd.f32 0.0, %v3070
        %v3072 = vpop.f32.mrb[0].mxu0
        %v3073 = vpop.f32.mrb[0].mxu0
        %v3074 = vadd.f32 0.0, %v3073
        %v3075 = vpop.f32.mrb[0].mxu0
        %3076 = vmatprep.mubr.bf16.mxu0 %v2524
        %3077 = vmatmul.mubr.bf16.gmra.mrb[0].mxu0 %v2319
        %v3078 = vpop.f32.mrb[0].mxu0
        %v3079 = vadd.f32 0.0, %v3078
        %v3080 = vpop.f32.mrb[0].mxu0
        %v3081 = vpop.f32.mrb[0].mxu0
        %v3082 = vadd.f32 0.0, %v3081
        %v3083 = vpop.f32.mrb[0].mxu0
        %3084 = vmatprep.mubr.bf16.mxu0 %v2528
        %3085 = vmatmul.mubr.bf16.gmra.mrb[0].mxu0 %v2322
        %v3086 = vpop.f32.mrb[0].mxu0
        %v3087 = vadd.f32 0.0, %v3086
        %v3088 = vpop.f32.mrb[0].mxu0
        %v3089 = vpop.f32.mrb[0].mxu0
        %v3090 = vadd.f32 0.0, %v3089
        %v3091 = vpop.f32.mrb[0].mxu0
        %3092 = vmatprep.mubr.bf16.mxu0 %v2532
        %3093 = vmatmul.mubr.bf16.gmra.mrb[0].mxu0 %v2325
        %v3094 = vpop.f32.mrb[0].mxu0
        %v3095 = vadd.f32 0.0, %v3094
        %v3096 = vpop.f32.mrb[0].mxu0
        %v3097 = vpop.f32.mrb[0].mxu0
        %v3098 = vadd.f32 0.0, %v3097
        %v3099 = vpop.f32.mrb[0].mxu0
        %3100 = vmatprep.mubr.bf16.mxu0 %v2536
        %3101 = vmatmul.mubr.bf16.gmra.mrb[0].mxu0 %v2328
        %v3102 = vpop.f32.mrb[0].mxu0
        %v3103 = vadd.f32 0.0, %v3102
        %v3104 = vpop.f32.mrb[0].mxu0
        %v3105 = vpop.f32.mrb[0].mxu0
        %v3106 = vadd.f32 0.0, %v3105
        %v3107 = vpop.f32.mrb[0].mxu0
        %3108 = vmatprep.mubr.bf16.mxu0 %v2540
        %3109 = vmatmul.mubr.bf16.gmra.mrb[0].mxu0 %v2331
        %v3110 = vpop.f32.mrb[0].mxu0
        %v3111 = vadd.f32 0.0, %v3110
        %v3112 = vpop.f32.mrb[0].mxu0
        %v3113 = vpop.f32.mrb[0].mxu0
        %v3114 = vadd.f32 0.0, %v3113
        %v3115 = vpop.f32.mrb[0].mxu0
        %3116 = vmatprep.mubr.bf16.mxu0 %v2544
        %3117 = vmatmul.mubr.bf16.gmra.mrb[0].mxu0 %v2334
        %v3118 = vpop.f32.mrb[0].mxu0
        %v3119 = vadd.f32 0.0, %v3118
        %v3120 = vpop.f32.mrb[0].mxu0
        %v3121 = vpop.f32.mrb[0].mxu0
        %v3122 = vadd.f32 0.0, %v3121
        %v3123 = vpop.f32.mrb[0].mxu0
        %3124 = vmatprep.mubr.bf16.mxu0 %v2548
        %3125 = vmatmul.mubr.bf16.gmra.mrb[0].mxu0 %v2337
        %v3126 = vpop.f32.mrb[0].mxu0
        %v3127 = vadd.f32 0.0, %v3126
        %v3128 = vpop.f32.mrb[0].mxu0
        %v3129 = vpop.f32.mrb[0].mxu0
        %v3130 = vadd.f32 0.0, %v3129
        %v3131 = vpop.f32.mrb[0].mxu0
        %3132 = vmatprep.mubr.bf16.mxu0 %v2552
        %3133 = vmatmul.mubr.bf16.gmra.mrb[0].mxu0 %v2340
        %v3134 = vpop.f32.mrb[0].mxu0
        %v3135 = vadd.f32 0.0, %v3134
        %v3136 = vpop.f32.mrb[0].mxu0
        %v3137 = vpop.f32.mrb[0].mxu0
        %v3138 = vadd.f32 0.0, %v3137
        %v3139 = vpop.f32.mrb[0].mxu0
        %3140 = vmatprep.mubr.bf16.mxu0 %v2556
        %3141 = vmatmul.mubr.bf16.gmra.mrb[0].mxu0 %v2343
        %v3142 = vpop.f32.mrb[0].mxu0
        %v3143 = vadd.f32 0.0, %v3142
        %v3144 = vpop.f32.mrb[0].mxu0
        %v3145 = vpop.f32.mrb[0].mxu0
        %v3146 = vadd.f32 0.0, %v3145
        %v3147 = vpop.f32.mrb[0].mxu0
        %3148 = vmatprep.mubr.bf16.mxu0 %v2560
        %3149 = vmatmul.mubr.bf16.gmra.mrb[0].mxu0 %v2346
        %v3150 = vpop.f32.mrb[0].mxu0
        %v3151 = vadd.f32 0.0, %v3150
        %v3152 = vpop.f32.mrb[0].mxu0
        %v3153 = vpop.f32.mrb[0].mxu0
        %v3154 = vadd.f32 0.0, %v3153
        %v3155 = vpop.f32.mrb[0].mxu0
        %3156 = vmatprep.mubr.bf16.mxu0 %v2564
        %3157 = vmatmul.mubr.bf16.gmra.mrb[0].mxu0 %v2349
        %v3158 = vpop.f32.mrb[0].mxu0
        %v3159 = vadd.f32 0.0, %v3158
        %v3160 = vpop.f32.mrb[0].mxu0
        %v3161 = vpop.f32.mrb[0].mxu0
        %v3162 = vadd.f32 0.0, %v3161
        %v3163 = vpop.f32.mrb[0].mxu0
        %3164 = vmatprep.mubr.bf16.mxu0 %v2568
        %3165 = vmatmul.mubr.bf16.gmra.mrb[0].mxu0 %v2352
        %v3166 = vpop.f32.mrb[0].mxu0
        %v3167 = vadd.f32 0.0, %v3166
        %v3168 = vpop.f32.mrb[0].mxu0
        %v3169 = vpop.f32.mrb[0].mxu0
        %v3170 = vadd.f32 0.0, %v3169
        %v3171 = vpop.f32.mrb[0].mxu0
        %3172 = vmatprep.mubr.bf16.mxu0 %v2572
        %3173 = vmatmul.mubr.bf16.gmra.mrb[0].mxu0 %v2355
        %v3174 = vpop.f32.mrb[0].mxu0
        %v3175 = vadd.f32 0.0, %v3174
        %v3176 = vpop.f32.mrb[0].mxu0
        %v3177 = vpop.f32.mrb[0].mxu0
        %v3178 = vadd.f32 0.0, %v3177
        %v3179 = vpop.f32.mrb[0].mxu0
        %3180 = vmatprep.mubr.bf16.mxu0 %v2576
        %3181 = vmatmul.mubr.bf16.gmra.mrb[0].mxu0 %v2358
        %v3182 = vpop.f32.mrb[0].mxu0
        %v3183 = vadd.f32 0.0, %v3182
        %v3184 = vpop.f32.mrb[0].mxu0
        %v3185 = vpop.f32.mrb[0].mxu0
        %v3186 = vadd.f32 0.0, %v3185
        %v3187 = vpop.f32.mrb[0].mxu0
        %3188 = vmatprep.mubr.bf16.mxu0 %v2580
        %3189 = vmatmul.mubr.bf16.gmra.mrb[0].mxu0 %v2361
        %v3190 = vpop.f32.mrb[0].mxu0
        %v3191 = vadd.f32 0.0, %v3190
        %v3192 = vpop.f32.mrb[0].mxu0
        %v3193 = vpop.f32.mrb[0].mxu0
        %v3194 = vadd.f32 0.0, %v3193
        %v3195 = vpop.f32.mrb[0].mxu0
        %3196 = vmatprep.mubr.bf16.mxu0 %v2584
        %3197 = vmatmul.mubr.bf16.gmra.mrb[0].mxu0 %v2364
        %v3198 = vpop.f32.mrb[0].mxu0
        %v3199 = vadd.f32 0.0, %v3198
        %v3200 = vpop.f32.mrb[0].mxu0
        %v3201 = vpop.f32.mrb[0].mxu0
        %v3202 = vadd.f32 0.0, %v3201
        %v3203 = vpop.f32.mrb[0].mxu0
        %3204 = vmatprep.mubr.bf16.mxu0 %v2588
        %3205 = vmatmul.mubr.bf16.gmra.mrb[0].mxu0 %v2367
        %v3206 = vpop.f32.mrb[0].mxu0
        %v3207 = vadd.f32 0.0, %v3206
        %v3208 = vpop.f32.mrb[0].mxu0
        %v3209 = vpop.f32.mrb[0].mxu0
        %v3210 = vadd.f32 0.0, %v3209
        %v3211 = vpop.f32.mrb[0].mxu0
        %3212 = vmatprep.mubr.bf16.mxu0 %v2592
        %3213 = vmatmul.mubr.bf16.gmra.mrb[0].mxu0 %v2370
        %v3214 = vpop.f32.mrb[0].mxu0
        %v3215 = vadd.f32 0.0, %v3214
        %v3216 = vpop.f32.mrb[0].mxu0
        %v3217 = vpop.f32.mrb[0].mxu0
        %v3218 = vadd.f32 0.0, %v3217
        %v3219 = vpop.f32.mrb[0].mxu0
        %3220 = vmatprep.mubr.bf16.mxu0 %v2596
        %3221 = vmatmul.mubr.bf16.gmra.mrb[0].mxu0 %v2373
        %v3222 = vpop.f32.mrb[0].mxu0
        %v3223 = vadd.f32 0.0, %v3222
        %v3224 = vpop.f32.mrb[0].mxu0
        %v3225 = vpop.f32.mrb[0].mxu0
        %v3226 = vadd.f32 0.0, %v3225
        %v3227 = vpop.f32.mrb[0].mxu0
        %3228 = vmatprep.mubr.bf16.mxu0 %v2600
        %3229 = vmatmul.mubr.bf16.gmra.mrb[0].mxu0 %v2376
        %v3230 = vpop.f32.mrb[0].mxu0
        %v3231 = vadd.f32 0.0, %v3230
        %v3232 = vpop.f32.mrb[0].mxu0
        %v3233 = vpop.f32.mrb[0].mxu0
        %v3234 = vadd.f32 0.0, %v3233
        %v3235 = vpop.f32.mrb[0].mxu0
        %3236 = vmatprep.mubr.bf16.mxu0 %v2604
        %3237 = vmatmul.mubr.bf16.gmra.mrb[0].mxu0 %v2379
        %v3238 = vpop.f32.mrb[0].mxu0
        %v3239 = vadd.f32 0.0, %v3238
        %v3240 = vpop.f32.mrb[0].mxu0
        %v3241 = vpop.f32.mrb[0].mxu0
        %v3242 = vadd.f32 0.0, %v3241
        %v3243 = vpop.f32.mrb[0].mxu0
        %3244 = vmatprep.mubr.bf16.mxu0 %v2608
        %3245 = vmatmul.mubr.bf16.gmra.mrb[0].mxu0 %v2382
        %v3246 = vpop.f32.mrb[0].mxu0
        %v3247 = vadd.f32 0.0, %v3246
        %v3248 = vpop.f32.mrb[0].mxu0
        %v3249 = vpop.f32.mrb[0].mxu0
        %v3250 = vadd.f32 0.0, %v3249
        %v3251 = vpop.f32.mrb[0].mxu0
        %3252 = vmatprep.mubr.bf16.mxu0 %v2612
        %3253 = vmatmul.mubr.bf16.gmra.mrb[0].mxu0 %v2385
        %v3254 = vpop.f32.mrb[0].mxu0
        %v3255 = vadd.f32 0.0, %v3254
        %v3256 = vpop.f32.mrb[0].mxu0
        %v3257 = vpop.f32.mrb[0].mxu0
        %v3258 = vadd.f32 0.0, %v3257
        %v3259 = vpop.f32.mrb[0].mxu0
        %3260 = vmatprep.mubr.bf16.mxu0 %v2616
        %3261 = vmatmul.mubr.bf16.gmra.mrb[0].mxu0 %v2388
        %v3262 = vpop.f32.mrb[0].mxu0
        %v3263 = vadd.f32 0.0, %v3262
        %v3264 = vpop.f32.mrb[0].mxu0
        %v3265 = vpop.f32.mrb[0].mxu0
        %v3266 = vadd.f32 0.0, %v3265
        %v3267 = vpop.f32.mrb[0].mxu0
        %3268 = vmatprep.mubr.bf16.mxu0 %v2620
        %3269 = vmatmul.mubr.bf16.gmra.mrb[0].mxu0 %v2391
        %v3270 = vpop.f32.mrb[0].mxu0
        %v3271 = vadd.f32 0.0, %v3270
        %v3272 = vpop.f32.mrb[0].mxu0
        %v3273 = vpop.f32.mrb[0].mxu0
        %v3274 = vadd.f32 0.0, %v3273
        %v3275 = vpop.f32.mrb[0].mxu0
        %3276 = vmatprep.mubr.bf16.mxu0 %v2624
        %3277 = vmatmul.mubr.bf16.gmra.mrb[0].mxu0 %v2394
        %v3278 = vpop.f32.mrb[0].mxu0
        %v3279 = vadd.f32 0.0, %v3278
        %v3280 = vpop.f32.mrb[0].mxu0
        %v3281 = vpop.f32.mrb[0].mxu0
        %v3282 = vadd.f32 0.0, %v3281
        %v3283 = vpop.f32.mrb[0].mxu0
        %3284 = vmatprep.mubr.bf16.mxu0 %v2628
        %3285 = vmatmul.mubr.bf16.gmra.mrb[0].mxu0 %v2397
        %v3286 = vpop.f32.mrb[0].mxu0
        %v3287 = vadd.f32 0.0, %v3286
        %v3288 = vpop.f32.mrb[0].mxu0
        %v3289 = vpop.f32.mrb[0].mxu0
        %v3290 = vadd.f32 0.0, %v3289
        %v3291 = vpop.f32.mrb[0].mxu0
        %3292 = vmatprep.mubr.bf16.mxu0 %v2632
        %3293 = vmatmul.mubr.bf16.gmra.mrb[0].mxu0 %v2400
        %v3294 = vpop.f32.mrb[0].mxu0
        %v3295 = vadd.f32 0.0, %v3294
        %v3296 = vpop.f32.mrb[0].mxu0
        %v3297 = vpop.f32.mrb[0].mxu0
        %v3298 = vadd.f32 0.0, %v3297
        %v3299 = vpop.f32.mrb[0].mxu0
        %3300 = vmatprep.mubr.bf16.mxu0 %v2636
        %3301 = vmatmul.mubr.bf16.gmra.mrb[0].mxu0 %v2403
        %v3302 = vpop.f32.mrb[0].mxu0
        %v3303 = vadd.f32 0.0, %v3302
        %v3304 = vpop.f32.mrb[0].mxu0
        %v3305 = vpop.f32.mrb[0].mxu0
        %v3306 = vadd.f32 0.0, %v3305
        %v3307 = vpop.f32.mrb[0].mxu0
        %3308 = vmatprep.mubr.bf16.mxu0 %v2640
        %3309 = vmatmul.mubr.bf16.gmra.mrb[0].mxu0 %v2406
        %v3310 = vpop.f32.mrb[0].mxu0
        %v3311 = vadd.f32 0.0, %v3310
        %v3312 = vpop.f32.mrb[0].mxu0
        %v3313 = vpop.f32.mrb[0].mxu0
        %v3314 = vadd.f32 0.0, %v3313
        %v3315 = vpop.f32.mrb[0].mxu0
        %3316 = vmatprep.mubr.bf16.mxu0 %v2644
        %3317 = vmatmul.mubr.bf16.gmra.mrb[0].mxu0 %v2409
        %v3318 = vpop.f32.mrb[0].mxu0
        %v3319 = vadd.f32 0.0, %v3318
        %v3320 = vpop.f32.mrb[0].mxu0
        %v3321 = vpop.f32.mrb[0].mxu0
        %v3322 = vadd.f32 0.0, %v3321
        %v3323 = vpop.f32.mrb[0].mxu0
        %3324 = vmatprep.mubr.bf16.mxu0 %v2648
        %3325 = vmatmul.mubr.bf16.gmra.mrb[0].mxu0 %v2412
        %v3326 = vpop.f32.mrb[0].mxu0
        %v3327 = vadd.f32 0.0, %v3326
        %v3328 = vpop.f32.mrb[0].mxu0
        %v3329 = vpop.f32.mrb[0].mxu0
        %v3330 = vadd.f32 0.0, %v3329
        %v3331 = vpop.f32.mrb[0].mxu0
        %3332 = vmatprep.mubr.bf16.mxu0 %v2652
        %3333 = vmatmul.mubr.bf16.gmra.mrb[0].mxu0 %v2415
        %v3334 = vpop.f32.mrb[0].mxu0
        %v3335 = vadd.f32 0.0, %v3334
        %v3336 = vpop.f32.mrb[0].mxu0
        %v3337 = vpop.f32.mrb[0].mxu0
        %v3338 = vadd.f32 0.0, %v3337
        %v3339 = vpop.f32.mrb[0].mxu0
        %3340 = vmatprep.mubr.bf16.mxu0 %v2656
        %3341 = vmatmul.mubr.bf16.gmra.mrb[0].mxu0 %v2418
        %v3342 = vpop.f32.mrb[0].mxu0
        %v3343 = vadd.f32 0.0, %v3342
        %v3344 = vpop.f32.mrb[0].mxu0
        %v3345 = vpop.f32.mrb[0].mxu0
        %v3346 = vadd.f32 0.0, %v3345
        %v3347 = vpop.f32.mrb[0].mxu0
        %3348 = vmatprep.mubr.bf16.mxu0 %v2660
        %3349 = vmatmul.mubr.bf16.gmra.mrb[0].mxu0 %v2421
        %v3350 = vpop.f32.mrb[0].mxu0
        %v3351 = vadd.f32 0.0, %v3350
        %v3352 = vpop.f32.mrb[0].mxu0
        %v3353 = vpop.f32.mrb[0].mxu0
        %v3354 = vadd.f32 0.0, %v3353
        %v3355 = vpop.f32.mrb[0].mxu0
        %3356 = vmatprep.mubr.bf16.mxu0 %v2664
        %3357 = vmatmul.mubr.bf16.gmra.mrb[0].mxu0 %v2424
        %v3358 = vpop.f32.mrb[0].mxu0
        %v3359 = vadd.f32 0.0, %v3358
        %v3360 = vpop.f32.mrb[0].mxu0
        %v3361 = vpop.f32.mrb[0].mxu0
        %v3362 = vadd.f32 0.0, %v3361
        %v3363 = vpop.f32.mrb[0].mxu0
        %3364 = vmatprep.mubr.bf16.mxu0 %v2668
        %3365 = vmatmul.mubr.bf16.gmra.mrb[0].mxu0 %v2427
        %v3366 = vpop.f32.mrb[0].mxu0
        %v3367 = vadd.f32 0.0, %v3366
        %v3368 = vpop.f32.mrb[0].mxu0
        %v3369 = vpop.f32.mrb[0].mxu0
        %v3370 = vadd.f32 0.0, %v3369
        %v3371 = vpop.f32.mrb[0].mxu0
        %3372 = vmatprep.mubr.bf16.mxu0 %v2672
        %3373 = vmatmul.mubr.bf16.gmra.mrb[0].mxu0 %v2430
        %v3374 = vpop.f32.mrb[0].mxu0
        %v3375 = vadd.f32 0.0, %v3374
        %v3376 = vpop.f32.mrb[0].mxu0
        %v3377 = vpop.f32.mrb[0].mxu0
        %v3378 = vadd.f32 0.0, %v3377
        %v3379 = vpop.f32.mrb[0].mxu0
        %3380 = vmatprep.mubr.bf16.mxu0 %v2676
        %3381 = vmatmul.mubr.bf16.gmra.mrb[0].mxu0 %v2433
        %v3382 = vpop.f32.mrb[0].mxu0
        %v3383 = vadd.f32 0.0, %v3382
        %v3384 = vpop.f32.mrb[0].mxu0
        %v3385 = vpop.f32.mrb[0].mxu0
        %v3386 = vadd.f32 0.0, %v3385
        %v3387 = vpop.f32.mrb[0].mxu0
        %3388 = vmatprep.mubr.bf16.mxu0 %v2680
        %3389 = vmatmul.mubr.bf16.gmra.mrb[0].mxu0 %v2436
        %v3390 = vpop.f32.mrb[0].mxu0
        %v3391 = vadd.f32 0.0, %v3390
        %v3392 = vpop.f32.mrb[0].mxu0
        %v3393 = vpop.f32.mrb[0].mxu0
        %v3394 = vadd.f32 0.0, %v3393
        %v3395 = vpop.f32.mrb[0].mxu0
        %3396 = vmatprep.mubr.bf16.mxu0 %v2684
        %3397 = vmatmul.mubr.bf16.gmra.mrb[0].mxu0 %v2439
        %v3398 = vpop.f32.mrb[0].mxu0
        %v3399 = vadd.f32 0.0, %v3398
        %v3400 = vpop.f32.mrb[0].mxu0
        %v3401 = vpop.f32.mrb[0].mxu0
        %v3402 = vadd.f32 0.0, %v3401
        %v3403 = vpop.f32.mrb[0].mxu0
        %3404 = vmatprep.mubr.bf16.mxu0 %v2688
        %3405 = vmatmul.mubr.bf16.gmra.mrb[0].mxu0 %v2442
        %v3406 = vpop.f32.mrb[0].mxu0
        %v3407 = vadd.f32 0.0, %v3406
        %v3408 = vpop.f32.mrb[0].mxu0
        %v3409 = vpop.f32.mrb[0].mxu0
        %v3410 = vadd.f32 0.0, %v3409
        %v3411 = vpop.f32.mrb[0].mxu0
        %3412 = vmatprep.mubr.bf16.mxu0 %v2692
        %3413 = vmatmul.mubr.bf16.gmra.mrb[0].mxu0 %v2445
        %v3414 = vpop.f32.mrb[0].mxu0
        %v3415 = vadd.f32 0.0, %v3414
        %v3416 = vpop.f32.mrb[0].mxu0
        %v3417 = vpop.f32.mrb[0].mxu0
        %v3418 = vadd.f32 0.0, %v3417
        %v3419 = vpop.f32.mrb[0].mxu0
        %3420 = vmatprep.mubr.bf16.mxu0 %v2696
        %3421 = vmatmul.mubr.bf16.gmra.mrb[0].mxu0 %v2448
        %v3422 = vpop.f32.mrb[0].mxu0
        %v3423 = vadd.f32 0.0, %v3422
        %v3424 = vpop.f32.mrb[0].mxu0
        %v3425 = vpop.f32.mrb[0].mxu0
        %v3426 = vadd.f32 0.0, %v3425
        %v3427 = vpop.f32.mrb[0].mxu0
        %3428 = vmatprep.mubr.bf16.mxu0 %v2700
        %3429 = vmatmul.mubr.bf16.gmra.mrb[0].mxu0 %v2451
        %v3430 = vpop.f32.mrb[0].mxu0
        %v3431 = vadd.f32 0.0, %v3430
        %v3432 = vpop.f32.mrb[0].mxu0
        %v3433 = vpop.f32.mrb[0].mxu0
        %v3434 = vadd.f32 0.0, %v3433
        %v3435 = vpop.f32.mrb[0].mxu0
        %3436 = vmatprep.mubr.bf16.mxu0 %v2704
        %3437 = vmatmul.mubr.bf16.gmra.mrb[0].mxu0 %v2454
        %v3438 = vpop.f32.mrb[0].mxu0
        %v3439 = vadd.f32 0.0, %v3438
        %v3440 = vpop.f32.mrb[0].mxu0
        %v3441 = vpop.f32.mrb[0].mxu0
        %v3442 = vadd.f32 0.0, %v3441
        %v3443 = vpop.f32.mrb[0].mxu0
        %3444 = vmatprep.mubr.bf16.mxu0 %v2708
        %3445 = vmatmul.mubr.bf16.gmra.mrb[0].mxu0 %v2457
        %v3446 = vpop.f32.mrb[0].mxu0
        %v3447 = vadd.f32 0.0, %v3446
        %v3448 = vpop.f32.mrb[0].mxu0
        %v3449 = vpop.f32.mrb[0].mxu0
        %v3450 = vadd.f32 0.0, %v3449
        %v3451 = vpop.f32.mrb[0].mxu0
        %3452 = vmatprep.mubr.bf16.mxu0 %v2712
        %3453 = vmatmul.mubr.bf16.gmra.mrb[0].mxu0 %v2460
        %v3454 = vpop.f32.mrb[0].mxu0
        %v3455 = vadd.f32 0.0, %v3454
        %v3456 = vpop.f32.mrb[0].mxu0
        %v3457 = vpop.f32.mrb[0].mxu0
        %v3458 = vadd.f32 0.0, %v3457
        %v3459 = vpop.f32.mrb[0].mxu0
        %3460 = vmatprep.mubr.bf16.mxu0 %v2716
        %3461 = vmatmul.mubr.bf16.gmra.mrb[0].mxu0 %v2463
        %v3462 = vpop.f32.mrb[0].mxu0
        %v3463 = vadd.f32 0.0, %v3462
        %v3464 = vpop.f32.mrb[0].mxu0
        %v3465 = vpop.f32.mrb[0].mxu0
        %v3466 = vadd.f32 0.0, %v3465
        %v3467 = vpop.f32.mrb[0].mxu0
        %3468 = vmatprep.mubr.bf16.mxu0 %v2720
        %3469 = vmatmul.mubr.bf16.gmra.mrb[0].mxu0 %v2466
        %v3470 = vpop.f32.mrb[0].mxu0
        %v3471 = vadd.f32 0.0, %v3470
        %v3472 = vpop.f32.mrb[0].mxu0
        %v3473 = vpop.f32.mrb[0].mxu0
        %v3474 = vadd.f32 0.0, %v3473
        %v3475 = vpop.f32.mrb[0].mxu0
        %3476 = vmatprep.mubr.bf16.mxu0 %v2724
        %3477 = vmatmul.mubr.bf16.gmra.mrb[0].mxu0 %v2469
        %v3478 = vpop.f32.mrb[0].mxu0
        %v3479 = vadd.f32 0.0, %v3478
        %v3480 = vpop.f32.mrb[0].mxu0
        %v3481 = vpop.f32.mrb[0].mxu0
        %v3482 = vadd.f32 0.0, %v3481
        %v3483 = vpop.f32.mrb[0].mxu0
        %3484 = vmatprep.mubr.bf16.mxu0 %v2728
        %3485 = vmatmul.mubr.bf16.gmra.mrb[0].mxu0 %v2472
        %v3486 = vpop.f32.mrb[0].mxu0
        %v3487 = vadd.f32 0.0, %v3486
        %v3488 = vpop.f32.mrb[0].mxu0
        %v3489 = vpop.f32.mrb[0].mxu0
        %v3490 = vadd.f32 0.0, %v3489
        %v3491 = vpop.f32.mrb[0].mxu0
        %3492 = vmatprep.mubr.bf16.mxu0 %v2829
        %3493 = vmatmul.mubr.bf16.gmra.mrb[0].mxu0 %v2822
        %v3494 = vpop.f32.mrb[0].mxu0
        %v3495 = vadd.f32 0.0, %v3494
        %v3496 = vpop.f32.mrb[0].mxu0
        %v3497 = vpop.f32.mrb[0].mxu0
        %v3498 = vadd.f32 0.0, %v3497
        %v3499 = vpop.f32.mrb[0].mxu0
        %3500 = vmatprep.mubr.bf16.mxu0 %v2833
        %3501 = vmatmul.mubr.bf16.gmra.mrb[0].mxu0 %v2825
        %v3502 = vpop.f32.mrb[0].mxu0
        %v3503 = vadd.f32 0.0, %v3502
        %v3504 = vpop.f32.mrb[0].mxu0
        %v3505 = vpop.f32.mrb[0].mxu0
        %v3506 = vadd.f32 0.0, %v3505
        %v3507 = vpop.f32.mrb[0].mxu0
        %3508 = vdwg.mxu0
        %v3541 = vunpack.c.l.b16 %v2730
        %v3542 = vunpack.c.l.b16 %v2731
        %v3543 = vunpack.c.l.b16 %v2732
        %v3544 = vunpack.c.l.b16 %v2733
        %v3545 = vunpack.c.l.b16 %v2734
        %v3546 = vunpack.c.l.b16 %v2735
        %v3547 = vunpack.c.l.b16 %v2736
        %v3548 = vunpack.c.l.b16 %v2737
        %v3549 = vunpack.c.l.b16 %v2738
        %v3550 = vunpack.c.l.b16 %v2739
        %v3551 = vunpack.c.l.b16 %v2740
        %v3552 = vunpack.c.l.b16 %v2741
        %v3553 = vunpack.c.l.b16 %v2742
        %v3554 = vunpack.c.l.b16 %v2743
        %v3555 = vunpack.c.l.b16 %v2744
        %v3556 = vunpack.c.l.b16 %v2745
        %v3557 = vunpack.c.l.b16 %v2746
        %v3558 = vunpack.c.l.b16 %v2747
        %v3559 = vunpack.c.l.b16 %v2748
        %v3560 = vunpack.c.l.b16 %v2749
        %v3561 = vunpack.c.l.b16 %v2750
        %v3562 = vunpack.c.l.b16 %v2751
        %v3563 = vunpack.c.l.b16 %v2752
        %v3564 = vunpack.c.l.b16 %v2753
        %v3565 = vunpack.c.l.b16 %v2754
        %v3566 = vunpack.c.l.b16 %v2755
        %v3567 = vunpack.c.l.b16 %v2756
        %v3568 = vunpack.c.l.b16 %v2757
        %v3569 = vunpack.c.l.b16 %v2758
        %v3570 = vunpack.c.l.b16 %v2759
        %v3571 = vunpack.c.l.b16 %v2760
        %v3572 = vunpack.c.l.b16 %v2761
        %v3573 = vpack.c.b16 %v3542, %v3541
        %v3574 = vpack.c.b16 %v3544, %v3543
        %v3575 = vpack.c.b16 %v3546, %v3545
        %v3576 = vpack.c.b16 %v3548, %v3547
        %v3577 = vpack.c.b16 %v3550, %v3549
        %v3578 = vpack.c.b16 %v3552, %v3551
        %v3579 = vpack.c.b16 %v3554, %v3553
        %v3580 = vpack.c.b16 %v3556, %v3555
        %v3581 = vpack.c.b16 %v3558, %v3557
        %v3582 = vpack.c.b16 %v3560, %v3559
        %v3583 = vpack.c.b16 %v3562, %v3561
        %v3584 = vpack.c.b16 %v3564, %v3563
        %v3585 = vpack.c.b16 %v3566, %v3565
        %v3586 = vpack.c.b16 %v3568, %v3567
        %v3587 = vpack.c.b16 %v3570, %v3569
        %v3588 = vpack.c.b16 %v3572, %v3571
        %3605 = vmatprep.subr.bf16.mxu0 0
        %3606 = vmatpush1.bf16.msra.mxu0 %v3573
        %3607 = vmatprep.subr.bf16.mxu0 0
        %3608 = vmatpush1.bf16.msra.mxu0 %v3574
        %3609 = vmatprep.subr.bf16.mxu0 0
        %3610 = vmatpush1.bf16.msra.mxu0 %v3575
        %3611 = vmatprep.subr.bf16.mxu0 0
        %3612 = vmatpush1.bf16.msra.mxu0 %v3576
        %3613 = vmatprep.subr.bf16.mxu0 0
        %3614 = vmatpush1.bf16.msra.mxu0 %v3577
        %3615 = vmatprep.subr.bf16.mxu0 0
        %3616 = vmatpush1.bf16.msra.mxu0 %v3578
        %3617 = vmatprep.subr.bf16.mxu0 0
        %3618 = vmatpush1.bf16.msra.mxu0 %v3579
        %3619 = vmatprep.subr.bf16.mxu0 0
        %3620 = vmatpush1.bf16.msra.mxu0 %v3580
        %3621 = vmatprep.subr.bf16.mxu0 0
        %3622 = vmatpush1.bf16.msra.mxu0 %v3581
        %3623 = vmatprep.subr.bf16.mxu0 0
        %3624 = vmatpush1.bf16.msra.mxu0 %v3582
        %3625 = vmatprep.subr.bf16.mxu0 0
        %3626 = vmatpush1.bf16.msra.mxu0 %v3583
        %3627 = vmatprep.subr.bf16.mxu0 0
        %3628 = vmatpush1.bf16.msra.mxu0 %v3584
        %3629 = vmatprep.subr.bf16.mxu0 0
        %3630 = vmatpush1.bf16.msra.mxu0 %v3585
        %3631 = vmatprep.subr.bf16.mxu0 0
        %3632 = vmatpush1.bf16.msra.mxu0 %v3586
        %3633 = vmatprep.subr.bf16.mxu0 0
        %3634 = vmatpush1.bf16.msra.mxu0 %v3587
        %3635 = vmatprep.subr.bf16.mxu0 0
        %3636 = vmatpush1.bf16.msra.mxu0 %v3588
        %3637 = vmatprep.mubr.bf16.mxu0 %v2476
        %3638 = vmatmul.mubr.bf16.gmra.mrb[0].mxu0 %v2283
        %v3639 = vpop.f32.mrb[0].mxu0
        %v3640 = vadd.f32 %v2999, %v3639
        %v3641 = vpop.f32.mrb[0].mxu0
        %v3642 = vpop.f32.mrb[0].mxu0
        %v3643 = vadd.f32 %v3002, %v3642
        %v3644 = vpop.f32.mrb[0].mxu0
        %3645 = vmatprep.mubr.bf16.mxu0 %v2480
        %3646 = vmatmul.mubr.bf16.gmra.mrb[0].mxu0 %v2286
        %v3647 = vpop.f32.mrb[0].mxu0
        %v3648 = vadd.f32 %v3007, %v3647
        %v3649 = vpop.f32.mrb[0].mxu0
        %v3650 = vpop.f32.mrb[0].mxu0
        %v3651 = vadd.f32 %v3010, %v3650
        %v3652 = vpop.f32.mrb[0].mxu0
        %3653 = vmatprep.mubr.bf16.mxu0 %v2484
        %3654 = vmatmul.mubr.bf16.gmra.mrb[0].mxu0 %v2289
        %v3655 = vpop.f32.mrb[0].mxu0
        %v3656 = vadd.f32 %v3015, %v3655
        %v3657 = vpop.f32.mrb[0].mxu0
        %v3658 = vpop.f32.mrb[0].mxu0
        %v3659 = vadd.f32 %v3018, %v3658
        %v3660 = vpop.f32.mrb[0].mxu0
        %3661 = vmatprep.mubr.bf16.mxu0 %v2488
        %3662 = vmatmul.mubr.bf16.gmra.mrb[0].mxu0 %v2292
        %v3663 = vpop.f32.mrb[0].mxu0
        %v3664 = vadd.f32 %v3023, %v3663
        %v3665 = vpop.f32.mrb[0].mxu0
        %v3666 = vpop.f32.mrb[0].mxu0
        %v3667 = vadd.f32 %v3026, %v3666
        %v3668 = vpop.f32.mrb[0].mxu0
        %3669 = vmatprep.mubr.bf16.mxu0 %v2492
        %3670 = vmatmul.mubr.bf16.gmra.mrb[0].mxu0 %v2295
        %v3671 = vpop.f32.mrb[0].mxu0
        %v3672 = vadd.f32 %v3031, %v3671
        %v3673 = vpop.f32.mrb[0].mxu0
        %v3674 = vpop.f32.mrb[0].mxu0
        %v3675 = vadd.f32 %v3034, %v3674
        %v3676 = vpop.f32.mrb[0].mxu0
        %3677 = vmatprep.mubr.bf16.mxu0 %v2496
        %3678 = vmatmul.mubr.bf16.gmra.mrb[0].mxu0 %v2298
        %v3679 = vpop.f32.mrb[0].mxu0
        %v3680 = vadd.f32 %v3039, %v3679
        %v3681 = vpop.f32.mrb[0].mxu0
        %v3682 = vpop.f32.mrb[0].mxu0
        %v3683 = vadd.f32 %v3042, %v3682
        %v3684 = vpop.f32.mrb[0].mxu0
        %3685 = vmatprep.mubr.bf16.mxu0 %v2500
        %3686 = vmatmul.mubr.bf16.gmra.mrb[0].mxu0 %v2301
        %v3687 = vpop.f32.mrb[0].mxu0
        %v3688 = vadd.f32 %v3047, %v3687
        %v3689 = vpop.f32.mrb[0].mxu0
        %v3690 = vpop.f32.mrb[0].mxu0
        %v3691 = vadd.f32 %v3050, %v3690
        %v3692 = vpop.f32.mrb[0].mxu0
        %3693 = vmatprep.mubr.bf16.mxu0 %v2504
        %3694 = vmatmul.mubr.bf16.gmra.mrb[0].mxu0 %v2304
        %v3695 = vpop.f32.mrb[0].mxu0
        %v3696 = vadd.f32 %v3055, %v3695
        %v3697 = vpop.f32.mrb[0].mxu0
        %v3698 = vpop.f32.mrb[0].mxu0
        %v3699 = vadd.f32 %v3058, %v3698
        %v3700 = vpop.f32.mrb[0].mxu0
        %3701 = vmatprep.mubr.bf16.mxu0 %v2508
        %3702 = vmatmul.mubr.bf16.gmra.mrb[0].mxu0 %v2307
        %v3703 = vpop.f32.mrb[0].mxu0
        %v3704 = vadd.f32 %v3063, %v3703
        %v3705 = vpop.f32.mrb[0].mxu0
        %v3706 = vpop.f32.mrb[0].mxu0
        %v3707 = vadd.f32 %v3066, %v3706
        %v3708 = vpop.f32.mrb[0].mxu0
        %3709 = vmatprep.mubr.bf16.mxu0 %v2512
        %3710 = vmatmul.mubr.bf16.gmra.mrb[0].mxu0 %v2310
        %v3711 = vpop.f32.mrb[0].mxu0
        %v3712 = vadd.f32 %v3071, %v3711
        %v3713 = vpop.f32.mrb[0].mxu0
        %v3714 = vpop.f32.mrb[0].mxu0
        %v3715 = vadd.f32 %v3074, %v3714
        %v3716 = vpop.f32.mrb[0].mxu0
        %3717 = vmatprep.mubr.bf16.mxu0 %v2516
        %3718 = vmatmul.mubr.bf16.gmra.mrb[0].mxu0 %v2313
        %v3719 = vpop.f32.mrb[0].mxu0
        %v3720 = vadd.f32 %v3079, %v3719
        %v3721 = vpop.f32.mrb[0].mxu0
        %v3722 = vpop.f32.mrb[0].mxu0
        %v3723 = vadd.f32 %v3082, %v3722
        %v3724 = vpop.f32.mrb[0].mxu0
        %3725 = vmatprep.mubr.bf16.mxu0 %v2520
        %3726 = vmatmul.mubr.bf16.gmra.mrb[0].mxu0 %v2316
        %v3727 = vpop.f32.mrb[0].mxu0
        %v3728 = vadd.f32 %v3087, %v3727
        %v3729 = vpop.f32.mrb[0].mxu0
        %v3730 = vpop.f32.mrb[0].mxu0
        %v3731 = vadd.f32 %v3090, %v3730
        %v3732 = vpop.f32.mrb[0].mxu0
        %3733 = vmatprep.mubr.bf16.mxu0 %v2524
        %3734 = vmatmul.mubr.bf16.gmra.mrb[0].mxu0 %v2319
        %v3735 = vpop.f32.mrb[0].mxu0
        %v3736 = vadd.f32 %v3095, %v3735
        %v3737 = vpop.f32.mrb[0].mxu0
        %v3738 = vpop.f32.mrb[0].mxu0
        %v3739 = vadd.f32 %v3098, %v3738
        %v3740 = vpop.f32.mrb[0].mxu0
        %3741 = vmatprep.mubr.bf16.mxu0 %v2528
        %3742 = vmatmul.mubr.bf16.gmra.mrb[0].mxu0 %v2322
        %v3743 = vpop.f32.mrb[0].mxu0
        %v3744 = vadd.f32 %v3103, %v3743
        %v3745 = vpop.f32.mrb[0].mxu0
        %v3746 = vpop.f32.mrb[0].mxu0
        %v3747 = vadd.f32 %v3106, %v3746
        %v3748 = vpop.f32.mrb[0].mxu0
        %3749 = vmatprep.mubr.bf16.mxu0 %v2532
        %3750 = vmatmul.mubr.bf16.gmra.mrb[0].mxu0 %v2325
        %v3751 = vpop.f32.mrb[0].mxu0
        %v3752 = vadd.f32 %v3111, %v3751
        %v3753 = vpop.f32.mrb[0].mxu0
        %v3754 = vpop.f32.mrb[0].mxu0
        %v3755 = vadd.f32 %v3114, %v3754
        %v3756 = vpop.f32.mrb[0].mxu0
        %3757 = vmatprep.mubr.bf16.mxu0 %v2536
        %3758 = vmatmul.mubr.bf16.gmra.mrb[0].mxu0 %v2328
        %v3759 = vpop.f32.mrb[0].mxu0
        %v3760 = vadd.f32 %v3119, %v3759
        %v3761 = vpop.f32.mrb[0].mxu0
        %v3762 = vpop.f32.mrb[0].mxu0
        %v3763 = vadd.f32 %v3122, %v3762
        %v3764 = vpop.f32.mrb[0].mxu0
        %3765 = vmatprep.mubr.bf16.mxu0 %v2540
        %3766 = vmatmul.mubr.bf16.gmra.mrb[0].mxu0 %v2331
        %v3767 = vpop.f32.mrb[0].mxu0
        %v3768 = vadd.f32 %v3127, %v3767
        %v3769 = vpop.f32.mrb[0].mxu0
        %v3770 = vpop.f32.mrb[0].mxu0
        %v3771 = vadd.f32 %v3130, %v3770
        %v3772 = vpop.f32.mrb[0].mxu0
        %3773 = vmatprep.mubr.bf16.mxu0 %v2544
        %3774 = vmatmul.mubr.bf16.gmra.mrb[0].mxu0 %v2334
        %v3775 = vpop.f32.mrb[0].mxu0
        %v3776 = vadd.f32 %v3135, %v3775
        %v3777 = vpop.f32.mrb[0].mxu0
        %v3778 = vpop.f32.mrb[0].mxu0
        %v3779 = vadd.f32 %v3138, %v3778
        %v3780 = vpop.f32.mrb[0].mxu0
        %3781 = vmatprep.mubr.bf16.mxu0 %v2548
        %3782 = vmatmul.mubr.bf16.gmra.mrb[0].mxu0 %v2337
        %v3783 = vpop.f32.mrb[0].mxu0
        %v3784 = vadd.f32 %v3143, %v3783
        %v3785 = vpop.f32.mrb[0].mxu0
        %v3786 = vpop.f32.mrb[0].mxu0
        %v3787 = vadd.f32 %v3146, %v3786
        %v3788 = vpop.f32.mrb[0].mxu0
        %3789 = vmatprep.mubr.bf16.mxu0 %v2552
        %3790 = vmatmul.mubr.bf16.gmra.mrb[0].mxu0 %v2340
        %v3791 = vpop.f32.mrb[0].mxu0
        %v3792 = vadd.f32 %v3151, %v3791
        %v3793 = vpop.f32.mrb[0].mxu0
        %v3794 = vpop.f32.mrb[0].mxu0
        %v3795 = vadd.f32 %v3154, %v3794
        %v3796 = vpop.f32.mrb[0].mxu0
        %3797 = vmatprep.mubr.bf16.mxu0 %v2556
        %3798 = vmatmul.mubr.bf16.gmra.mrb[0].mxu0 %v2343
        %v3799 = vpop.f32.mrb[0].mxu0
        %v3800 = vadd.f32 %v3159, %v3799
        %v3801 = vpop.f32.mrb[0].mxu0
        %v3802 = vpop.f32.mrb[0].mxu0
        %v3803 = vadd.f32 %v3162, %v3802
        %v3804 = vpop.f32.mrb[0].mxu0
        %3805 = vmatprep.mubr.bf16.mxu0 %v2560
        %3806 = vmatmul.mubr.bf16.gmra.mrb[0].mxu0 %v2346
        %v3807 = vpop.f32.mrb[0].mxu0
        %v3808 = vadd.f32 %v3167, %v3807
        %v3809 = vpop.f32.mrb[0].mxu0
        %v3810 = vpop.f32.mrb[0].mxu0
        %v3811 = vadd.f32 %v3170, %v3810
        %v3812 = vpop.f32.mrb[0].mxu0
        %3813 = vmatprep.mubr.bf16.mxu0 %v2564
        %3814 = vmatmul.mubr.bf16.gmra.mrb[0].mxu0 %v2349
        %v3815 = vpop.f32.mrb[0].mxu0
        %v3816 = vadd.f32 %v3175, %v3815
        %v3817 = vpop.f32.mrb[0].mxu0
        %v3818 = vpop.f32.mrb[0].mxu0
        %v3819 = vadd.f32 %v3178, %v3818
        %v3820 = vpop.f32.mrb[0].mxu0
        %3821 = vmatprep.mubr.bf16.mxu0 %v2568
        %3822 = vmatmul.mubr.bf16.gmra.mrb[0].mxu0 %v2352
        %v3823 = vpop.f32.mrb[0].mxu0
        %v3824 = vadd.f32 %v3183, %v3823
        %v3825 = vpop.f32.mrb[0].mxu0
        %v3826 = vpop.f32.mrb[0].mxu0
        %v3827 = vadd.f32 %v3186, %v3826
        %v3828 = vpop.f32.mrb[0].mxu0
        %3829 = vmatprep.mubr.bf16.mxu0 %v2572
        %3830 = vmatmul.mubr.bf16.gmra.mrb[0].mxu0 %v2355
        %v3831 = vpop.f32.mrb[0].mxu0
        %v3832 = vadd.f32 %v3191, %v3831
        %v3833 = vpop.f32.mrb[0].mxu0
        %v3834 = vpop.f32.mrb[0].mxu0
        %v3835 = vadd.f32 %v3194, %v3834
        %v3836 = vpop.f32.mrb[0].mxu0
        %3837 = vmatprep.mubr.bf16.mxu0 %v2576
        %3838 = vmatmul.mubr.bf16.gmra.mrb[0].mxu0 %v2358
        %v3839 = vpop.f32.mrb[0].mxu0
        %v3840 = vadd.f32 %v3199, %v3839
        %v3841 = vpop.f32.mrb[0].mxu0
        %v3842 = vpop.f32.mrb[0].mxu0
        %v3843 = vadd.f32 %v3202, %v3842
        %v3844 = vpop.f32.mrb[0].mxu0
        %3845 = vmatprep.mubr.bf16.mxu0 %v2580
        %3846 = vmatmul.mubr.bf16.gmra.mrb[0].mxu0 %v2361
        %v3847 = vpop.f32.mrb[0].mxu0
        %v3848 = vadd.f32 %v3207, %v3847
        %v3849 = vpop.f32.mrb[0].mxu0
        %v3850 = vpop.f32.mrb[0].mxu0
        %v3851 = vadd.f32 %v3210, %v3850
        %v3852 = vpop.f32.mrb[0].mxu0
        %3853 = vmatprep.mubr.bf16.mxu0 %v2584
        %3854 = vmatmul.mubr.bf16.gmra.mrb[0].mxu0 %v2364
        %v3855 = vpop.f32.mrb[0].mxu0
        %v3856 = vadd.f32 %v3215, %v3855
        %v3857 = vpop.f32.mrb[0].mxu0
        %v3858 = vpop.f32.mrb[0].mxu0
        %v3859 = vadd.f32 %v3218, %v3858
        %v3860 = vpop.f32.mrb[0].mxu0
        %3861 = vmatprep.mubr.bf16.mxu0 %v2588
        %3862 = vmatmul.mubr.bf16.gmra.mrb[0].mxu0 %v2367
        %v3863 = vpop.f32.mrb[0].mxu0
        %v3864 = vadd.f32 %v3223, %v3863
        %v3865 = vpop.f32.mrb[0].mxu0
        %v3866 = vpop.f32.mrb[0].mxu0
        %v3867 = vadd.f32 %v3226, %v3866
        %v3868 = vpop.f32.mrb[0].mxu0
        %3869 = vmatprep.mubr.bf16.mxu0 %v2592
        %3870 = vmatmul.mubr.bf16.gmra.mrb[0].mxu0 %v2370
        %v3871 = vpop.f32.mrb[0].mxu0
        %v3872 = vadd.f32 %v3231, %v3871
        %v3873 = vpop.f32.mrb[0].mxu0
        %v3874 = vpop.f32.mrb[0].mxu0
        %v3875 = vadd.f32 %v3234, %v3874
        %v3876 = vpop.f32.mrb[0].mxu0
        %3877 = vmatprep.mubr.bf16.mxu0 %v2596
        %3878 = vmatmul.mubr.bf16.gmra.mrb[0].mxu0 %v2373
        %v3879 = vpop.f32.mrb[0].mxu0
        %v3880 = vadd.f32 %v3239, %v3879
        %v3881 = vpop.f32.mrb[0].mxu0
        %v3882 = vpop.f32.mrb[0].mxu0
        %v3883 = vadd.f32 %v3242, %v3882
        %v3884 = vpop.f32.mrb[0].mxu0
        %3885 = vmatprep.mubr.bf16.mxu0 %v2600
        %3886 = vmatmul.mubr.bf16.gmra.mrb[0].mxu0 %v2376
        %v3887 = vpop.f32.mrb[0].mxu0
        %v3888 = vadd.f32 %v3247, %v3887
        %v3889 = vpop.f32.mrb[0].mxu0
        %v3890 = vpop.f32.mrb[0].mxu0
        %v3891 = vadd.f32 %v3250, %v3890
        %v3892 = vpop.f32.mrb[0].mxu0
        %3893 = vmatprep.mubr.bf16.mxu0 %v2604
        %3894 = vmatmul.mubr.bf16.gmra.mrb[0].mxu0 %v2379
        %v3895 = vpop.f32.mrb[0].mxu0
        %v3896 = vadd.f32 %v3255, %v3895
        %v3897 = vpop.f32.mrb[0].mxu0
        %v3898 = vpop.f32.mrb[0].mxu0
        %v3899 = vadd.f32 %v3258, %v3898
        %v3900 = vpop.f32.mrb[0].mxu0
        %3901 = vmatprep.mubr.bf16.mxu0 %v2608
        %3902 = vmatmul.mubr.bf16.gmra.mrb[0].mxu0 %v2382
        %v3903 = vpop.f32.mrb[0].mxu0
        %v3904 = vadd.f32 %v3263, %v3903
        %v3905 = vpop.f32.mrb[0].mxu0
        %v3906 = vpop.f32.mrb[0].mxu0
        %v3907 = vadd.f32 %v3266, %v3906
        %v3908 = vpop.f32.mrb[0].mxu0
        %3909 = vmatprep.mubr.bf16.mxu0 %v2612
        %3910 = vmatmul.mubr.bf16.gmra.mrb[0].mxu0 %v2385
        %v3911 = vpop.f32.mrb[0].mxu0
        %v3912 = vadd.f32 %v3271, %v3911
        %v3913 = vpop.f32.mrb[0].mxu0
        %v3914 = vpop.f32.mrb[0].mxu0
        %v3915 = vadd.f32 %v3274, %v3914
        %v3916 = vpop.f32.mrb[0].mxu0
        %3917 = vmatprep.mubr.bf16.mxu0 %v2616
        %3918 = vmatmul.mubr.bf16.gmra.mrb[0].mxu0 %v2388
        %v3919 = vpop.f32.mrb[0].mxu0
        %v3920 = vadd.f32 %v3279, %v3919
        %v3921 = vpop.f32.mrb[0].mxu0
        %v3922 = vpop.f32.mrb[0].mxu0
        %v3923 = vadd.f32 %v3282, %v3922
        %v3924 = vpop.f32.mrb[0].mxu0
        %3925 = vmatprep.mubr.bf16.mxu0 %v2620
        %3926 = vmatmul.mubr.bf16.gmra.mrb[0].mxu0 %v2391
        %v3927 = vpop.f32.mrb[0].mxu0
        %v3928 = vadd.f32 %v3287, %v3927
        %v3929 = vpop.f32.mrb[0].mxu0
        %v3930 = vpop.f32.mrb[0].mxu0
        %v3931 = vadd.f32 %v3290, %v3930
        %v3932 = vpop.f32.mrb[0].mxu0
        %3933 = vmatprep.mubr.bf16.mxu0 %v2624
        %3934 = vmatmul.mubr.bf16.gmra.mrb[0].mxu0 %v2394
        %v3935 = vpop.f32.mrb[0].mxu0
        %v3936 = vadd.f32 %v3295, %v3935
        %v3937 = vpop.f32.mrb[0].mxu0
        %v3938 = vpop.f32.mrb[0].mxu0
        %v3939 = vadd.f32 %v3298, %v3938
        %v3940 = vpop.f32.mrb[0].mxu0
        %3941 = vmatprep.mubr.bf16.mxu0 %v2628
        %3942 = vmatmul.mubr.bf16.gmra.mrb[0].mxu0 %v2397
        %v3943 = vpop.f32.mrb[0].mxu0
        %v3944 = vadd.f32 %v3303, %v3943
        %v3945 = vpop.f32.mrb[0].mxu0
        %v3946 = vpop.f32.mrb[0].mxu0
        %v3947 = vadd.f32 %v3306, %v3946
        %v3948 = vpop.f32.mrb[0].mxu0
        %3949 = vmatprep.mubr.bf16.mxu0 %v2632
        %3950 = vmatmul.mubr.bf16.gmra.mrb[0].mxu0 %v2400
        %v3951 = vpop.f32.mrb[0].mxu0
        %v3952 = vadd.f32 %v3311, %v3951
        %v3953 = vpop.f32.mrb[0].mxu0
        %v3954 = vpop.f32.mrb[0].mxu0
        %v3955 = vadd.f32 %v3314, %v3954
        %v3956 = vpop.f32.mrb[0].mxu0
        %3957 = vmatprep.mubr.bf16.mxu0 %v2636
        %3958 = vmatmul.mubr.bf16.gmra.mrb[0].mxu0 %v2403
        %v3959 = vpop.f32.mrb[0].mxu0
        %v3960 = vadd.f32 %v3319, %v3959
        %v3961 = vpop.f32.mrb[0].mxu0
        %v3962 = vpop.f32.mrb[0].mxu0
        %v3963 = vadd.f32 %v3322, %v3962
        %v3964 = vpop.f32.mrb[0].mxu0
        %3965 = vmatprep.mubr.bf16.mxu0 %v2640
        %3966 = vmatmul.mubr.bf16.gmra.mrb[0].mxu0 %v2406
        %v3967 = vpop.f32.mrb[0].mxu0
        %v3968 = vadd.f32 %v3327, %v3967
        %v3969 = vpop.f32.mrb[0].mxu0
        %v3970 = vpop.f32.mrb[0].mxu0
        %v3971 = vadd.f32 %v3330, %v3970
        %v3972 = vpop.f32.mrb[0].mxu0
        %3973 = vmatprep.mubr.bf16.mxu0 %v2644
        %3974 = vmatmul.mubr.bf16.gmra.mrb[0].mxu0 %v2409
        %v3975 = vpop.f32.mrb[0].mxu0
        %v3976 = vadd.f32 %v3335, %v3975
        %v3977 = vpop.f32.mrb[0].mxu0
        %v3978 = vpop.f32.mrb[0].mxu0
        %v3979 = vadd.f32 %v3338, %v3978
        %v3980 = vpop.f32.mrb[0].mxu0
        %3981 = vmatprep.mubr.bf16.mxu0 %v2648
        %3982 = vmatmul.mubr.bf16.gmra.mrb[0].mxu0 %v2412
        %v3983 = vpop.f32.mrb[0].mxu0
        %v3984 = vadd.f32 %v3343, %v3983
        %v3985 = vpop.f32.mrb[0].mxu0
        %v3986 = vpop.f32.mrb[0].mxu0
        %v3987 = vadd.f32 %v3346, %v3986
        %v3988 = vpop.f32.mrb[0].mxu0
        %3989 = vmatprep.mubr.bf16.mxu0 %v2652
        %3990 = vmatmul.mubr.bf16.gmra.mrb[0].mxu0 %v2415
        %v3991 = vpop.f32.mrb[0].mxu0
        %v3992 = vadd.f32 %v3351, %v3991
        %v3993 = vpop.f32.mrb[0].mxu0
        %v3994 = vpop.f32.mrb[0].mxu0
        %v3995 = vadd.f32 %v3354, %v3994
        %v3996 = vpop.f32.mrb[0].mxu0
        %3997 = vmatprep.mubr.bf16.mxu0 %v2656
        %3998 = vmatmul.mubr.bf16.gmra.mrb[0].mxu0 %v2418
        %v3999 = vpop.f32.mrb[0].mxu0
        %v4000 = vadd.f32 %v3359, %v3999
        %v4001 = vpop.f32.mrb[0].mxu0
        %v4002 = vpop.f32.mrb[0].mxu0
        %v4003 = vadd.f32 %v3362, %v4002
        %v4004 = vpop.f32.mrb[0].mxu0
        %4005 = vmatprep.mubr.bf16.mxu0 %v2660
        %4006 = vmatmul.mubr.bf16.gmra.mrb[0].mxu0 %v2421
        %v4007 = vpop.f32.mrb[0].mxu0
        %v4008 = vadd.f32 %v3367, %v4007
        %v4009 = vpop.f32.mrb[0].mxu0
        %v4010 = vpop.f32.mrb[0].mxu0
        %v4011 = vadd.f32 %v3370, %v4010
        %v4012 = vpop.f32.mrb[0].mxu0
        %4013 = vmatprep.mubr.bf16.mxu0 %v2664
        %4014 = vmatmul.mubr.bf16.gmra.mrb[0].mxu0 %v2424
        %v4015 = vpop.f32.mrb[0].mxu0
        %v4016 = vadd.f32 %v3375, %v4015
        %v4017 = vpop.f32.mrb[0].mxu0
        %v4018 = vpop.f32.mrb[0].mxu0
        %v4019 = vadd.f32 %v3378, %v4018
        %v4020 = vpop.f32.mrb[0].mxu0
        %4021 = vmatprep.mubr.bf16.mxu0 %v2668
        %4022 = vmatmul.mubr.bf16.gmra.mrb[0].mxu0 %v2427
        %v4023 = vpop.f32.mrb[0].mxu0
        %v4024 = vadd.f32 %v3383, %v4023
        %v4025 = vpop.f32.mrb[0].mxu0
        %v4026 = vpop.f32.mrb[0].mxu0
        %v4027 = vadd.f32 %v3386, %v4026
        %v4028 = vpop.f32.mrb[0].mxu0
        %4029 = vmatprep.mubr.bf16.mxu0 %v2672
        %4030 = vmatmul.mubr.bf16.gmra.mrb[0].mxu0 %v2430
        %v4031 = vpop.f32.mrb[0].mxu0
        %v4032 = vadd.f32 %v3391, %v4031
        %v4033 = vpop.f32.mrb[0].mxu0
        %v4034 = vpop.f32.mrb[0].mxu0
        %v4035 = vadd.f32 %v3394, %v4034
        %v4036 = vpop.f32.mrb[0].mxu0
        %4037 = vmatprep.mubr.bf16.mxu0 %v2676
        %4038 = vmatmul.mubr.bf16.gmra.mrb[0].mxu0 %v2433
        %v4039 = vpop.f32.mrb[0].mxu0
        %v4040 = vadd.f32 %v3399, %v4039
        %v4041 = vpop.f32.mrb[0].mxu0
        %v4042 = vpop.f32.mrb[0].mxu0
        %v4043 = vadd.f32 %v3402, %v4042
        %v4044 = vpop.f32.mrb[0].mxu0
        %4045 = vmatprep.mubr.bf16.mxu0 %v2680
        %4046 = vmatmul.mubr.bf16.gmra.mrb[0].mxu0 %v2436
        %v4047 = vpop.f32.mrb[0].mxu0
        %v4048 = vadd.f32 %v3407, %v4047
        %v4049 = vpop.f32.mrb[0].mxu0
        %v4050 = vpop.f32.mrb[0].mxu0
        %v4051 = vadd.f32 %v3410, %v4050
        %v4052 = vpop.f32.mrb[0].mxu0
        %4053 = vmatprep.mubr.bf16.mxu0 %v2684
        %4054 = vmatmul.mubr.bf16.gmra.mrb[0].mxu0 %v2439
        %v4055 = vpop.f32.mrb[0].mxu0
        %v4056 = vadd.f32 %v3415, %v4055
        %v4057 = vpop.f32.mrb[0].mxu0
        %v4058 = vpop.f32.mrb[0].mxu0
        %v4059 = vadd.f32 %v3418, %v4058
        %v4060 = vpop.f32.mrb[0].mxu0
        %4061 = vmatprep.mubr.bf16.mxu0 %v2688
        %4062 = vmatmul.mubr.bf16.gmra.mrb[0].mxu0 %v2442
        %v4063 = vpop.f32.mrb[0].mxu0
        %v4064 = vadd.f32 %v3423, %v4063
        %v4065 = vpop.f32.mrb[0].mxu0
        %v4066 = vpop.f32.mrb[0].mxu0
        %v4067 = vadd.f32 %v3426, %v4066
        %v4068 = vpop.f32.mrb[0].mxu0
        %4069 = vmatprep.mubr.bf16.mxu0 %v2692
        %4070 = vmatmul.mubr.bf16.gmra.mrb[0].mxu0 %v2445
        %v4071 = vpop.f32.mrb[0].mxu0
        %v4072 = vadd.f32 %v3431, %v4071
        %v4073 = vpop.f32.mrb[0].mxu0
        %v4074 = vpop.f32.mrb[0].mxu0
        %v4075 = vadd.f32 %v3434, %v4074
        %v4076 = vpop.f32.mrb[0].mxu0
        %4077 = vmatprep.mubr.bf16.mxu0 %v2696
        %4078 = vmatmul.mubr.bf16.gmra.mrb[0].mxu0 %v2448
        %v4079 = vpop.f32.mrb[0].mxu0
        %v4080 = vadd.f32 %v3439, %v4079
        %v4081 = vpop.f32.mrb[0].mxu0
        %v4082 = vpop.f32.mrb[0].mxu0
        %v4083 = vadd.f32 %v3442, %v4082
        %v4084 = vpop.f32.mrb[0].mxu0
        %4085 = vmatprep.mubr.bf16.mxu0 %v2700
        %4086 = vmatmul.mubr.bf16.gmra.mrb[0].mxu0 %v2451
        %v4087 = vpop.f32.mrb[0].mxu0
        %v4088 = vadd.f32 %v3447, %v4087
        %v4089 = vpop.f32.mrb[0].mxu0
        %v4090 = vpop.f32.mrb[0].mxu0
        %v4091 = vadd.f32 %v3450, %v4090
        %v4092 = vpop.f32.mrb[0].mxu0
        %4093 = vmatprep.mubr.bf16.mxu0 %v2704
        %4094 = vmatmul.mubr.bf16.gmra.mrb[0].mxu0 %v2454
        %v4095 = vpop.f32.mrb[0].mxu0
        %v4096 = vadd.f32 %v3455, %v4095
        %v4097 = vpop.f32.mrb[0].mxu0
        %v4098 = vpop.f32.mrb[0].mxu0
        %v4099 = vadd.f32 %v3458, %v4098
        %v4100 = vpop.f32.mrb[0].mxu0
        %4101 = vmatprep.mubr.bf16.mxu0 %v2708
        %4102 = vmatmul.mubr.bf16.gmra.mrb[0].mxu0 %v2457
        %v4103 = vpop.f32.mrb[0].mxu0
        %v4104 = vadd.f32 %v3463, %v4103
        %v4105 = vpop.f32.mrb[0].mxu0
        %v4106 = vpop.f32.mrb[0].mxu0
        %v4107 = vadd.f32 %v3466, %v4106
        %v4108 = vpop.f32.mrb[0].mxu0
        %4109 = vmatprep.mubr.bf16.mxu0 %v2712
        %4110 = vmatmul.mubr.bf16.gmra.mrb[0].mxu0 %v2460
        %v4111 = vpop.f32.mrb[0].mxu0
        %v4112 = vadd.f32 %v3471, %v4111
        %v4113 = vpop.f32.mrb[0].mxu0
        %v4114 = vpop.f32.mrb[0].mxu0
        %v4115 = vadd.f32 %v3474, %v4114
        %v4116 = vpop.f32.mrb[0].mxu0
        %4117 = vmatprep.mubr.bf16.mxu0 %v2716
        %4118 = vmatmul.mubr.bf16.gmra.mrb[0].mxu0 %v2463
        %v4119 = vpop.f32.mrb[0].mxu0
        %v4120 = vadd.f32 %v3479, %v4119
        %v4121 = vpop.f32.mrb[0].mxu0
        %v4122 = vpop.f32.mrb[0].mxu0
        %v4123 = vadd.f32 %v3482, %v4122
        %v4124 = vpop.f32.mrb[0].mxu0
        %4125 = vmatprep.mubr.bf16.mxu0 %v2720
        %4126 = vmatmul.mubr.bf16.gmra.mrb[0].mxu0 %v2466
        %v4127 = vpop.f32.mrb[0].mxu0
        %v4128 = vadd.f32 %v3487, %v4127
        %v4129 = vpop.f32.mrb[0].mxu0
        %v4130 = vpop.f32.mrb[0].mxu0
        %v4131 = vadd.f32 %v3490, %v4130
        %v4132 = vpop.f32.mrb[0].mxu0
        %4133 = vmatprep.mubr.bf16.mxu0 %v2724
        %4134 = vmatmul.mubr.bf16.gmra.mrb[0].mxu0 %v2469
        %v4135 = vpop.f32.mrb[0].mxu0
        %v4136 = vadd.f32 %v3495, %v4135
        %v4137 = vpop.f32.mrb[0].mxu0
        %v4138 = vpop.f32.mrb[0].mxu0
        %v4139 = vadd.f32 %v3498, %v4138
        %v4140 = vpop.f32.mrb[0].mxu0
        %4141 = vmatprep.mubr.bf16.mxu0 %v2728
        %4142 = vmatmul.mubr.bf16.gmra.mrb[0].mxu0 %v2472
        %v4143 = vpop.f32.mrb[0].mxu0
        %v4144 = vadd.f32 %v3503, %v4143
        %v4145 = vpop.f32.mrb[0].mxu0
        %v4146 = vpop.f32.mrb[0].mxu0
        %v4147 = vadd.f32 %v3506, %v4146
        %v4148 = vpop.f32.mrb[0].mxu0
        %4149 = vdwg.mxu0
        %v4154 = vunpack.c.l.b16 %v380
        %v4155 = vunpack.c.l.b16 %v381
        %v4156 = vunpack.c.l.b16 %v382
        %v4157 = vunpack.c.l.b16 %v383
        %v4158 = vpack.c.b16 %v4155, %v4154
        %v4159 = vpack.c.b16 %v4157, %v4156
        %v4161 = vunpack.c.l.b16 %v384
        %v4162 = vpack.c.b16 %v4161, %v4161
        %v4164 = vshrl.u32 %v4158, 16
        %v4166 = vshll.u32 %v4158, 16
        %v4168 = vrot.slane %v4166, 1
        %v4169 = vor.u32 %v4164, %v4168
        %v4171 = vshll.u32 %v4159, 16
        %v4173 = vrot.slane %v4171, 1
        %v4174 = vsel %vm806, %v4169, %v4173
        %v4175 = vshrl.u32 %v4159, 16
        %v4177 = vor.u32 %v4175, %v4173
        %v4179 = vshll.u32 %v4162, 16
        %v4181 = vrot.slane %v4179, 1
        %v4182 = vsel %vm806, %v4177, %v4181
        %4183 = vrot.lane.b32.xlu0 %v4174, 64
        %v4184 = vpop.permute.xlu0 %4183
        %4185 = vrot.lane.b32.xlu0 %v4182, 64
        %v4186 = vpop.permute.xlu0 %4185
        %v4187 = vrot.slane %v4158, 1
        %v4188 = vrot.slane %v4159, 1
        %v4189 = vsel %vm1575, %v4187, %v4188
        %v4190 = vrot.slane %v4162, 1
        %v4191 = vsel %vm1575, %v4188, %v4190
        %v4192 = vrot.slane %v4164, 1
        %v4193 = vrot.slane %v4166, 2
        %v4194 = vor.u32 %v4192, %v4193
        %v4195 = vrot.slane %v4175, 1
        %v4196 = vrot.slane %v4171, 2
        %v4197 = vor.u32 %v4195, %v4196
        %v4198 = vsel %vm1736, %v4194, %v4197
        %v4199 = vshrl.u32 %v4162, 16
        %v4201 = vrot.slane %v4199, 1
        %v4202 = vrot.slane %v4179, 2
        %v4203 = vor.u32 %v4201, %v4202
        %v4204 = vsel %vm1736, %v4197, %v4203
        %4205 = vrot.lane.b32.xlu0 %v4198, 64
        %v4206 = vpop.permute.xlu0 %4205
        %4207 = vrot.lane.b32.xlu0 %v4204, 64
        %v4208 = vpop.permute.xlu0 %4207
        %v4210 = vsel %vm2281, %v4158, %v4184
        %v4213 = vsel %vm2281, %v4159, %v4186
        %v4217 = vsel %vm2281, %v4189, %v4206
        %v4221 = vsel %vm2281, %v4191, %v4208
        %s4223 = scalar_lea.vmem %s210, 256
        %v4224 = vld [vmem:[%s4223] sm:$0xf]
        %v4225 = vld [vmem:[%s4223 + $0x4] sm:$0xf]
        %v4226 = vld [vmem:[%s4223 + $0x8] sm:$0xf]
        %v4227 = vld [vmem:[%s4223 + $0xc] sm:$0xf]
        %v4228 = vld [vmem:[%s4223 + $0x10] sm:$0xf]
        %v4229 = vld [vmem:[%s4223 + $0x14] sm:$0xf]
        %v4230 = vld [vmem:[%s4223 + $0x18] sm:$0xf]
        %v4231 = vld [vmem:[%s4223 + $0x1c] sm:$0xf]
        %v4232 = vld [vmem:[%s4223 + $0x20] sm:$0xf]
        %v4233 = vld [vmem:[%s4223 + $0x24] sm:$0xf]
        %v4234 = vld [vmem:[%s4223 + $0x28] sm:$0xf]
        %v4235 = vld [vmem:[%s4223 + $0x2c] sm:$0xf]
        %v4236 = vld [vmem:[%s4223 + $0x30] sm:$0xf]
        %v4237 = vld [vmem:[%s4223 + $0x34] sm:$0xf]
        %v4238 = vld [vmem:[%s4223 + $0x38] sm:$0xf]
        %v4239 = vld [vmem:[%s4223 + $0x3c] sm:$0xf]
        %v4240 = vld [vmem:[%s4223 + $0x40] sm:$0xf]
        %v4241 = vld [vmem:[%s4223 + $0x44] sm:$0xf]
        %v4242 = vld [vmem:[%s4223 + $0x48] sm:$0xf]
        %v4243 = vld [vmem:[%s4223 + $0x4c] sm:$0xf]
        %v4244 = vld [vmem:[%s4223 + $0x50] sm:$0xf]
        %v4245 = vld [vmem:[%s4223 + $0x54] sm:$0xf]
        %v4246 = vld [vmem:[%s4223 + $0x58] sm:$0xf]
        %v4247 = vld [vmem:[%s4223 + $0x5c] sm:$0xf]
        %v4248 = vld [vmem:[%s4223 + $0x60] sm:$0xf]
        %v4249 = vld [vmem:[%s4223 + $0x64] sm:$0xf]
        %v4250 = vld [vmem:[%s4223 + $0x68] sm:$0xf]
        %v4251 = vld [vmem:[%s4223 + $0x6c] sm:$0xf]
        %v4252 = vld [vmem:[%s4223 + $0x70] sm:$0xf]
        %v4253 = vld [vmem:[%s4223 + $0x74] sm:$0xf]
        %v4254 = vld [vmem:[%s4223 + $0x78] sm:$0xf]
        %v4255 = vld [vmem:[%s4223 + $0x7c] sm:$0xf]
        %v4288 = vunpack.c.l.b16 %v4224
        %v4289 = vunpack.c.l.b16 %v4225
        %v4290 = vunpack.c.l.b16 %v4226
        %v4291 = vunpack.c.l.b16 %v4227
        %v4292 = vunpack.c.l.b16 %v4228
        %v4293 = vunpack.c.l.b16 %v4229
        %v4294 = vunpack.c.l.b16 %v4230
        %v4295 = vunpack.c.l.b16 %v4231
        %v4296 = vunpack.c.l.b16 %v4232
        %v4297 = vunpack.c.l.b16 %v4233
        %v4298 = vunpack.c.l.b16 %v4234
        %v4299 = vunpack.c.l.b16 %v4235
        %v4300 = vunpack.c.l.b16 %v4236
        %v4301 = vunpack.c.l.b16 %v4237
        %v4302 = vunpack.c.l.b16 %v4238
        %v4303 = vunpack.c.l.b16 %v4239
        %v4304 = vunpack.c.l.b16 %v4240
        %v4305 = vunpack.c.l.b16 %v4241
        %v4306 = vunpack.c.l.b16 %v4242
        %v4307 = vunpack.c.l.b16 %v4243
        %v4308 = vunpack.c.l.b16 %v4244
        %v4309 = vunpack.c.l.b16 %v4245
        %v4310 = vunpack.c.l.b16 %v4246
        %v4311 = vunpack.c.l.b16 %v4247
        %v4312 = vunpack.c.l.b16 %v4248
        %v4313 = vunpack.c.l.b16 %v4249
        %v4314 = vunpack.c.l.b16 %v4250
        %v4315 = vunpack.c.l.b16 %v4251
        %v4316 = vunpack.c.l.b16 %v4252
        %v4317 = vunpack.c.l.b16 %v4253
        %v4318 = vunpack.c.l.b16 %v4254
        %v4319 = vunpack.c.l.b16 %v4255
        %v4320 = vpack.c.b16 %v4289, %v4288
        %v4321 = vpack.c.b16 %v4291, %v4290
        %v4322 = vpack.c.b16 %v4293, %v4292
        %v4323 = vpack.c.b16 %v4295, %v4294
        %v4324 = vpack.c.b16 %v4297, %v4296
        %v4325 = vpack.c.b16 %v4299, %v4298
        %v4326 = vpack.c.b16 %v4301, %v4300
        %v4327 = vpack.c.b16 %v4303, %v4302
        %v4328 = vpack.c.b16 %v4305, %v4304
        %v4329 = vpack.c.b16 %v4307, %v4306
        %v4330 = vpack.c.b16 %v4309, %v4308
        %v4331 = vpack.c.b16 %v4311, %v4310
        %v4332 = vpack.c.b16 %v4313, %v4312
        %v4333 = vpack.c.b16 %v4315, %v4314
        %v4334 = vpack.c.b16 %v4317, %v4316
        %v4335 = vpack.c.b16 %v4319, %v4318
        %4352 = vmatprep.subr.bf16.mxu0 0
        %4353 = vmatpush1.bf16.msra.mxu0 %v4320
        %4354 = vmatprep.subr.bf16.mxu0 0
        %4355 = vmatpush1.bf16.msra.mxu0 %v4321
        %4356 = vmatprep.subr.bf16.mxu0 0
        %4357 = vmatpush1.bf16.msra.mxu0 %v4322
        %4358 = vmatprep.subr.bf16.mxu0 0
        %4359 = vmatpush1.bf16.msra.mxu0 %v4323
        %4360 = vmatprep.subr.bf16.mxu0 0
        %4361 = vmatpush1.bf16.msra.mxu0 %v4324
        %4362 = vmatprep.subr.bf16.mxu0 0
        %4363 = vmatpush1.bf16.msra.mxu0 %v4325
        %4364 = vmatprep.subr.bf16.mxu0 0
        %4365 = vmatpush1.bf16.msra.mxu0 %v4326
        %4366 = vmatprep.subr.bf16.mxu0 0
        %4367 = vmatpush1.bf16.msra.mxu0 %v4327
        %4368 = vmatprep.subr.bf16.mxu0 0
        %4369 = vmatpush1.bf16.msra.mxu0 %v4328
        %4370 = vmatprep.subr.bf16.mxu0 0
        %4371 = vmatpush1.bf16.msra.mxu0 %v4329
        %4372 = vmatprep.subr.bf16.mxu0 0
        %4373 = vmatpush1.bf16.msra.mxu0 %v4330
        %4374 = vmatprep.subr.bf16.mxu0 0
        %4375 = vmatpush1.bf16.msra.mxu0 %v4331
        %4376 = vmatprep.subr.bf16.mxu0 0
        %4377 = vmatpush1.bf16.msra.mxu0 %v4332
        %4378 = vmatprep.subr.bf16.mxu0 0
        %4379 = vmatpush1.bf16.msra.mxu0 %v4333
        %4380 = vmatprep.subr.bf16.mxu0 0
        %4381 = vmatpush1.bf16.msra.mxu0 %v4334
        %4382 = vmatprep.subr.bf16.mxu0 0
        %4383 = vmatpush1.bf16.msra.mxu0 %v4335
        %4384 = vmatprep.mubr.bf16.mxu0 %v2492
        %4385 = vmatmul.mubr.bf16.gmra.mrb[0].mxu0 %v2295
        %v4386 = vpop.f32.mrb[0].mxu0
        %v4387 = vadd.f32 0.0, %v4386
        %v4388 = vpop.f32.mrb[0].mxu0
        %v4389 = vpop.f32.mrb[0].mxu0
        %v4390 = vadd.f32 0.0, %v4389
        %v4391 = vpop.f32.mrb[0].mxu0
        %4392 = vmatprep.mubr.bf16.mxu0 %v2496
        %4393 = vmatmul.mubr.bf16.gmra.mrb[0].mxu0 %v2298
        %v4394 = vpop.f32.mrb[0].mxu0
        %v4395 = vadd.f32 0.0, %v4394
        %v4396 = vpop.f32.mrb[0].mxu0
        %v4397 = vpop.f32.mrb[0].mxu0
        %v4398 = vadd.f32 0.0, %v4397
        %v4399 = vpop.f32.mrb[0].mxu0
        %4400 = vmatprep.mubr.bf16.mxu0 %v2500
        %4401 = vmatmul.mubr.bf16.gmra.mrb[0].mxu0 %v2301
        %v4402 = vpop.f32.mrb[0].mxu0
        %v4403 = vadd.f32 0.0, %v4402
        %v4404 = vpop.f32.mrb[0].mxu0
        %v4405 = vpop.f32.mrb[0].mxu0
        %v4406 = vadd.f32 0.0, %v4405
        %v4407 = vpop.f32.mrb[0].mxu0
        %4408 = vmatprep.mubr.bf16.mxu0 %v2504
        %4409 = vmatmul.mubr.bf16.gmra.mrb[0].mxu0 %v2304
        %v4410 = vpop.f32.mrb[0].mxu0
        %v4411 = vadd.f32 0.0, %v4410
        %v4412 = vpop.f32.mrb[0].mxu0
        %v4413 = vpop.f32.mrb[0].mxu0
        %v4414 = vadd.f32 0.0, %v4413
        %v4415 = vpop.f32.mrb[0].mxu0
        %4416 = vmatprep.mubr.bf16.mxu0 %v2508
        %4417 = vmatmul.mubr.bf16.gmra.mrb[0].mxu0 %v2307
        %v4418 = vpop.f32.mrb[0].mxu0
        %v4419 = vadd.f32 0.0, %v4418
        %v4420 = vpop.f32.mrb[0].mxu0
        %v4421 = vpop.f32.mrb[0].mxu0
        %v4422 = vadd.f32 0.0, %v4421
        %v4423 = vpop.f32.mrb[0].mxu0
        %4424 = vmatprep.mubr.bf16.mxu0 %v2512
        %4425 = vmatmul.mubr.bf16.gmra.mrb[0].mxu0 %v2310
        %v4426 = vpop.f32.mrb[0].mxu0
        %v4427 = vadd.f32 0.0, %v4426
        %v4428 = vpop.f32.mrb[0].mxu0
        %v4429 = vpop.f32.mrb[0].mxu0
        %v4430 = vadd.f32 0.0, %v4429
        %v4431 = vpop.f32.mrb[0].mxu0
        %4432 = vmatprep.mubr.bf16.mxu0 %v2516
        %4433 = vmatmul.mubr.bf16.gmra.mrb[0].mxu0 %v2313
        %v4434 = vpop.f32.mrb[0].mxu0
        %v4435 = vadd.f32 0.0, %v4434
        %v4436 = vpop.f32.mrb[0].mxu0
        %v4437 = vpop.f32.mrb[0].mxu0
        %v4438 = vadd.f32 0.0, %v4437
        %v4439 = vpop.f32.mrb[0].mxu0
        %4440 = vmatprep.mubr.bf16.mxu0 %v2520
        %4441 = vmatmul.mubr.bf16.gmra.mrb[0].mxu0 %v2316
        %v4442 = vpop.f32.mrb[0].mxu0
        %v4443 = vadd.f32 0.0, %v4442
        %v4444 = vpop.f32.mrb[0].mxu0
        %v4445 = vpop.f32.mrb[0].mxu0
        %v4446 = vadd.f32 0.0, %v4445
        %v4447 = vpop.f32.mrb[0].mxu0
        %4448 = vmatprep.mubr.bf16.mxu0 %v2524
        %4449 = vmatmul.mubr.bf16.gmra.mrb[0].mxu0 %v2319
        %v4450 = vpop.f32.mrb[0].mxu0
        %v4451 = vadd.f32 0.0, %v4450
        %v4452 = vpop.f32.mrb[0].mxu0
        %v4453 = vpop.f32.mrb[0].mxu0
        %v4454 = vadd.f32 0.0, %v4453
        %v4455 = vpop.f32.mrb[0].mxu0
        %4456 = vmatprep.mubr.bf16.mxu0 %v2528
        %4457 = vmatmul.mubr.bf16.gmra.mrb[0].mxu0 %v2322
        %v4458 = vpop.f32.mrb[0].mxu0
        %v4459 = vadd.f32 0.0, %v4458
        %v4460 = vpop.f32.mrb[0].mxu0
        %v4461 = vpop.f32.mrb[0].mxu0
        %v4462 = vadd.f32 0.0, %v4461
        %v4463 = vpop.f32.mrb[0].mxu0
        %4464 = vmatprep.mubr.bf16.mxu0 %v2532
        %4465 = vmatmul.mubr.bf16.gmra.mrb[0].mxu0 %v2325
        %v4466 = vpop.f32.mrb[0].mxu0
        %v4467 = vadd.f32 0.0, %v4466
        %v4468 = vpop.f32.mrb[0].mxu0
        %v4469 = vpop.f32.mrb[0].mxu0
        %v4470 = vadd.f32 0.0, %v4469
        %v4471 = vpop.f32.mrb[0].mxu0
        %4472 = vmatprep.mubr.bf16.mxu0 %v2536
        %4473 = vmatmul.mubr.bf16.gmra.mrb[0].mxu0 %v2328
        %v4474 = vpop.f32.mrb[0].mxu0
        %v4475 = vadd.f32 0.0, %v4474
        %v4476 = vpop.f32.mrb[0].mxu0
        %v4477 = vpop.f32.mrb[0].mxu0
        %v4478 = vadd.f32 0.0, %v4477
        %v4479 = vpop.f32.mrb[0].mxu0
        %4480 = vmatprep.mubr.bf16.mxu0 %v2540
        %4481 = vmatmul.mubr.bf16.gmra.mrb[0].mxu0 %v2331
        %v4482 = vpop.f32.mrb[0].mxu0
        %v4483 = vadd.f32 0.0, %v4482
        %v4484 = vpop.f32.mrb[0].mxu0
        %v4485 = vpop.f32.mrb[0].mxu0
        %v4486 = vadd.f32 0.0, %v4485
        %v4487 = vpop.f32.mrb[0].mxu0
        %4488 = vmatprep.mubr.bf16.mxu0 %v2544
        %4489 = vmatmul.mubr.bf16.gmra.mrb[0].mxu0 %v2334
        %v4490 = vpop.f32.mrb[0].mxu0
        %v4491 = vadd.f32 0.0, %v4490
        %v4492 = vpop.f32.mrb[0].mxu0
        %v4493 = vpop.f32.mrb[0].mxu0
        %v4494 = vadd.f32 0.0, %v4493
        %v4495 = vpop.f32.mrb[0].mxu0
        %4496 = vmatprep.mubr.bf16.mxu0 %v2548
        %4497 = vmatmul.mubr.bf16.gmra.mrb[0].mxu0 %v2337
        %v4498 = vpop.f32.mrb[0].mxu0
        %v4499 = vadd.f32 0.0, %v4498
        %v4500 = vpop.f32.mrb[0].mxu0
        %v4501 = vpop.f32.mrb[0].mxu0
        %v4502 = vadd.f32 0.0, %v4501
        %v4503 = vpop.f32.mrb[0].mxu0
        %4504 = vmatprep.mubr.bf16.mxu0 %v2552
        %4505 = vmatmul.mubr.bf16.gmra.mrb[0].mxu0 %v2340
        %v4506 = vpop.f32.mrb[0].mxu0
        %v4507 = vadd.f32 0.0, %v4506
        %v4508 = vpop.f32.mrb[0].mxu0
        %v4509 = vpop.f32.mrb[0].mxu0
        %v4510 = vadd.f32 0.0, %v4509
        %v4511 = vpop.f32.mrb[0].mxu0
        %4512 = vmatprep.mubr.bf16.mxu0 %v2556
        %4513 = vmatmul.mubr.bf16.gmra.mrb[0].mxu0 %v2343
        %v4514 = vpop.f32.mrb[0].mxu0
        %v4515 = vadd.f32 0.0, %v4514
        %v4516 = vpop.f32.mrb[0].mxu0
        %v4517 = vpop.f32.mrb[0].mxu0
        %v4518 = vadd.f32 0.0, %v4517
        %v4519 = vpop.f32.mrb[0].mxu0
        %4520 = vmatprep.mubr.bf16.mxu0 %v2560
        %4521 = vmatmul.mubr.bf16.gmra.mrb[0].mxu0 %v2346
        %v4522 = vpop.f32.mrb[0].mxu0
        %v4523 = vadd.f32 0.0, %v4522
        %v4524 = vpop.f32.mrb[0].mxu0
        %v4525 = vpop.f32.mrb[0].mxu0
        %v4526 = vadd.f32 0.0, %v4525
        %v4527 = vpop.f32.mrb[0].mxu0
        %4528 = vmatprep.mubr.bf16.mxu0 %v2564
        %4529 = vmatmul.mubr.bf16.gmra.mrb[0].mxu0 %v2349
        %v4530 = vpop.f32.mrb[0].mxu0
        %v4531 = vadd.f32 0.0, %v4530
        %v4532 = vpop.f32.mrb[0].mxu0
        %v4533 = vpop.f32.mrb[0].mxu0
        %v4534 = vadd.f32 0.0, %v4533
        %v4535 = vpop.f32.mrb[0].mxu0
        %4536 = vmatprep.mubr.bf16.mxu0 %v2568
        %4537 = vmatmul.mubr.bf16.gmra.mrb[0].mxu0 %v2352
        %v4538 = vpop.f32.mrb[0].mxu0
        %v4539 = vadd.f32 0.0, %v4538
        %v4540 = vpop.f32.mrb[0].mxu0
        %v4541 = vpop.f32.mrb[0].mxu0
        %v4542 = vadd.f32 0.0, %v4541
        %v4543 = vpop.f32.mrb[0].mxu0
        %4544 = vmatprep.mubr.bf16.mxu0 %v2572
        %4545 = vmatmul.mubr.bf16.gmra.mrb[0].mxu0 %v2355
        %v4546 = vpop.f32.mrb[0].mxu0
        %v4547 = vadd.f32 0.0, %v4546
        %v4548 = vpop.f32.mrb[0].mxu0
        %v4549 = vpop.f32.mrb[0].mxu0
        %v4550 = vadd.f32 0.0, %v4549
        %v4551 = vpop.f32.mrb[0].mxu0
        %4552 = vmatprep.mubr.bf16.mxu0 %v2576
        %4553 = vmatmul.mubr.bf16.gmra.mrb[0].mxu0 %v2358
        %v4554 = vpop.f32.mrb[0].mxu0
        %v4555 = vadd.f32 0.0, %v4554
        %v4556 = vpop.f32.mrb[0].mxu0
        %v4557 = vpop.f32.mrb[0].mxu0
        %v4558 = vadd.f32 0.0, %v4557
        %v4559 = vpop.f32.mrb[0].mxu0
        %4560 = vmatprep.mubr.bf16.mxu0 %v2580
        %4561 = vmatmul.mubr.bf16.gmra.mrb[0].mxu0 %v2361
        %v4562 = vpop.f32.mrb[0].mxu0
        %v4563 = vadd.f32 0.0, %v4562
        %v4564 = vpop.f32.mrb[0].mxu0
        %v4565 = vpop.f32.mrb[0].mxu0
        %v4566 = vadd.f32 0.0, %v4565
        %v4567 = vpop.f32.mrb[0].mxu0
        %4568 = vmatprep.mubr.bf16.mxu0 %v2584
        %4569 = vmatmul.mubr.bf16.gmra.mrb[0].mxu0 %v2364
        %v4570 = vpop.f32.mrb[0].mxu0
        %v4571 = vadd.f32 0.0, %v4570
        %v4572 = vpop.f32.mrb[0].mxu0
        %v4573 = vpop.f32.mrb[0].mxu0
        %v4574 = vadd.f32 0.0, %v4573
        %v4575 = vpop.f32.mrb[0].mxu0
        %4576 = vmatprep.mubr.bf16.mxu0 %v2588
        %4577 = vmatmul.mubr.bf16.gmra.mrb[0].mxu0 %v2367
        %v4578 = vpop.f32.mrb[0].mxu0
        %v4579 = vadd.f32 0.0, %v4578
        %v4580 = vpop.f32.mrb[0].mxu0
        %v4581 = vpop.f32.mrb[0].mxu0
        %v4582 = vadd.f32 0.0, %v4581
        %v4583 = vpop.f32.mrb[0].mxu0
        %4584 = vmatprep.mubr.bf16.mxu0 %v2592
        %4585 = vmatmul.mubr.bf16.gmra.mrb[0].mxu0 %v2370
        %v4586 = vpop.f32.mrb[0].mxu0
        %v4587 = vadd.f32 0.0, %v4586
        %v4588 = vpop.f32.mrb[0].mxu0
        %v4589 = vpop.f32.mrb[0].mxu0
        %v4590 = vadd.f32 0.0, %v4589
        %v4591 = vpop.f32.mrb[0].mxu0
        %4592 = vmatprep.mubr.bf16.mxu0 %v2596
        %4593 = vmatmul.mubr.bf16.gmra.mrb[0].mxu0 %v2373
        %v4594 = vpop.f32.mrb[0].mxu0
        %v4595 = vadd.f32 0.0, %v4594
        %v4596 = vpop.f32.mrb[0].mxu0
        %v4597 = vpop.f32.mrb[0].mxu0
        %v4598 = vadd.f32 0.0, %v4597
        %v4599 = vpop.f32.mrb[0].mxu0
        %4600 = vmatprep.mubr.bf16.mxu0 %v2600
        %4601 = vmatmul.mubr.bf16.gmra.mrb[0].mxu0 %v2376
        %v4602 = vpop.f32.mrb[0].mxu0
        %v4603 = vadd.f32 0.0, %v4602
        %v4604 = vpop.f32.mrb[0].mxu0
        %v4605 = vpop.f32.mrb[0].mxu0
        %v4606 = vadd.f32 0.0, %v4605
        %v4607 = vpop.f32.mrb[0].mxu0
        %4608 = vmatprep.mubr.bf16.mxu0 %v2604
        %4609 = vmatmul.mubr.bf16.gmra.mrb[0].mxu0 %v2379
        %v4610 = vpop.f32.mrb[0].mxu0
        %v4611 = vadd.f32 0.0, %v4610
        %v4612 = vpop.f32.mrb[0].mxu0
        %v4613 = vpop.f32.mrb[0].mxu0
        %v4614 = vadd.f32 0.0, %v4613
        %v4615 = vpop.f32.mrb[0].mxu0
        %4616 = vmatprep.mubr.bf16.mxu0 %v2608
        %4617 = vmatmul.mubr.bf16.gmra.mrb[0].mxu0 %v2382
        %v4618 = vpop.f32.mrb[0].mxu0
        %v4619 = vadd.f32 0.0, %v4618
        %v4620 = vpop.f32.mrb[0].mxu0
        %v4621 = vpop.f32.mrb[0].mxu0
        %v4622 = vadd.f32 0.0, %v4621
        %v4623 = vpop.f32.mrb[0].mxu0
        %4624 = vmatprep.mubr.bf16.mxu0 %v2612
        %4625 = vmatmul.mubr.bf16.gmra.mrb[0].mxu0 %v2385
        %v4626 = vpop.f32.mrb[0].mxu0
        %v4627 = vadd.f32 0.0, %v4626
        %v4628 = vpop.f32.mrb[0].mxu0
        %v4629 = vpop.f32.mrb[0].mxu0
        %v4630 = vadd.f32 0.0, %v4629
        %v4631 = vpop.f32.mrb[0].mxu0
        %4632 = vmatprep.mubr.bf16.mxu0 %v2616
        %4633 = vmatmul.mubr.bf16.gmra.mrb[0].mxu0 %v2388
        %v4634 = vpop.f32.mrb[0].mxu0
        %v4635 = vadd.f32 0.0, %v4634
        %v4636 = vpop.f32.mrb[0].mxu0
        %v4637 = vpop.f32.mrb[0].mxu0
        %v4638 = vadd.f32 0.0, %v4637
        %v4639 = vpop.f32.mrb[0].mxu0
        %4640 = vmatprep.mubr.bf16.mxu0 %v2620
        %4641 = vmatmul.mubr.bf16.gmra.mrb[0].mxu0 %v2391
        %v4642 = vpop.f32.mrb[0].mxu0
        %v4643 = vadd.f32 0.0, %v4642
        %v4644 = vpop.f32.mrb[0].mxu0
        %v4645 = vpop.f32.mrb[0].mxu0
        %v4646 = vadd.f32 0.0, %v4645
        %v4647 = vpop.f32.mrb[0].mxu0
        %4648 = vmatprep.mubr.bf16.mxu0 %v2624
        %4649 = vmatmul.mubr.bf16.gmra.mrb[0].mxu0 %v2394
        %v4650 = vpop.f32.mrb[0].mxu0
        %v4651 = vadd.f32 0.0, %v4650
        %v4652 = vpop.f32.mrb[0].mxu0
        %v4653 = vpop.f32.mrb[0].mxu0
        %v4654 = vadd.f32 0.0, %v4653
        %v4655 = vpop.f32.mrb[0].mxu0
        %4656 = vmatprep.mubr.bf16.mxu0 %v2628
        %4657 = vmatmul.mubr.bf16.gmra.mrb[0].mxu0 %v2397
        %v4658 = vpop.f32.mrb[0].mxu0
        %v4659 = vadd.f32 0.0, %v4658
        %v4660 = vpop.f32.mrb[0].mxu0
        %v4661 = vpop.f32.mrb[0].mxu0
        %v4662 = vadd.f32 0.0, %v4661
        %v4663 = vpop.f32.mrb[0].mxu0
        %4664 = vmatprep.mubr.bf16.mxu0 %v2632
        %4665 = vmatmul.mubr.bf16.gmra.mrb[0].mxu0 %v2400
        %v4666 = vpop.f32.mrb[0].mxu0
        %v4667 = vadd.f32 0.0, %v4666
        %v4668 = vpop.f32.mrb[0].mxu0
        %v4669 = vpop.f32.mrb[0].mxu0
        %v4670 = vadd.f32 0.0, %v4669
        %v4671 = vpop.f32.mrb[0].mxu0
        %4672 = vmatprep.mubr.bf16.mxu0 %v2636
        %4673 = vmatmul.mubr.bf16.gmra.mrb[0].mxu0 %v2403
        %v4674 = vpop.f32.mrb[0].mxu0
        %v4675 = vadd.f32 0.0, %v4674
        %v4676 = vpop.f32.mrb[0].mxu0
        %v4677 = vpop.f32.mrb[0].mxu0
        %v4678 = vadd.f32 0.0, %v4677
        %v4679 = vpop.f32.mrb[0].mxu0
        %4680 = vmatprep.mubr.bf16.mxu0 %v2640
        %4681 = vmatmul.mubr.bf16.gmra.mrb[0].mxu0 %v2406
        %v4682 = vpop.f32.mrb[0].mxu0
        %v4683 = vadd.f32 0.0, %v4682
        %v4684 = vpop.f32.mrb[0].mxu0
        %v4685 = vpop.f32.mrb[0].mxu0
        %v4686 = vadd.f32 0.0, %v4685
        %v4687 = vpop.f32.mrb[0].mxu0
        %4688 = vmatprep.mubr.bf16.mxu0 %v2644
        %4689 = vmatmul.mubr.bf16.gmra.mrb[0].mxu0 %v2409
        %v4690 = vpop.f32.mrb[0].mxu0
        %v4691 = vadd.f32 0.0, %v4690
        %v4692 = vpop.f32.mrb[0].mxu0
        %v4693 = vpop.f32.mrb[0].mxu0
        %v4694 = vadd.f32 0.0, %v4693
        %v4695 = vpop.f32.mrb[0].mxu0
        %4696 = vmatprep.mubr.bf16.mxu0 %v2648
        %4697 = vmatmul.mubr.bf16.gmra.mrb[0].mxu0 %v2412
        %v4698 = vpop.f32.mrb[0].mxu0
        %v4699 = vadd.f32 0.0, %v4698
        %v4700 = vpop.f32.mrb[0].mxu0
        %v4701 = vpop.f32.mrb[0].mxu0
        %v4702 = vadd.f32 0.0, %v4701
        %v4703 = vpop.f32.mrb[0].mxu0
        %4704 = vmatprep.mubr.bf16.mxu0 %v2652
        %4705 = vmatmul.mubr.bf16.gmra.mrb[0].mxu0 %v2415
        %v4706 = vpop.f32.mrb[0].mxu0
        %v4707 = vadd.f32 0.0, %v4706
        %v4708 = vpop.f32.mrb[0].mxu0
        %v4709 = vpop.f32.mrb[0].mxu0
        %v4710 = vadd.f32 0.0, %v4709
        %v4711 = vpop.f32.mrb[0].mxu0
        %4712 = vmatprep.mubr.bf16.mxu0 %v2656
        %4713 = vmatmul.mubr.bf16.gmra.mrb[0].mxu0 %v2418
        %v4714 = vpop.f32.mrb[0].mxu0
        %v4715 = vadd.f32 0.0, %v4714
        %v4716 = vpop.f32.mrb[0].mxu0
        %v4717 = vpop.f32.mrb[0].mxu0
        %v4718 = vadd.f32 0.0, %v4717
        %v4719 = vpop.f32.mrb[0].mxu0
        %4720 = vmatprep.mubr.bf16.mxu0 %v2660
        %4721 = vmatmul.mubr.bf16.gmra.mrb[0].mxu0 %v2421
        %v4722 = vpop.f32.mrb[0].mxu0
        %v4723 = vadd.f32 0.0, %v4722
        %v4724 = vpop.f32.mrb[0].mxu0
        %v4725 = vpop.f32.mrb[0].mxu0
        %v4726 = vadd.f32 0.0, %v4725
        %v4727 = vpop.f32.mrb[0].mxu0
        %4728 = vmatprep.mubr.bf16.mxu0 %v2664
        %4729 = vmatmul.mubr.bf16.gmra.mrb[0].mxu0 %v2424
        %v4730 = vpop.f32.mrb[0].mxu0
        %v4731 = vadd.f32 0.0, %v4730
        %v4732 = vpop.f32.mrb[0].mxu0
        %v4733 = vpop.f32.mrb[0].mxu0
        %v4734 = vadd.f32 0.0, %v4733
        %v4735 = vpop.f32.mrb[0].mxu0
        %4736 = vmatprep.mubr.bf16.mxu0 %v2668
        %4737 = vmatmul.mubr.bf16.gmra.mrb[0].mxu0 %v2427
        %v4738 = vpop.f32.mrb[0].mxu0
        %v4739 = vadd.f32 0.0, %v4738
        %v4740 = vpop.f32.mrb[0].mxu0
        %v4741 = vpop.f32.mrb[0].mxu0
        %v4742 = vadd.f32 0.0, %v4741
        %v4743 = vpop.f32.mrb[0].mxu0
        %4744 = vmatprep.mubr.bf16.mxu0 %v2672
        %4745 = vmatmul.mubr.bf16.gmra.mrb[0].mxu0 %v2430
        %v4746 = vpop.f32.mrb[0].mxu0
        %v4747 = vadd.f32 0.0, %v4746
        %v4748 = vpop.f32.mrb[0].mxu0
        %v4749 = vpop.f32.mrb[0].mxu0
        %v4750 = vadd.f32 0.0, %v4749
        %v4751 = vpop.f32.mrb[0].mxu0
        %4752 = vmatprep.mubr.bf16.mxu0 %v2676
        %4753 = vmatmul.mubr.bf16.gmra.mrb[0].mxu0 %v2433
        %v4754 = vpop.f32.mrb[0].mxu0
        %v4755 = vadd.f32 0.0, %v4754
        %v4756 = vpop.f32.mrb[0].mxu0
        %v4757 = vpop.f32.mrb[0].mxu0
        %v4758 = vadd.f32 0.0, %v4757
        %v4759 = vpop.f32.mrb[0].mxu0
        %4760 = vmatprep.mubr.bf16.mxu0 %v2680
        %4761 = vmatmul.mubr.bf16.gmra.mrb[0].mxu0 %v2436
        %v4762 = vpop.f32.mrb[0].mxu0
        %v4763 = vadd.f32 0.0, %v4762
        %v4764 = vpop.f32.mrb[0].mxu0
        %v4765 = vpop.f32.mrb[0].mxu0
        %v4766 = vadd.f32 0.0, %v4765
        %v4767 = vpop.f32.mrb[0].mxu0
        %4768 = vmatprep.mubr.bf16.mxu0 %v2684
        %4769 = vmatmul.mubr.bf16.gmra.mrb[0].mxu0 %v2439
        %v4770 = vpop.f32.mrb[0].mxu0
        %v4771 = vadd.f32 0.0, %v4770
        %v4772 = vpop.f32.mrb[0].mxu0
        %v4773 = vpop.f32.mrb[0].mxu0
        %v4774 = vadd.f32 0.0, %v4773
        %v4775 = vpop.f32.mrb[0].mxu0
        %4776 = vmatprep.mubr.bf16.mxu0 %v2688
        %4777 = vmatmul.mubr.bf16.gmra.mrb[0].mxu0 %v2442
        %v4778 = vpop.f32.mrb[0].mxu0
        %v4779 = vadd.f32 0.0, %v4778
        %v4780 = vpop.f32.mrb[0].mxu0
        %v4781 = vpop.f32.mrb[0].mxu0
        %v4782 = vadd.f32 0.0, %v4781
        %v4783 = vpop.f32.mrb[0].mxu0
        %4784 = vmatprep.mubr.bf16.mxu0 %v2692
        %4785 = vmatmul.mubr.bf16.gmra.mrb[0].mxu0 %v2445
        %v4786 = vpop.f32.mrb[0].mxu0
        %v4787 = vadd.f32 0.0, %v4786
        %v4788 = vpop.f32.mrb[0].mxu0
        %v4789 = vpop.f32.mrb[0].mxu0
        %v4790 = vadd.f32 0.0, %v4789
        %v4791 = vpop.f32.mrb[0].mxu0
        %4792 = vmatprep.mubr.bf16.mxu0 %v2696
        %4793 = vmatmul.mubr.bf16.gmra.mrb[0].mxu0 %v2448
        %v4794 = vpop.f32.mrb[0].mxu0
        %v4795 = vadd.f32 0.0, %v4794
        %v4796 = vpop.f32.mrb[0].mxu0
        %v4797 = vpop.f32.mrb[0].mxu0
        %v4798 = vadd.f32 0.0, %v4797
        %v4799 = vpop.f32.mrb[0].mxu0
        %4800 = vmatprep.mubr.bf16.mxu0 %v2700
        %4801 = vmatmul.mubr.bf16.gmra.mrb[0].mxu0 %v2451
        %v4802 = vpop.f32.mrb[0].mxu0
        %v4803 = vadd.f32 0.0, %v4802
        %v4804 = vpop.f32.mrb[0].mxu0
        %v4805 = vpop.f32.mrb[0].mxu0
        %v4806 = vadd.f32 0.0, %v4805
        %v4807 = vpop.f32.mrb[0].mxu0
        %4808 = vmatprep.mubr.bf16.mxu0 %v2704
        %4809 = vmatmul.mubr.bf16.gmra.mrb[0].mxu0 %v2454
        %v4810 = vpop.f32.mrb[0].mxu0
        %v4811 = vadd.f32 0.0, %v4810
        %v4812 = vpop.f32.mrb[0].mxu0
        %v4813 = vpop.f32.mrb[0].mxu0
        %v4814 = vadd.f32 0.0, %v4813
        %v4815 = vpop.f32.mrb[0].mxu0
        %4816 = vmatprep.mubr.bf16.mxu0 %v2708
        %4817 = vmatmul.mubr.bf16.gmra.mrb[0].mxu0 %v2457
        %v4818 = vpop.f32.mrb[0].mxu0
        %v4819 = vadd.f32 0.0, %v4818
        %v4820 = vpop.f32.mrb[0].mxu0
        %v4821 = vpop.f32.mrb[0].mxu0
        %v4822 = vadd.f32 0.0, %v4821
        %v4823 = vpop.f32.mrb[0].mxu0
        %4824 = vmatprep.mubr.bf16.mxu0 %v2712
        %4825 = vmatmul.mubr.bf16.gmra.mrb[0].mxu0 %v2460
        %v4826 = vpop.f32.mrb[0].mxu0
        %v4827 = vadd.f32 0.0, %v4826
        %v4828 = vpop.f32.mrb[0].mxu0
        %v4829 = vpop.f32.mrb[0].mxu0
        %v4830 = vadd.f32 0.0, %v4829
        %v4831 = vpop.f32.mrb[0].mxu0
        %4832 = vmatprep.mubr.bf16.mxu0 %v2716
        %4833 = vmatmul.mubr.bf16.gmra.mrb[0].mxu0 %v2463
        %v4834 = vpop.f32.mrb[0].mxu0
        %v4835 = vadd.f32 0.0, %v4834
        %v4836 = vpop.f32.mrb[0].mxu0
        %v4837 = vpop.f32.mrb[0].mxu0
        %v4838 = vadd.f32 0.0, %v4837
        %v4839 = vpop.f32.mrb[0].mxu0
        %4840 = vmatprep.mubr.bf16.mxu0 %v2720
        %4841 = vmatmul.mubr.bf16.gmra.mrb[0].mxu0 %v2466
        %v4842 = vpop.f32.mrb[0].mxu0
        %v4843 = vadd.f32 0.0, %v4842
        %v4844 = vpop.f32.mrb[0].mxu0
        %v4845 = vpop.f32.mrb[0].mxu0
        %v4846 = vadd.f32 0.0, %v4845
        %v4847 = vpop.f32.mrb[0].mxu0
        %4848 = vmatprep.mubr.bf16.mxu0 %v2724
        %4849 = vmatmul.mubr.bf16.gmra.mrb[0].mxu0 %v2469
        %v4850 = vpop.f32.mrb[0].mxu0
        %v4851 = vadd.f32 0.0, %v4850
        %v4852 = vpop.f32.mrb[0].mxu0
        %v4853 = vpop.f32.mrb[0].mxu0
        %v4854 = vadd.f32 0.0, %v4853
        %v4855 = vpop.f32.mrb[0].mxu0
        %4856 = vmatprep.mubr.bf16.mxu0 %v2728
        %4857 = vmatmul.mubr.bf16.gmra.mrb[0].mxu0 %v2472
        %v4858 = vpop.f32.mrb[0].mxu0
        %v4859 = vadd.f32 0.0, %v4858
        %v4860 = vpop.f32.mrb[0].mxu0
        %v4861 = vpop.f32.mrb[0].mxu0
        %v4862 = vadd.f32 0.0, %v4861
        %v4863 = vpop.f32.mrb[0].mxu0
        %4864 = vmatprep.mubr.bf16.mxu0 %v2829
        %4865 = vmatmul.mubr.bf16.gmra.mrb[0].mxu0 %v2822
        %v4866 = vpop.f32.mrb[0].mxu0
        %v4867 = vadd.f32 0.0, %v4866
        %v4868 = vpop.f32.mrb[0].mxu0
        %v4869 = vpop.f32.mrb[0].mxu0
        %v4870 = vadd.f32 0.0, %v4869
        %v4871 = vpop.f32.mrb[0].mxu0
        %4872 = vmatprep.mubr.bf16.mxu0 %v2833
        %4873 = vmatmul.mubr.bf16.gmra.mrb[0].mxu0 %v2825
        %v4874 = vpop.f32.mrb[0].mxu0
        %v4875 = vadd.f32 0.0, %v4874
        %v4876 = vpop.f32.mrb[0].mxu0
        %v4877 = vpop.f32.mrb[0].mxu0
        %v4878 = vadd.f32 0.0, %v4877
        %v4879 = vpop.f32.mrb[0].mxu0
        %4880 = vmatprep.mubr.bf16.mxu0 %v4217
        %4881 = vmatmul.mubr.bf16.gmra.mrb[0].mxu0 %v4210
        %v4882 = vpop.f32.mrb[0].mxu0
        %v4883 = vadd.f32 0.0, %v4882
        %v4884 = vpop.f32.mrb[0].mxu0
        %v4885 = vpop.f32.mrb[0].mxu0
        %v4886 = vadd.f32 0.0, %v4885
        %v4887 = vpop.f32.mrb[0].mxu0
        %4888 = vmatprep.mubr.bf16.mxu0 %v4221
        %4889 = vmatmul.mubr.bf16.gmra.mrb[0].mxu0 %v4213
        %v4890 = vpop.f32.mrb[0].mxu0
        %v4891 = vadd.f32 0.0, %v4890
        %v4892 = vpop.f32.mrb[0].mxu0
        %v4893 = vpop.f32.mrb[0].mxu0
        %v4894 = vadd.f32 0.0, %v4893
        %v4895 = vpop.f32.mrb[0].mxu0
        %4896 = vdwg.mxu0
        %v4897 = vadd.f32 %v3640, %v4387
        %v4898 = vadd.f32 %v3643, %v4390
        %v4899 = vadd.f32 %v3648, %v4395
        %v4900 = vadd.f32 %v3651, %v4398
        %v4901 = vadd.f32 %v3656, %v4403
        %v4902 = vadd.f32 %v3659, %v4406
        %v4903 = vadd.f32 %v3664, %v4411
        %v4904 = vadd.f32 %v3667, %v4414
        %v4905 = vadd.f32 %v3672, %v4419
        %v4906 = vadd.f32 %v3675, %v4422
        %v4907 = vadd.f32 %v3680, %v4427
        %v4908 = vadd.f32 %v3683, %v4430
        %v4909 = vadd.f32 %v3688, %v4435
        %v4910 = vadd.f32 %v3691, %v4438
        %v4911 = vadd.f32 %v3696, %v4443
        %v4912 = vadd.f32 %v3699, %v4446
        %v4913 = vadd.f32 %v3704, %v4451
        %v4914 = vadd.f32 %v3707, %v4454
        %v4915 = vadd.f32 %v3712, %v4459
        %v4916 = vadd.f32 %v3715, %v4462
        %v4917 = vadd.f32 %v3720, %v4467
        %v4918 = vadd.f32 %v3723, %v4470
        %v4919 = vadd.f32 %v3728, %v4475
        %v4920 = vadd.f32 %v3731, %v4478
        %v4921 = vadd.f32 %v3736, %v4483
        %v4922 = vadd.f32 %v3739, %v4486
        %v4923 = vadd.f32 %v3744, %v4491
        %v4924 = vadd.f32 %v3747, %v4494
        %v4925 = vadd.f32 %v3752, %v4499
        %v4926 = vadd.f32 %v3755, %v4502
        %v4927 = vadd.f32 %v3760, %v4507
        %v4928 = vadd.f32 %v3763, %v4510
        %v4929 = vadd.f32 %v3768, %v4515
        %v4930 = vadd.f32 %v3771, %v4518
        %v4931 = vadd.f32 %v3776, %v4523
        %v4932 = vadd.f32 %v3779, %v4526
        %v4933 = vadd.f32 %v3784, %v4531
        %v4934 = vadd.f32 %v3787, %v4534
        %v4935 = vadd.f32 %v3792, %v4539
        %v4936 = vadd.f32 %v3795, %v4542
        %v4937 = vadd.f32 %v3800, %v4547
        %v4938 = vadd.f32 %v3803, %v4550
        %v4939 = vadd.f32 %v3808, %v4555
        %v4940 = vadd.f32 %v3811, %v4558
        %v4941 = vadd.f32 %v3816, %v4563
        %v4942 = vadd.f32 %v3819, %v4566
        %v4943 = vadd.f32 %v3824, %v4571
        %v4944 = vadd.f32 %v3827, %v4574
        %v4945 = vadd.f32 %v3832, %v4579
        %v4946 = vadd.f32 %v3835, %v4582
        %v4947 = vadd.f32 %v3840, %v4587
        %v4948 = vadd.f32 %v3843, %v4590
        %v4949 = vadd.f32 %v3848, %v4595
        %v4950 = vadd.f32 %v3851, %v4598
        %v4951 = vadd.f32 %v3856, %v4603
        %v4952 = vadd.f32 %v3859, %v4606
        %v4953 = vadd.f32 %v3864, %v4611
        %v4954 = vadd.f32 %v3867, %v4614
        %v4955 = vadd.f32 %v3872, %v4619
        %v4956 = vadd.f32 %v3875, %v4622
        %v4957 = vadd.f32 %v3880, %v4627
        %v4958 = vadd.f32 %v3883, %v4630
        %v4959 = vadd.f32 %v3888, %v4635
        %v4960 = vadd.f32 %v3891, %v4638
        %v4961 = vadd.f32 %v3896, %v4643
        %v4962 = vadd.f32 %v3899, %v4646
        %v4963 = vadd.f32 %v3904, %v4651
        %v4964 = vadd.f32 %v3907, %v4654
        %v4965 = vadd.f32 %v3912, %v4659
        %v4966 = vadd.f32 %v3915, %v4662
        %v4967 = vadd.f32 %v3920, %v4667
        %v4968 = vadd.f32 %v3923, %v4670
        %v4969 = vadd.f32 %v3928, %v4675
        %v4970 = vadd.f32 %v3931, %v4678
        %v4971 = vadd.f32 %v3936, %v4683
        %v4972 = vadd.f32 %v3939, %v4686
        %v4973 = vadd.f32 %v3944, %v4691
        %v4974 = vadd.f32 %v3947, %v4694
        %v4975 = vadd.f32 %v3952, %v4699
        %v4976 = vadd.f32 %v3955, %v4702
        %v4977 = vadd.f32 %v3960, %v4707
        %v4978 = vadd.f32 %v3963, %v4710
        %v4979 = vadd.f32 %v3968, %v4715
        %v4980 = vadd.f32 %v3971, %v4718
        %v4981 = vadd.f32 %v3976, %v4723
        %v4982 = vadd.f32 %v3979, %v4726
        %v4983 = vadd.f32 %v3984, %v4731
        %v4984 = vadd.f32 %v3987, %v4734
        %v4985 = vadd.f32 %v3992, %v4739
        %v4986 = vadd.f32 %v3995, %v4742
        %v4987 = vadd.f32 %v4000, %v4747
        %v4988 = vadd.f32 %v4003, %v4750
        %v4989 = vadd.f32 %v4008, %v4755
        %v4990 = vadd.f32 %v4011, %v4758
        %v4991 = vadd.f32 %v4016, %v4763
        %v4992 = vadd.f32 %v4019, %v4766
        %v4993 = vadd.f32 %v4024, %v4771
        %v4994 = vadd.f32 %v4027, %v4774
        %v4995 = vadd.f32 %v4032, %v4779
        %v4996 = vadd.f32 %v4035, %v4782
        %v4997 = vadd.f32 %v4040, %v4787
        %v4998 = vadd.f32 %v4043, %v4790
        %v4999 = vadd.f32 %v4048, %v4795
        %v5000 = vadd.f32 %v4051, %v4798
        %v5001 = vadd.f32 %v4056, %v4803
        %v5002 = vadd.f32 %v4059, %v4806
        %v5003 = vadd.f32 %v4064, %v4811
        %v5004 = vadd.f32 %v4067, %v4814
        %v5005 = vadd.f32 %v4072, %v4819
        %v5006 = vadd.f32 %v4075, %v4822
        %v5007 = vadd.f32 %v4080, %v4827
        %v5008 = vadd.f32 %v4083, %v4830
        %v5009 = vadd.f32 %v4088, %v4835
        %v5010 = vadd.f32 %v4091, %v4838
        %v5011 = vadd.f32 %v4096, %v4843
        %v5012 = vadd.f32 %v4099, %v4846
        %v5013 = vadd.f32 %v4104, %v4851
        %v5014 = vadd.f32 %v4107, %v4854
        %v5015 = vadd.f32 %v4112, %v4859
        %v5016 = vadd.f32 %v4115, %v4862
        %v5017 = vadd.f32 %v4120, %v4867
        %v5018 = vadd.f32 %v4123, %v4870
        %v5019 = vadd.f32 %v4128, %v4875
        %v5020 = vadd.f32 %v4131, %v4878
        %v5021 = vadd.f32 %v4136, %v4883
        %v5022 = vadd.f32 %v4139, %v4886
        %v5023 = vadd.f32 %v4144, %v4891
        %v5024 = vadd.f32 %v4147, %v4894
        %v5029 = vunpack.c.l.b16 %v385
        %v5030 = vunpack.c.l.b16 %v386
        %v5031 = vunpack.c.l.b16 %v387
        %v5032 = vunpack.c.l.b16 %v388
        %v5033 = vpack.c.b16 %v5030, %v5029
        %v5034 = vpack.c.b16 %v5032, %v5031
        %v5036 = vunpack.c.l.b16 %v389
        %v5037 = vpack.c.b16 %v5036, %v5036
        %v5039 = vshrl.u32 %v5033, 16
        %v5041 = vshll.u32 %v5033, 16
        %v5043 = vrot.slane %v5041, 1
        %v5044 = vor.u32 %v5039, %v5043
        %v5046 = vshll.u32 %v5034, 16
        %v5048 = vrot.slane %v5046, 1
        %v5049 = vsel %vm806, %v5044, %v5048
        %v5050 = vshrl.u32 %v5034, 16
        %v5052 = vor.u32 %v5050, %v5048
        %v5054 = vshll.u32 %v5037, 16
        %v5056 = vrot.slane %v5054, 1
        %v5057 = vsel %vm806, %v5052, %v5056
        %5058 = vrot.lane.b32.xlu0 %v5049, 64
        %v5059 = vpop.permute.xlu0 %5058
        %5060 = vrot.lane.b32.xlu0 %v5057, 64
        %v5061 = vpop.permute.xlu0 %5060
        %v5062 = vrot.slane %v5033, 1
        %v5063 = vrot.slane %v5034, 1
        %v5064 = vsel %vm1575, %v5062, %v5063
        %v5065 = vrot.slane %v5037, 1
        %v5066 = vsel %vm1575, %v5063, %v5065
        %v5067 = vrot.slane %v5039, 1
        %v5068 = vrot.slane %v5041, 2
        %v5069 = vor.u32 %v5067, %v5068
        %v5070 = vrot.slane %v5050, 1
        %v5071 = vrot.slane %v5046, 2
        %v5072 = vor.u32 %v5070, %v5071
        %v5073 = vsel %vm1736, %v5069, %v5072
        %v5074 = vshrl.u32 %v5037, 16
        %v5076 = vrot.slane %v5074, 1
        %v5077 = vrot.slane %v5054, 2
        %v5078 = vor.u32 %v5076, %v5077
        %v5079 = vsel %vm1736, %v5072, %v5078
        %5080 = vrot.lane.b32.xlu0 %v5073, 64
        %v5081 = vpop.permute.xlu0 %5080
        %5082 = vrot.lane.b32.xlu0 %v5079, 64
        %v5083 = vpop.permute.xlu0 %5082
        %v5085 = vsel %vm2281, %v5033, %v5059
        %v5088 = vsel %vm2281, %v5034, %v5061
        %v5092 = vsel %vm2281, %v5064, %v5081
        %v5096 = vsel %vm2281, %v5066, %v5083
        %s5098 = scalar_lea.vmem %s210, 384
        %v5099 = vld [vmem:[%s5098] sm:$0xf]
        %v5100 = vld [vmem:[%s5098 + $0x4] sm:$0xf]
        %v5101 = vld [vmem:[%s5098 + $0x8] sm:$0xf]
        %v5102 = vld [vmem:[%s5098 + $0xc] sm:$0xf]
        %v5103 = vld [vmem:[%s5098 + $0x10] sm:$0xf]
        %v5104 = vld [vmem:[%s5098 + $0x14] sm:$0xf]
        %v5105 = vld [vmem:[%s5098 + $0x18] sm:$0xf]
        %v5106 = vld [vmem:[%s5098 + $0x1c] sm:$0xf]
        %v5107 = vld [vmem:[%s5098 + $0x20] sm:$0xf]
        %v5108 = vld [vmem:[%s5098 + $0x24] sm:$0xf]
        %v5109 = vld [vmem:[%s5098 + $0x28] sm:$0xf]
        %v5110 = vld [vmem:[%s5098 + $0x2c] sm:$0xf]
        %v5111 = vld [vmem:[%s5098 + $0x30] sm:$0xf]
        %v5112 = vld [vmem:[%s5098 + $0x34] sm:$0xf]
        %v5113 = vld [vmem:[%s5098 + $0x38] sm:$0xf]
        %v5114 = vld [vmem:[%s5098 + $0x3c] sm:$0xf]
        %v5115 = vld [vmem:[%s5098 + $0x40] sm:$0xf]
        %v5116 = vld [vmem:[%s5098 + $0x44] sm:$0xf]
        %v5117 = vld [vmem:[%s5098 + $0x48] sm:$0xf]
        %v5118 = vld [vmem:[%s5098 + $0x4c] sm:$0xf]
        %v5119 = vld [vmem:[%s5098 + $0x50] sm:$0xf]
        %v5120 = vld [vmem:[%s5098 + $0x54] sm:$0xf]
        %v5121 = vld [vmem:[%s5098 + $0x58] sm:$0xf]
        %v5122 = vld [vmem:[%s5098 + $0x5c] sm:$0xf]
        %v5123 = vld [vmem:[%s5098 + $0x60] sm:$0xf]
        %v5124 = vld [vmem:[%s5098 + $0x64] sm:$0xf]
        %v5125 = vld [vmem:[%s5098 + $0x68] sm:$0xf]
        %v5126 = vld [vmem:[%s5098 + $0x6c] sm:$0xf]
        %v5127 = vld [vmem:[%s5098 + $0x70] sm:$0xf]
        %v5128 = vld [vmem:[%s5098 + $0x74] sm:$0xf]
        %v5129 = vld [vmem:[%s5098 + $0x78] sm:$0xf]
        %v5130 = vld [vmem:[%s5098 + $0x7c] sm:$0xf]
        %v5163 = vunpack.c.l.b16 %v5099
        %v5164 = vunpack.c.l.b16 %v5100
        %v5165 = vunpack.c.l.b16 %v5101
        %v5166 = vunpack.c.l.b16 %v5102
        %v5167 = vunpack.c.l.b16 %v5103
        %v5168 = vunpack.c.l.b16 %v5104
        %v5169 = vunpack.c.l.b16 %v5105
        %v5170 = vunpack.c.l.b16 %v5106
        %v5171 = vunpack.c.l.b16 %v5107
        %v5172 = vunpack.c.l.b16 %v5108
        %v5173 = vunpack.c.l.b16 %v5109
        %v5174 = vunpack.c.l.b16 %v5110
        %v5175 = vunpack.c.l.b16 %v5111
        %v5176 = vunpack.c.l.b16 %v5112
        %v5177 = vunpack.c.l.b16 %v5113
        %v5178 = vunpack.c.l.b16 %v5114
        %v5179 = vunpack.c.l.b16 %v5115
        %v5180 = vunpack.c.l.b16 %v5116
        %v5181 = vunpack.c.l.b16 %v5117
        %v5182 = vunpack.c.l.b16 %v5118
        %v5183 = vunpack.c.l.b16 %v5119
        %v5184 = vunpack.c.l.b16 %v5120
        %v5185 = vunpack.c.l.b16 %v5121
        %v5186 = vunpack.c.l.b16 %v5122
        %v5187 = vunpack.c.l.b16 %v5123
        %v5188 = vunpack.c.l.b16 %v5124
        %v5189 = vunpack.c.l.b16 %v5125
        %v5190 = vunpack.c.l.b16 %v5126
        %v5191 = vunpack.c.l.b16 %v5127
        %v5192 = vunpack.c.l.b16 %v5128
        %v5193 = vunpack.c.l.b16 %v5129
        %v5194 = vunpack.c.l.b16 %v5130
        %v5195 = vpack.c.b16 %v5164, %v5163
        %v5196 = vpack.c.b16 %v5166, %v5165
        %v5197 = vpack.c.b16 %v5168, %v5167
        %v5198 = vpack.c.b16 %v5170, %v5169
        %v5199 = vpack.c.b16 %v5172, %v5171
        %v5200 = vpack.c.b16 %v5174, %v5173
        %v5201 = vpack.c.b16 %v5176, %v5175
        %v5202 = vpack.c.b16 %v5178, %v5177
        %v5203 = vpack.c.b16 %v5180, %v5179
        %v5204 = vpack.c.b16 %v5182, %v5181
        %v5205 = vpack.c.b16 %v5184, %v5183
        %v5206 = vpack.c.b16 %v5186, %v5185
        %v5207 = vpack.c.b16 %v5188, %v5187
        %v5208 = vpack.c.b16 %v5190, %v5189
        %v5209 = vpack.c.b16 %v5192, %v5191
        %v5210 = vpack.c.b16 %v5194, %v5193
        %5227 = vmatprep.subr.bf16.mxu0 0
        %5228 = vmatpush1.bf16.msra.mxu0 %v5195
        %5229 = vmatprep.subr.bf16.mxu0 0
        %5230 = vmatpush1.bf16.msra.mxu0 %v5196
        %5231 = vmatprep.subr.bf16.mxu0 0
        %5232 = vmatpush1.bf16.msra.mxu0 %v5197
        %5233 = vmatprep.subr.bf16.mxu0 0
        %5234 = vmatpush1.bf16.msra.mxu0 %v5198
        %5235 = vmatprep.subr.bf16.mxu0 0
        %5236 = vmatpush1.bf16.msra.mxu0 %v5199
        %5237 = vmatprep.subr.bf16.mxu0 0
        %5238 = vmatpush1.bf16.msra.mxu0 %v5200
        %5239 = vmatprep.subr.bf16.mxu0 0
        %5240 = vmatpush1.bf16.msra.mxu0 %v5201
        %5241 = vmatprep.subr.bf16.mxu0 0
        %5242 = vmatpush1.bf16.msra.mxu0 %v5202
        %5243 = vmatprep.subr.bf16.mxu0 0
        %5244 = vmatpush1.bf16.msra.mxu0 %v5203
        %5245 = vmatprep.subr.bf16.mxu0 0
        %5246 = vmatpush1.bf16.msra.mxu0 %v5204
        %5247 = vmatprep.subr.bf16.mxu0 0
        %5248 = vmatpush1.bf16.msra.mxu0 %v5205
        %5249 = vmatprep.subr.bf16.mxu0 0
        %5250 = vmatpush1.bf16.msra.mxu0 %v5206
        %5251 = vmatprep.subr.bf16.mxu0 0
        %5252 = vmatpush1.bf16.msra.mxu0 %v5207
        %5253 = vmatprep.subr.bf16.mxu0 0
        %5254 = vmatpush1.bf16.msra.mxu0 %v5208
        %5255 = vmatprep.subr.bf16.mxu0 0
        %5256 = vmatpush1.bf16.msra.mxu0 %v5209
        %5257 = vmatprep.subr.bf16.mxu0 0
        %5258 = vmatpush1.bf16.msra.mxu0 %v5210
        %5259 = vmatprep.mubr.bf16.mxu0 %v2500
        %5260 = vmatmul.mubr.bf16.gmra.mrb[0].mxu0 %v2301
        %v5261 = vpop.f32.mrb[0].mxu0
        %v5262 = vadd.f32 0.0, %v5261
        %v5263 = vpop.f32.mrb[0].mxu0
        %v5264 = vpop.f32.mrb[0].mxu0
        %v5265 = vadd.f32 0.0, %v5264
        %v5266 = vpop.f32.mrb[0].mxu0
        %5267 = vmatprep.mubr.bf16.mxu0 %v2504
        %5268 = vmatmul.mubr.bf16.gmra.mrb[0].mxu0 %v2304
        %v5269 = vpop.f32.mrb[0].mxu0
        %v5270 = vadd.f32 0.0, %v5269
        %v5271 = vpop.f32.mrb[0].mxu0
        %v5272 = vpop.f32.mrb[0].mxu0
        %v5273 = vadd.f32 0.0, %v5272
        %v5274 = vpop.f32.mrb[0].mxu0
        %5275 = vmatprep.mubr.bf16.mxu0 %v2508
        %5276 = vmatmul.mubr.bf16.gmra.mrb[0].mxu0 %v2307
        %v5277 = vpop.f32.mrb[0].mxu0
        %v5278 = vadd.f32 0.0, %v5277
        %v5279 = vpop.f32.mrb[0].mxu0
        %v5280 = vpop.f32.mrb[0].mxu0
        %v5281 = vadd.f32 0.0, %v5280
        %v5282 = vpop.f32.mrb[0].mxu0
        %5283 = vmatprep.mubr.bf16.mxu0 %v2512
        %5284 = vmatmul.mubr.bf16.gmra.mrb[0].mxu0 %v2310
        %v5285 = vpop.f32.mrb[0].mxu0
        %v5286 = vadd.f32 0.0, %v5285
        %v5287 = vpop.f32.mrb[0].mxu0
        %v5288 = vpop.f32.mrb[0].mxu0
        %v5289 = vadd.f32 0.0, %v5288
        %v5290 = vpop.f32.mrb[0].mxu0
        %5291 = vmatprep.mubr.bf16.mxu0 %v2516
        %5292 = vmatmul.mubr.bf16.gmra.mrb[0].mxu0 %v2313
        %v5293 = vpop.f32.mrb[0].mxu0
        %v5294 = vadd.f32 0.0, %v5293
        %v5295 = vpop.f32.mrb[0].mxu0
        %v5296 = vpop.f32.mrb[0].mxu0
        %v5297 = vadd.f32 0.0, %v5296
        %v5298 = vpop.f32.mrb[0].mxu0
        %5299 = vmatprep.mubr.bf16.mxu0 %v2520
        %5300 = vmatmul.mubr.bf16.gmra.mrb[0].mxu0 %v2316
        %v5301 = vpop.f32.mrb[0].mxu0
        %v5302 = vadd.f32 0.0, %v5301
        %v5303 = vpop.f32.mrb[0].mxu0
        %v5304 = vpop.f32.mrb[0].mxu0
        %v5305 = vadd.f32 0.0, %v5304
        %v5306 = vpop.f32.mrb[0].mxu0
        %5307 = vmatprep.mubr.bf16.mxu0 %v2524
        %5308 = vmatmul.mubr.bf16.gmra.mrb[0].mxu0 %v2319
        %v5309 = vpop.f32.mrb[0].mxu0
        %v5310 = vadd.f32 0.0, %v5309
        %v5311 = vpop.f32.mrb[0].mxu0
        %v5312 = vpop.f32.mrb[0].mxu0
        %v5313 = vadd.f32 0.0, %v5312
        %v5314 = vpop.f32.mrb[0].mxu0
        %5315 = vmatprep.mubr.bf16.mxu0 %v2528
        %5316 = vmatmul.mubr.bf16.gmra.mrb[0].mxu0 %v2322
        %v5317 = vpop.f32.mrb[0].mxu0
        %v5318 = vadd.f32 0.0, %v5317
        %v5319 = vpop.f32.mrb[0].mxu0
        %v5320 = vpop.f32.mrb[0].mxu0
        %v5321 = vadd.f32 0.0, %v5320
        %v5322 = vpop.f32.mrb[0].mxu0
        %5323 = vmatprep.mubr.bf16.mxu0 %v2532
        %5324 = vmatmul.mubr.bf16.gmra.mrb[0].mxu0 %v2325
        %v5325 = vpop.f32.mrb[0].mxu0
        %v5326 = vadd.f32 0.0, %v5325
        %v5327 = vpop.f32.mrb[0].mxu0
        %v5328 = vpop.f32.mrb[0].mxu0
        %v5329 = vadd.f32 0.0, %v5328
        %v5330 = vpop.f32.mrb[0].mxu0
        %5331 = vmatprep.mubr.bf16.mxu0 %v2536
        %5332 = vmatmul.mubr.bf16.gmra.mrb[0].mxu0 %v2328
        %v5333 = vpop.f32.mrb[0].mxu0
        %v5334 = vadd.f32 0.0, %v5333
        %v5335 = vpop.f32.mrb[0].mxu0
        %v5336 = vpop.f32.mrb[0].mxu0
        %v5337 = vadd.f32 0.0, %v5336
        %v5338 = vpop.f32.mrb[0].mxu0
        %5339 = vmatprep.mubr.bf16.mxu0 %v2540
        %5340 = vmatmul.mubr.bf16.gmra.mrb[0].mxu0 %v2331
        %v5341 = vpop.f32.mrb[0].mxu0
        %v5342 = vadd.f32 0.0, %v5341
        %v5343 = vpop.f32.mrb[0].mxu0
        %v5344 = vpop.f32.mrb[0].mxu0
        %v5345 = vadd.f32 0.0, %v5344
        %v5346 = vpop.f32.mrb[0].mxu0
        %5347 = vmatprep.mubr.bf16.mxu0 %v2544
        %5348 = vmatmul.mubr.bf16.gmra.mrb[0].mxu0 %v2334
        %v5349 = vpop.f32.mrb[0].mxu0
        %v5350 = vadd.f32 0.0, %v5349
        %v5351 = vpop.f32.mrb[0].mxu0
        %v5352 = vpop.f32.mrb[0].mxu0
        %v5353 = vadd.f32 0.0, %v5352
        %v5354 = vpop.f32.mrb[0].mxu0
        %5355 = vmatprep.mubr.bf16.mxu0 %v2548
        %5356 = vmatmul.mubr.bf16.gmra.mrb[0].mxu0 %v2337
        %v5357 = vpop.f32.mrb[0].mxu0
        %v5358 = vadd.f32 0.0, %v5357
        %v5359 = vpop.f32.mrb[0].mxu0
        %v5360 = vpop.f32.mrb[0].mxu0
        %v5361 = vadd.f32 0.0, %v5360
        %v5362 = vpop.f32.mrb[0].mxu0
        %5363 = vmatprep.mubr.bf16.mxu0 %v2552
        %5364 = vmatmul.mubr.bf16.gmra.mrb[0].mxu0 %v2340
        %v5365 = vpop.f32.mrb[0].mxu0
        %v5366 = vadd.f32 0.0, %v5365
        %v5367 = vpop.f32.mrb[0].mxu0
        %v5368 = vpop.f32.mrb[0].mxu0
        %v5369 = vadd.f32 0.0, %v5368
        %v5370 = vpop.f32.mrb[0].mxu0
        %5371 = vmatprep.mubr.bf16.mxu0 %v2556
        %5372 = vmatmul.mubr.bf16.gmra.mrb[0].mxu0 %v2343
        %v5373 = vpop.f32.mrb[0].mxu0
        %v5374 = vadd.f32 0.0, %v5373
        %v5375 = vpop.f32.mrb[0].mxu0
        %v5376 = vpop.f32.mrb[0].mxu0
        %v5377 = vadd.f32 0.0, %v5376
        %v5378 = vpop.f32.mrb[0].mxu0
        %5379 = vmatprep.mubr.bf16.mxu0 %v2560
        %5380 = vmatmul.mubr.bf16.gmra.mrb[0].mxu0 %v2346
        %v5381 = vpop.f32.mrb[0].mxu0
        %v5382 = vadd.f32 0.0, %v5381
        %v5383 = vpop.f32.mrb[0].mxu0
        %v5384 = vpop.f32.mrb[0].mxu0
        %v5385 = vadd.f32 0.0, %v5384
        %v5386 = vpop.f32.mrb[0].mxu0
        %5387 = vmatprep.mubr.bf16.mxu0 %v2564
        %5388 = vmatmul.mubr.bf16.gmra.mrb[0].mxu0 %v2349
        %v5389 = vpop.f32.mrb[0].mxu0
        %v5390 = vadd.f32 0.0, %v5389
        %v5391 = vpop.f32.mrb[0].mxu0
        %v5392 = vpop.f32.mrb[0].mxu0
        %v5393 = vadd.f32 0.0, %v5392
        %v5394 = vpop.f32.mrb[0].mxu0
        %5395 = vmatprep.mubr.bf16.mxu0 %v2568
        %5396 = vmatmul.mubr.bf16.gmra.mrb[0].mxu0 %v2352
        %v5397 = vpop.f32.mrb[0].mxu0
        %v5398 = vadd.f32 0.0, %v5397
        %v5399 = vpop.f32.mrb[0].mxu0
        %v5400 = vpop.f32.mrb[0].mxu0
        %v5401 = vadd.f32 0.0, %v5400
        %v5402 = vpop.f32.mrb[0].mxu0
        %5403 = vmatprep.mubr.bf16.mxu0 %v2572
        %5404 = vmatmul.mubr.bf16.gmra.mrb[0].mxu0 %v2355
        %v5405 = vpop.f32.mrb[0].mxu0
        %v5406 = vadd.f32 0.0, %v5405
        %v5407 = vpop.f32.mrb[0].mxu0
        %v5408 = vpop.f32.mrb[0].mxu0
        %v5409 = vadd.f32 0.0, %v5408
        %v5410 = vpop.f32.mrb[0].mxu0
        %5411 = vmatprep.mubr.bf16.mxu0 %v2576
        %5412 = vmatmul.mubr.bf16.gmra.mrb[0].mxu0 %v2358
        %v5413 = vpop.f32.mrb[0].mxu0
        %v5414 = vadd.f32 0.0, %v5413
        %v5415 = vpop.f32.mrb[0].mxu0
        %v5416 = vpop.f32.mrb[0].mxu0
        %v5417 = vadd.f32 0.0, %v5416
        %v5418 = vpop.f32.mrb[0].mxu0
        %5419 = vmatprep.mubr.bf16.mxu0 %v2580
        %5420 = vmatmul.mubr.bf16.gmra.mrb[0].mxu0 %v2361
        %v5421 = vpop.f32.mrb[0].mxu0
        %v5422 = vadd.f32 0.0, %v5421
        %v5423 = vpop.f32.mrb[0].mxu0
        %v5424 = vpop.f32.mrb[0].mxu0
        %v5425 = vadd.f32 0.0, %v5424
        %v5426 = vpop.f32.mrb[0].mxu0
        %5427 = vmatprep.mubr.bf16.mxu0 %v2584
        %5428 = vmatmul.mubr.bf16.gmra.mrb[0].mxu0 %v2364
        %v5429 = vpop.f32.mrb[0].mxu0
        %v5430 = vadd.f32 0.0, %v5429
        %v5431 = vpop.f32.mrb[0].mxu0
        %v5432 = vpop.f32.mrb[0].mxu0
        %v5433 = vadd.f32 0.0, %v5432
        %v5434 = vpop.f32.mrb[0].mxu0
        %5435 = vmatprep.mubr.bf16.mxu0 %v2588
        %5436 = vmatmul.mubr.bf16.gmra.mrb[0].mxu0 %v2367
        %v5437 = vpop.f32.mrb[0].mxu0
        %v5438 = vadd.f32 0.0, %v5437
        %v5439 = vpop.f32.mrb[0].mxu0
        %v5440 = vpop.f32.mrb[0].mxu0
        %v5441 = vadd.f32 0.0, %v5440
        %v5442 = vpop.f32.mrb[0].mxu0
        %5443 = vmatprep.mubr.bf16.mxu0 %v2592
        %5444 = vmatmul.mubr.bf16.gmra.mrb[0].mxu0 %v2370
        %v5445 = vpop.f32.mrb[0].mxu0
        %v5446 = vadd.f32 0.0, %v5445
        %v5447 = vpop.f32.mrb[0].mxu0
        %v5448 = vpop.f32.mrb[0].mxu0
        %v5449 = vadd.f32 0.0, %v5448
        %v5450 = vpop.f32.mrb[0].mxu0
        %5451 = vmatprep.mubr.bf16.mxu0 %v2596
        %5452 = vmatmul.mubr.bf16.gmra.mrb[0].mxu0 %v2373
        %v5453 = vpop.f32.mrb[0].mxu0
        %v5454 = vadd.f32 0.0, %v5453
        %v5455 = vpop.f32.mrb[0].mxu0
        %v5456 = vpop.f32.mrb[0].mxu0
        %v5457 = vadd.f32 0.0, %v5456
        %v5458 = vpop.f32.mrb[0].mxu0
        %5459 = vmatprep.mubr.bf16.mxu0 %v2600
        %5460 = vmatmul.mubr.bf16.gmra.mrb[0].mxu0 %v2376
        %v5461 = vpop.f32.mrb[0].mxu0
        %v5462 = vadd.f32 0.0, %v5461
        %v5463 = vpop.f32.mrb[0].mxu0
        %v5464 = vpop.f32.mrb[0].mxu0
        %v5465 = vadd.f32 0.0, %v5464
        %v5466 = vpop.f32.mrb[0].mxu0
        %5467 = vmatprep.mubr.bf16.mxu0 %v2604
        %5468 = vmatmul.mubr.bf16.gmra.mrb[0].mxu0 %v2379
        %v5469 = vpop.f32.mrb[0].mxu0
        %v5470 = vadd.f32 0.0, %v5469
        %v5471 = vpop.f32.mrb[0].mxu0
        %v5472 = vpop.f32.mrb[0].mxu0
        %v5473 = vadd.f32 0.0, %v5472
        %v5474 = vpop.f32.mrb[0].mxu0
        %5475 = vmatprep.mubr.bf16.mxu0 %v2608
        %5476 = vmatmul.mubr.bf16.gmra.mrb[0].mxu0 %v2382
        %v5477 = vpop.f32.mrb[0].mxu0
        %v5478 = vadd.f32 0.0, %v5477
        %v5479 = vpop.f32.mrb[0].mxu0
        %v5480 = vpop.f32.mrb[0].mxu0
        %v5481 = vadd.f32 0.0, %v5480
        %v5482 = vpop.f32.mrb[0].mxu0
        %5483 = vmatprep.mubr.bf16.mxu0 %v2612
        %5484 = vmatmul.mubr.bf16.gmra.mrb[0].mxu0 %v2385
        %v5485 = vpop.f32.mrb[0].mxu0
        %v5486 = vadd.f32 0.0, %v5485
        %v5487 = vpop.f32.mrb[0].mxu0
        %v5488 = vpop.f32.mrb[0].mxu0
        %v5489 = vadd.f32 0.0, %v5488
        %v5490 = vpop.f32.mrb[0].mxu0
        %5491 = vmatprep.mubr.bf16.mxu0 %v2616
        %5492 = vmatmul.mubr.bf16.gmra.mrb[0].mxu0 %v2388
        %v5493 = vpop.f32.mrb[0].mxu0
        %v5494 = vadd.f32 0.0, %v5493
        %v5495 = vpop.f32.mrb[0].mxu0
        %v5496 = vpop.f32.mrb[0].mxu0
        %v5497 = vadd.f32 0.0, %v5496
        %v5498 = vpop.f32.mrb[0].mxu0
        %5499 = vmatprep.mubr.bf16.mxu0 %v2620
        %5500 = vmatmul.mubr.bf16.gmra.mrb[0].mxu0 %v2391
        %v5501 = vpop.f32.mrb[0].mxu0
        %v5502 = vadd.f32 0.0, %v5501
        %v5503 = vpop.f32.mrb[0].mxu0
        %v5504 = vpop.f32.mrb[0].mxu0
        %v5505 = vadd.f32 0.0, %v5504
        %v5506 = vpop.f32.mrb[0].mxu0
        %5507 = vmatprep.mubr.bf16.mxu0 %v2624
        %5508 = vmatmul.mubr.bf16.gmra.mrb[0].mxu0 %v2394
        %v5509 = vpop.f32.mrb[0].mxu0
        %v5510 = vadd.f32 0.0, %v5509
        %v5511 = vpop.f32.mrb[0].mxu0
        %v5512 = vpop.f32.mrb[0].mxu0
        %v5513 = vadd.f32 0.0, %v5512
        %v5514 = vpop.f32.mrb[0].mxu0
        %5515 = vmatprep.mubr.bf16.mxu0 %v2628
        %5516 = vmatmul.mubr.bf16.gmra.mrb[0].mxu0 %v2397
        %v5517 = vpop.f32.mrb[0].mxu0
        %v5518 = vadd.f32 0.0, %v5517
        %v5519 = vpop.f32.mrb[0].mxu0
        %v5520 = vpop.f32.mrb[0].mxu0
        %v5521 = vadd.f32 0.0, %v5520
        %v5522 = vpop.f32.mrb[0].mxu0
        %5523 = vmatprep.mubr.bf16.mxu0 %v2632
        %5524 = vmatmul.mubr.bf16.gmra.mrb[0].mxu0 %v2400
        %v5525 = vpop.f32.mrb[0].mxu0
        %v5526 = vadd.f32 0.0, %v5525
        %v5527 = vpop.f32.mrb[0].mxu0
        %v5528 = vpop.f32.mrb[0].mxu0
        %v5529 = vadd.f32 0.0, %v5528
        %v5530 = vpop.f32.mrb[0].mxu0
        %5531 = vmatprep.mubr.bf16.mxu0 %v2636
        %5532 = vmatmul.mubr.bf16.gmra.mrb[0].mxu0 %v2403
        %v5533 = vpop.f32.mrb[0].mxu0
        %v5534 = vadd.f32 0.0, %v5533
        %v5535 = vpop.f32.mrb[0].mxu0
        %v5536 = vpop.f32.mrb[0].mxu0
        %v5537 = vadd.f32 0.0, %v5536
        %v5538 = vpop.f32.mrb[0].mxu0
        %5539 = vmatprep.mubr.bf16.mxu0 %v2640
        %5540 = vmatmul.mubr.bf16.gmra.mrb[0].mxu0 %v2406
        %v5541 = vpop.f32.mrb[0].mxu0
        %v5542 = vadd.f32 0.0, %v5541
        %v5543 = vpop.f32.mrb[0].mxu0
        %v5544 = vpop.f32.mrb[0].mxu0
        %v5545 = vadd.f32 0.0, %v5544
        %v5546 = vpop.f32.mrb[0].mxu0
        %5547 = vmatprep.mubr.bf16.mxu0 %v2644
        %5548 = vmatmul.mubr.bf16.gmra.mrb[0].mxu0 %v2409
        %v5549 = vpop.f32.mrb[0].mxu0
        %v5550 = vadd.f32 0.0, %v5549
        %v5551 = vpop.f32.mrb[0].mxu0
        %v5552 = vpop.f32.mrb[0].mxu0
        %v5553 = vadd.f32 0.0, %v5552
        %v5554 = vpop.f32.mrb[0].mxu0
        %5555 = vmatprep.mubr.bf16.mxu0 %v2648
        %5556 = vmatmul.mubr.bf16.gmra.mrb[0].mxu0 %v2412
        %v5557 = vpop.f32.mrb[0].mxu0
        %v5558 = vadd.f32 0.0, %v5557
        %v5559 = vpop.f32.mrb[0].mxu0
        %v5560 = vpop.f32.mrb[0].mxu0
        %v5561 = vadd.f32 0.0, %v5560
        %v5562 = vpop.f32.mrb[0].mxu0
        %5563 = vmatprep.mubr.bf16.mxu0 %v2652
        %5564 = vmatmul.mubr.bf16.gmra.mrb[0].mxu0 %v2415
        %v5565 = vpop.f32.mrb[0].mxu0
        %v5566 = vadd.f32 0.0, %v5565
        %v5567 = vpop.f32.mrb[0].mxu0
        %v5568 = vpop.f32.mrb[0].mxu0
        %v5569 = vadd.f32 0.0, %v5568
        %v5570 = vpop.f32.mrb[0].mxu0
        %5571 = vmatprep.mubr.bf16.mxu0 %v2656
        %5572 = vmatmul.mubr.bf16.gmra.mrb[0].mxu0 %v2418
        %v5573 = vpop.f32.mrb[0].mxu0
        %v5574 = vadd.f32 0.0, %v5573
        %v5575 = vpop.f32.mrb[0].mxu0
        %v5576 = vpop.f32.mrb[0].mxu0
        %v5577 = vadd.f32 0.0, %v5576
        %v5578 = vpop.f32.mrb[0].mxu0
        %5579 = vmatprep.mubr.bf16.mxu0 %v2660
        %5580 = vmatmul.mubr.bf16.gmra.mrb[0].mxu0 %v2421
        %v5581 = vpop.f32.mrb[0].mxu0
        %v5582 = vadd.f32 0.0, %v5581
        %v5583 = vpop.f32.mrb[0].mxu0
        %v5584 = vpop.f32.mrb[0].mxu0
        %v5585 = vadd.f32 0.0, %v5584
        %v5586 = vpop.f32.mrb[0].mxu0
        %5587 = vmatprep.mubr.bf16.mxu0 %v2664
        %5588 = vmatmul.mubr.bf16.gmra.mrb[0].mxu0 %v2424
        %v5589 = vpop.f32.mrb[0].mxu0
        %v5590 = vadd.f32 0.0, %v5589
        %v5591 = vpop.f32.mrb[0].mxu0
        %v5592 = vpop.f32.mrb[0].mxu0
        %v5593 = vadd.f32 0.0, %v5592
        %v5594 = vpop.f32.mrb[0].mxu0
        %5595 = vmatprep.mubr.bf16.mxu0 %v2668
        %5596 = vmatmul.mubr.bf16.gmra.mrb[0].mxu0 %v2427
        %v5597 = vpop.f32.mrb[0].mxu0
        %v5598 = vadd.f32 0.0, %v5597
        %v5599 = vpop.f32.mrb[0].mxu0
        %v5600 = vpop.f32.mrb[0].mxu0
        %v5601 = vadd.f32 0.0, %v5600
        %v5602 = vpop.f32.mrb[0].mxu0
        %5603 = vmatprep.mubr.bf16.mxu0 %v2672
        %5604 = vmatmul.mubr.bf16.gmra.mrb[0].mxu0 %v2430
        %v5605 = vpop.f32.mrb[0].mxu0
        %v5606 = vadd.f32 0.0, %v5605
        %v5607 = vpop.f32.mrb[0].mxu0
        %v5608 = vpop.f32.mrb[0].mxu0
        %v5609 = vadd.f32 0.0, %v5608
        %v5610 = vpop.f32.mrb[0].mxu0
        %5611 = vmatprep.mubr.bf16.mxu0 %v2676
        %5612 = vmatmul.mubr.bf16.gmra.mrb[0].mxu0 %v2433
        %v5613 = vpop.f32.mrb[0].mxu0
        %v5614 = vadd.f32 0.0, %v5613
        %v5615 = vpop.f32.mrb[0].mxu0
        %v5616 = vpop.f32.mrb[0].mxu0
        %v5617 = vadd.f32 0.0, %v5616
        %v5618 = vpop.f32.mrb[0].mxu0
        %5619 = vmatprep.mubr.bf16.mxu0 %v2680
        %5620 = vmatmul.mubr.bf16.gmra.mrb[0].mxu0 %v2436
        %v5621 = vpop.f32.mrb[0].mxu0
        %v5622 = vadd.f32 0.0, %v5621
        %v5623 = vpop.f32.mrb[0].mxu0
        %v5624 = vpop.f32.mrb[0].mxu0
        %v5625 = vadd.f32 0.0, %v5624
        %v5626 = vpop.f32.mrb[0].mxu0
        %5627 = vmatprep.mubr.bf16.mxu0 %v2684
        %5628 = vmatmul.mubr.bf16.gmra.mrb[0].mxu0 %v2439
        %v5629 = vpop.f32.mrb[0].mxu0
        %v5630 = vadd.f32 0.0, %v5629
        %v5631 = vpop.f32.mrb[0].mxu0
        %v5632 = vpop.f32.mrb[0].mxu0
        %v5633 = vadd.f32 0.0, %v5632
        %v5634 = vpop.f32.mrb[0].mxu0
        %5635 = vmatprep.mubr.bf16.mxu0 %v2688
        %5636 = vmatmul.mubr.bf16.gmra.mrb[0].mxu0 %v2442
        %v5637 = vpop.f32.mrb[0].mxu0
        %v5638 = vadd.f32 0.0, %v5637
        %v5639 = vpop.f32.mrb[0].mxu0
        %v5640 = vpop.f32.mrb[0].mxu0
        %v5641 = vadd.f32 0.0, %v5640
        %v5642 = vpop.f32.mrb[0].mxu0
        %5643 = vmatprep.mubr.bf16.mxu0 %v2692
        %5644 = vmatmul.mubr.bf16.gmra.mrb[0].mxu0 %v2445
        %v5645 = vpop.f32.mrb[0].mxu0
        %v5646 = vadd.f32 0.0, %v5645
        %v5647 = vpop.f32.mrb[0].mxu0
        %v5648 = vpop.f32.mrb[0].mxu0
        %v5649 = vadd.f32 0.0, %v5648
        %v5650 = vpop.f32.mrb[0].mxu0
        %5651 = vmatprep.mubr.bf16.mxu0 %v2696
        %5652 = vmatmul.mubr.bf16.gmra.mrb[0].mxu0 %v2448
        %v5653 = vpop.f32.mrb[0].mxu0
        %v5654 = vadd.f32 0.0, %v5653
        %v5655 = vpop.f32.mrb[0].mxu0
        %v5656 = vpop.f32.mrb[0].mxu0
        %v5657 = vadd.f32 0.0, %v5656
        %v5658 = vpop.f32.mrb[0].mxu0
        %5659 = vmatprep.mubr.bf16.mxu0 %v2700
        %5660 = vmatmul.mubr.bf16.gmra.mrb[0].mxu0 %v2451
        %v5661 = vpop.f32.mrb[0].mxu0
        %v5662 = vadd.f32 0.0, %v5661
        %v5663 = vpop.f32.mrb[0].mxu0
        %v5664 = vpop.f32.mrb[0].mxu0
        %v5665 = vadd.f32 0.0, %v5664
        %v5666 = vpop.f32.mrb[0].mxu0
        %5667 = vmatprep.mubr.bf16.mxu0 %v2704
        %5668 = vmatmul.mubr.bf16.gmra.mrb[0].mxu0 %v2454
        %v5669 = vpop.f32.mrb[0].mxu0
        %v5670 = vadd.f32 0.0, %v5669
        %v5671 = vpop.f32.mrb[0].mxu0
        %v5672 = vpop.f32.mrb[0].mxu0
        %v5673 = vadd.f32 0.0, %v5672
        %v5674 = vpop.f32.mrb[0].mxu0
        %5675 = vmatprep.mubr.bf16.mxu0 %v2708
        %5676 = vmatmul.mubr.bf16.gmra.mrb[0].mxu0 %v2457
        %v5677 = vpop.f32.mrb[0].mxu0
        %v5678 = vadd.f32 0.0, %v5677
        %v5679 = vpop.f32.mrb[0].mxu0
        %v5680 = vpop.f32.mrb[0].mxu0
        %v5681 = vadd.f32 0.0, %v5680
        %v5682 = vpop.f32.mrb[0].mxu0
        %5683 = vmatprep.mubr.bf16.mxu0 %v2712
        %5684 = vmatmul.mubr.bf16.gmra.mrb[0].mxu0 %v2460
        %v5685 = vpop.f32.mrb[0].mxu0
        %v5686 = vadd.f32 0.0, %v5685
        %v5687 = vpop.f32.mrb[0].mxu0
        %v5688 = vpop.f32.mrb[0].mxu0
        %v5689 = vadd.f32 0.0, %v5688
        %v5690 = vpop.f32.mrb[0].mxu0
        %5691 = vmatprep.mubr.bf16.mxu0 %v2716
        %5692 = vmatmul.mubr.bf16.gmra.mrb[0].mxu0 %v2463
        %v5693 = vpop.f32.mrb[0].mxu0
        %v5694 = vadd.f32 0.0, %v5693
        %v5695 = vpop.f32.mrb[0].mxu0
        %v5696 = vpop.f32.mrb[0].mxu0
        %v5697 = vadd.f32 0.0, %v5696
        %v5698 = vpop.f32.mrb[0].mxu0
        %5699 = vmatprep.mubr.bf16.mxu0 %v2720
        %5700 = vmatmul.mubr.bf16.gmra.mrb[0].mxu0 %v2466
        %v5701 = vpop.f32.mrb[0].mxu0
        %v5702 = vadd.f32 0.0, %v5701
        %v5703 = vpop.f32.mrb[0].mxu0
        %v5704 = vpop.f32.mrb[0].mxu0
        %v5705 = vadd.f32 0.0, %v5704
        %v5706 = vpop.f32.mrb[0].mxu0
        %5707 = vmatprep.mubr.bf16.mxu0 %v2724
        %5708 = vmatmul.mubr.bf16.gmra.mrb[0].mxu0 %v2469
        %v5709 = vpop.f32.mrb[0].mxu0
        %v5710 = vadd.f32 0.0, %v5709
        %v5711 = vpop.f32.mrb[0].mxu0
        %v5712 = vpop.f32.mrb[0].mxu0
        %v5713 = vadd.f32 0.0, %v5712
        %v5714 = vpop.f32.mrb[0].mxu0
        %5715 = vmatprep.mubr.bf16.mxu0 %v2728
        %5716 = vmatmul.mubr.bf16.gmra.mrb[0].mxu0 %v2472
        %v5717 = vpop.f32.mrb[0].mxu0
        %v5718 = vadd.f32 0.0, %v5717
        %v5719 = vpop.f32.mrb[0].mxu0
        %v5720 = vpop.f32.mrb[0].mxu0
        %v5721 = vadd.f32 0.0, %v5720
        %v5722 = vpop.f32.mrb[0].mxu0
        %5723 = vmatprep.mubr.bf16.mxu0 %v2829
        %5724 = vmatmul.mubr.bf16.gmra.mrb[0].mxu0 %v2822
        %v5725 = vpop.f32.mrb[0].mxu0
        %v5726 = vadd.f32 0.0, %v5725
        %v5727 = vpop.f32.mrb[0].mxu0
        %v5728 = vpop.f32.mrb[0].mxu0
        %v5729 = vadd.f32 0.0, %v5728
        %v5730 = vpop.f32.mrb[0].mxu0
        %5731 = vmatprep.mubr.bf16.mxu0 %v2833
        %5732 = vmatmul.mubr.bf16.gmra.mrb[0].mxu0 %v2825
        %v5733 = vpop.f32.mrb[0].mxu0
        %v5734 = vadd.f32 0.0, %v5733
        %v5735 = vpop.f32.mrb[0].mxu0
        %v5736 = vpop.f32.mrb[0].mxu0
        %v5737 = vadd.f32 0.0, %v5736
        %v5738 = vpop.f32.mrb[0].mxu0
        %5739 = vmatprep.mubr.bf16.mxu0 %v4217
        %5740 = vmatmul.mubr.bf16.gmra.mrb[0].mxu0 %v4210
        %v5741 = vpop.f32.mrb[0].mxu0
        %v5742 = vadd.f32 0.0, %v5741
        %v5743 = vpop.f32.mrb[0].mxu0
        %v5744 = vpop.f32.mrb[0].mxu0
        %v5745 = vadd.f32 0.0, %v5744
        %v5746 = vpop.f32.mrb[0].mxu0
        %5747 = vmatprep.mubr.bf16.mxu0 %v4221
        %5748 = vmatmul.mubr.bf16.gmra.mrb[0].mxu0 %v4213
        %v5749 = vpop.f32.mrb[0].mxu0
        %v5750 = vadd.f32 0.0, %v5749
        %v5751 = vpop.f32.mrb[0].mxu0
        %v5752 = vpop.f32.mrb[0].mxu0
        %v5753 = vadd.f32 0.0, %v5752
        %v5754 = vpop.f32.mrb[0].mxu0
        %5755 = vmatprep.mubr.bf16.mxu0 %v5092
        %5756 = vmatmul.mubr.bf16.gmra.mrb[0].mxu0 %v5085
        %v5757 = vpop.f32.mrb[0].mxu0
        %v5758 = vadd.f32 0.0, %v5757
        %v5759 = vpop.f32.mrb[0].mxu0
        %v5760 = vpop.f32.mrb[0].mxu0
        %v5761 = vadd.f32 0.0, %v5760
        %v5762 = vpop.f32.mrb[0].mxu0
        %5763 = vmatprep.mubr.bf16.mxu0 %v5096
        %5764 = vmatmul.mubr.bf16.gmra.mrb[0].mxu0 %v5088
        %v5765 = vpop.f32.mrb[0].mxu0
        %v5766 = vadd.f32 0.0, %v5765
        %v5767 = vpop.f32.mrb[0].mxu0
        %v5768 = vpop.f32.mrb[0].mxu0
        %v5769 = vadd.f32 0.0, %v5768
        %v5770 = vpop.f32.mrb[0].mxu0
        %5771 = vdwg.mxu0
        %v5772 = vadd.f32 %v4897, %v5262
        %v5773 = vadd.f32 %v4898, %v5265
        %v5774 = vadd.f32 %v4899, %v5270
        %v5775 = vadd.f32 %v4900, %v5273
        %v5776 = vadd.f32 %v4901, %v5278
        %v5777 = vadd.f32 %v4902, %v5281
        %v5778 = vadd.f32 %v4903, %v5286
        %v5779 = vadd.f32 %v4904, %v5289
        %v5780 = vadd.f32 %v4905, %v5294
        %v5781 = vadd.f32 %v4906, %v5297
        %v5782 = vadd.f32 %v4907, %v5302
        %v5783 = vadd.f32 %v4908, %v5305
        %v5784 = vadd.f32 %v4909, %v5310
        %v5785 = vadd.f32 %v4910, %v5313
        %v5786 = vadd.f32 %v4911, %v5318
        %v5787 = vadd.f32 %v4912, %v5321
        %v5788 = vadd.f32 %v4913, %v5326
        %v5789 = vadd.f32 %v4914, %v5329
        %v5790 = vadd.f32 %v4915, %v5334
        %v5791 = vadd.f32 %v4916, %v5337
        %v5792 = vadd.f32 %v4917, %v5342
        %v5793 = vadd.f32 %v4918, %v5345
        %v5794 = vadd.f32 %v4919, %v5350
        %v5795 = vadd.f32 %v4920, %v5353
        %v5796 = vadd.f32 %v4921, %v5358
        %v5797 = vadd.f32 %v4922, %v5361
        %v5798 = vadd.f32 %v4923, %v5366
        %v5799 = vadd.f32 %v4924, %v5369
        %v5800 = vadd.f32 %v4925, %v5374
        %v5801 = vadd.f32 %v4926, %v5377
        %v5802 = vadd.f32 %v4927, %v5382
        %v5803 = vadd.f32 %v4928, %v5385
        %v5804 = vadd.f32 %v4929, %v5390
        %v5805 = vadd.f32 %v4930, %v5393
        %v5806 = vadd.f32 %v4931, %v5398
        %v5807 = vadd.f32 %v4932, %v5401
        %v5808 = vadd.f32 %v4933, %v5406
        %v5809 = vadd.f32 %v4934, %v5409
        %v5810 = vadd.f32 %v4935, %v5414
        %v5811 = vadd.f32 %v4936, %v5417
        %v5812 = vadd.f32 %v4937, %v5422
        %v5813 = vadd.f32 %v4938, %v5425
        %v5814 = vadd.f32 %v4939, %v5430
        %v5815 = vadd.f32 %v4940, %v5433
        %v5816 = vadd.f32 %v4941, %v5438
        %v5817 = vadd.f32 %v4942, %v5441
        %v5818 = vadd.f32 %v4943, %v5446
        %v5819 = vadd.f32 %v4944, %v5449
        %v5820 = vadd.f32 %v4945, %v5454
        %v5821 = vadd.f32 %v4946, %v5457
        %v5822 = vadd.f32 %v4947, %v5462
        %v5823 = vadd.f32 %v4948, %v5465
        %v5824 = vadd.f32 %v4949, %v5470
        %v5825 = vadd.f32 %v4950, %v5473
        %v5826 = vadd.f32 %v4951, %v5478
        %v5827 = vadd.f32 %v4952, %v5481
        %v5828 = vadd.f32 %v4953, %v5486
        %v5829 = vadd.f32 %v4954, %v5489
        %v5830 = vadd.f32 %v4955, %v5494
        %v5831 = vadd.f32 %v4956, %v5497
        %v5832 = vadd.f32 %v4957, %v5502
        %v5833 = vadd.f32 %v4958, %v5505
        %v5834 = vadd.f32 %v4959, %v5510
        %v5835 = vadd.f32 %v4960, %v5513
        %v5836 = vadd.f32 %v4961, %v5518
        %v5837 = vadd.f32 %v4962, %v5521
        %v5838 = vadd.f32 %v4963, %v5526
        %v5839 = vadd.f32 %v4964, %v5529
        %v5840 = vadd.f32 %v4965, %v5534
        %v5841 = vadd.f32 %v4966, %v5537
        %v5842 = vadd.f32 %v4967, %v5542
        %v5843 = vadd.f32 %v4968, %v5545
        %v5844 = vadd.f32 %v4969, %v5550
        %v5845 = vadd.f32 %v4970, %v5553
        %v5846 = vadd.f32 %v4971, %v5558
        %v5847 = vadd.f32 %v4972, %v5561
        %v5848 = vadd.f32 %v4973, %v5566
        %v5849 = vadd.f32 %v4974, %v5569
        %v5850 = vadd.f32 %v4975, %v5574
        %v5851 = vadd.f32 %v4976, %v5577
        %v5852 = vadd.f32 %v4977, %v5582
        %v5853 = vadd.f32 %v4978, %v5585
        %v5854 = vadd.f32 %v4979, %v5590
        %v5855 = vadd.f32 %v4980, %v5593
        %v5856 = vadd.f32 %v4981, %v5598
        %v5857 = vadd.f32 %v4982, %v5601
        %v5858 = vadd.f32 %v4983, %v5606
        %v5859 = vadd.f32 %v4984, %v5609
        %v5860 = vadd.f32 %v4985, %v5614
        %v5861 = vadd.f32 %v4986, %v5617
        %v5862 = vadd.f32 %v4987, %v5622
        %v5863 = vadd.f32 %v4988, %v5625
        %v5864 = vadd.f32 %v4989, %v5630
        %v5865 = vadd.f32 %v4990, %v5633
        %v5866 = vadd.f32 %v4991, %v5638
        %v5867 = vadd.f32 %v4992, %v5641
        %v5868 = vadd.f32 %v4993, %v5646
        %v5869 = vadd.f32 %v4994, %v5649
        %v5870 = vadd.f32 %v4995, %v5654
        %v5871 = vadd.f32 %v4996, %v5657
        %v5872 = vadd.f32 %v4997, %v5662
        %v5873 = vadd.f32 %v4998, %v5665
        %v5874 = vadd.f32 %v4999, %v5670
        %v5875 = vadd.f32 %v5000, %v5673
        %v5876 = vadd.f32 %v5001, %v5678
        %v5877 = vadd.f32 %v5002, %v5681
        %v5878 = vadd.f32 %v5003, %v5686
        %v5879 = vadd.f32 %v5004, %v5689
        %v5880 = vadd.f32 %v5005, %v5694
        %v5881 = vadd.f32 %v5006, %v5697
        %v5882 = vadd.f32 %v5007, %v5702
        %v5883 = vadd.f32 %v5008, %v5705
        %v5884 = vadd.f32 %v5009, %v5710
        %v5885 = vadd.f32 %v5010, %v5713
        %v5886 = vadd.f32 %v5011, %v5718
        %v5887 = vadd.f32 %v5012, %v5721
        %v5888 = vadd.f32 %v5013, %v5726
        %v5889 = vadd.f32 %v5014, %v5729
        %v5890 = vadd.f32 %v5015, %v5734
        %v5891 = vadd.f32 %v5016, %v5737
        %v5892 = vadd.f32 %v5017, %v5742
        %v5893 = vadd.f32 %v5018, %v5745
        %v5894 = vadd.f32 %v5019, %v5750
        %v5895 = vadd.f32 %v5020, %v5753
        %v5896 = vadd.f32 %v5021, %v5758
        %v5897 = vadd.f32 %v5022, %v5761
        %v5898 = vadd.f32 %v5023, %v5766
        %v5899 = vadd.f32 %v5024, %v5769
        %v5900 = vld [vmem:[%s213] sm:$0x1]
        %v5902 = vlaneseq
        %v5903 = vshrl.u32 %v5902, 7
        %v5904 = vsub.s32 0, %v5903
        %v5905 = vrot.slane %v5900, %v5904
        %v5907 = vadd.f32 %v5772, %v5905
        %v5908 = vadd.f32 %v5773, %v5905
        %v5909 = vadd.f32 %v5774, %v5905
        %v5910 = vadd.f32 %v5775, %v5905
        %v5911 = vadd.f32 %v5776, %v5905
        %v5912 = vadd.f32 %v5777, %v5905
        %v5913 = vadd.f32 %v5778, %v5905
        %v5914 = vadd.f32 %v5779, %v5905
        %v5915 = vadd.f32 %v5780, %v5905
        %v5916 = vadd.f32 %v5781, %v5905
        %v5917 = vadd.f32 %v5782, %v5905
        %v5918 = vadd.f32 %v5783, %v5905
        %v5919 = vadd.f32 %v5784, %v5905
        %v5920 = vadd.f32 %v5785, %v5905
        %v5921 = vadd.f32 %v5786, %v5905
        %v5922 = vadd.f32 %v5787, %v5905
        %v5923 = vadd.f32 %v5788, %v5905
        %v5924 = vadd.f32 %v5789, %v5905
        %v5925 = vadd.f32 %v5790, %v5905
        %v5926 = vadd.f32 %v5791, %v5905
        %v5927 = vadd.f32 %v5792, %v5905
        %v5928 = vadd.f32 %v5793, %v5905
        %v5929 = vadd.f32 %v5794, %v5905
        %v5930 = vadd.f32 %v5795, %v5905
        %v5931 = vadd.f32 %v5796, %v5905
        %v5932 = vadd.f32 %v5797, %v5905
        %v5933 = vadd.f32 %v5798, %v5905
        %v5934 = vadd.f32 %v5799, %v5905
        %v5935 = vadd.f32 %v5800, %v5905
        %v5936 = vadd.f32 %v5801, %v5905
        %v5937 = vadd.f32 %v5802, %v5905
        %v5938 = vadd.f32 %v5803, %v5905
        %v5939 = vadd.f32 %v5804, %v5905
        %v5940 = vadd.f32 %v5805, %v5905
        %v5941 = vadd.f32 %v5806, %v5905
        %v5942 = vadd.f32 %v5807, %v5905
        %v5943 = vadd.f32 %v5808, %v5905
        %v5944 = vadd.f32 %v5809, %v5905
        %v5945 = vadd.f32 %v5810, %v5905
        %v5946 = vadd.f32 %v5811, %v5905
        %v5947 = vadd.f32 %v5812, %v5905
        %v5948 = vadd.f32 %v5813, %v5905
        %v5949 = vadd.f32 %v5814, %v5905
        %v5950 = vadd.f32 %v5815, %v5905
        %v5951 = vadd.f32 %v5816, %v5905
        %v5952 = vadd.f32 %v5817, %v5905
        %v5953 = vadd.f32 %v5818, %v5905
        %v5954 = vadd.f32 %v5819, %v5905
        %v5955 = vadd.f32 %v5820, %v5905
        %v5956 = vadd.f32 %v5821, %v5905
        %v5957 = vadd.f32 %v5822, %v5905
        %v5958 = vadd.f32 %v5823, %v5905
        %v5959 = vadd.f32 %v5824, %v5905
        %v5960 = vadd.f32 %v5825, %v5905
        %v5961 = vadd.f32 %v5826, %v5905
        %v5962 = vadd.f32 %v5827, %v5905
        %v5963 = vadd.f32 %v5828, %v5905
        %v5964 = vadd.f32 %v5829, %v5905
        %v5965 = vadd.f32 %v5830, %v5905
        %v5966 = vadd.f32 %v5831, %v5905
        %v5967 = vadd.f32 %v5832, %v5905
        %v5968 = vadd.f32 %v5833, %v5905
        %v5969 = vadd.f32 %v5834, %v5905
        %v5970 = vadd.f32 %v5835, %v5905
        %v5971 = vadd.f32 %v5836, %v5905
        %v5972 = vadd.f32 %v5837, %v5905
        %v5973 = vadd.f32 %v5838, %v5905
        %v5974 = vadd.f32 %v5839, %v5905
        %v5975 = vadd.f32 %v5840, %v5905
        %v5976 = vadd.f32 %v5841, %v5905
        %v5977 = vadd.f32 %v5842, %v5905
        %v5978 = vadd.f32 %v5843, %v5905
        %v5979 = vadd.f32 %v5844, %v5905
        %v5980 = vadd.f32 %v5845, %v5905
        %v5981 = vadd.f32 %v5846, %v5905
        %v5982 = vadd.f32 %v5847, %v5905
        %v5983 = vadd.f32 %v5848, %v5905
        %v5984 = vadd.f32 %v5849, %v5905
        %v5985 = vadd.f32 %v5850, %v5905
        %v5986 = vadd.f32 %v5851, %v5905
        %v5987 = vadd.f32 %v5852, %v5905
        %v5988 = vadd.f32 %v5853, %v5905
        %v5989 = vadd.f32 %v5854, %v5905
        %v5990 = vadd.f32 %v5855, %v5905
        %v5991 = vadd.f32 %v5856, %v5905
        %v5992 = vadd.f32 %v5857, %v5905
        %v5993 = vadd.f32 %v5858, %v5905
        %v5994 = vadd.f32 %v5859, %v5905
        %v5995 = vadd.f32 %v5860, %v5905
        %v5996 = vadd.f32 %v5861, %v5905
        %v5997 = vadd.f32 %v5862, %v5905
        %v5998 = vadd.f32 %v5863, %v5905
        %v5999 = vadd.f32 %v5864, %v5905
        %v6000 = vadd.f32 %v5865, %v5905
        %v6001 = vadd.f32 %v5866, %v5905
        %v6002 = vadd.f32 %v5867, %v5905
        %v6003 = vadd.f32 %v5868, %v5905
        %v6004 = vadd.f32 %v5869, %v5905
        %v6005 = vadd.f32 %v5870, %v5905
        %v6006 = vadd.f32 %v5871, %v5905
        %v6007 = vadd.f32 %v5872, %v5905
        %v6008 = vadd.f32 %v5873, %v5905
        %v6009 = vadd.f32 %v5874, %v5905
        %v6010 = vadd.f32 %v5875, %v5905
        %v6011 = vadd.f32 %v5876, %v5905
        %v6012 = vadd.f32 %v5877, %v5905
        %v6013 = vadd.f32 %v5878, %v5905
        %v6014 = vadd.f32 %v5879, %v5905
        %v6015 = vadd.f32 %v5880, %v5905
        %v6016 = vadd.f32 %v5881, %v5905
        %v6017 = vadd.f32 %v5882, %v5905
        %v6018 = vadd.f32 %v5883, %v5905
        %v6019 = vadd.f32 %v5884, %v5905
        %v6020 = vadd.f32 %v5885, %v5905
        %v6021 = vadd.f32 %v5886, %v5905
        %v6022 = vadd.f32 %v5887, %v5905
        %v6023 = vadd.f32 %v5888, %v5905
        %v6024 = vadd.f32 %v5889, %v5905
        %v6025 = vadd.f32 %v5890, %v5905
        %v6026 = vadd.f32 %v5891, %v5905
        %v6027 = vadd.f32 %v5892, %v5905
        %v6028 = vadd.f32 %v5893, %v5905
        %v6029 = vadd.f32 %v5894, %v5905
        %v6030 = vadd.f32 %v5895, %v5905
        %v6031 = vadd.f32 %v5896, %v5905
        %v6032 = vadd.f32 %v5897, %v5905
        %v6033 = vadd.f32 %v5898, %v5905
        %v6034 = vadd.f32 %v5899, %v5905
        %v6035 = vmax.f32 %v5907, 0.0
        %v6036 = vmax.f32 %v5908, 0.0
        %v6037 = vmax.f32 %v5909, 0.0
        %v6038 = vmax.f32 %v5910, 0.0
        %v6039 = vmax.f32 %v5911, 0.0
        %v6040 = vmax.f32 %v5912, 0.0
        %v6041 = vmax.f32 %v5913, 0.0
        %v6042 = vmax.f32 %v5914, 0.0
        %v6043 = vmax.f32 %v5915, 0.0
        %v6044 = vmax.f32 %v5916, 0.0
        %v6045 = vmax.f32 %v5917, 0.0
        %v6046 = vmax.f32 %v5918, 0.0
        %v6047 = vmax.f32 %v5919, 0.0
        %v6048 = vmax.f32 %v5920, 0.0
        %v6049 = vmax.f32 %v5921, 0.0
        %v6050 = vmax.f32 %v5922, 0.0
        %v6051 = vmax.f32 %v5923, 0.0
        %v6052 = vmax.f32 %v5924, 0.0
        %v6053 = vmax.f32 %v5925, 0.0
        %v6054 = vmax.f32 %v5926, 0.0
        %v6055 = vmax.f32 %v5927, 0.0
        %v6056 = vmax.f32 %v5928, 0.0
        %v6057 = vmax.f32 %v5929, 0.0
        %v6058 = vmax.f32 %v5930, 0.0
        %v6059 = vmax.f32 %v5931, 0.0
        %v6060 = vmax.f32 %v5932, 0.0
        %v6061 = vmax.f32 %v5933, 0.0
        %v6062 = vmax.f32 %v5934, 0.0
        %v6063 = vmax.f32 %v5935, 0.0
        %v6064 = vmax.f32 %v5936, 0.0
        %v6065 = vmax.f32 %v5937, 0.0
        %v6066 = vmax.f32 %v5938, 0.0
        %v6067 = vmax.f32 %v5939, 0.0
        %v6068 = vmax.f32 %v5940, 0.0
        %v6069 = vmax.f32 %v5941, 0.0
        %v6070 = vmax.f32 %v5942, 0.0
        %v6071 = vmax.f32 %v5943, 0.0
        %v6072 = vmax.f32 %v5944, 0.0
        %v6073 = vmax.f32 %v5945, 0.0
        %v6074 = vmax.f32 %v5946, 0.0
        %v6075 = vmax.f32 %v5947, 0.0
        %v6076 = vmax.f32 %v5948, 0.0
        %v6077 = vmax.f32 %v5949, 0.0
        %v6078 = vmax.f32 %v5950, 0.0
        %v6079 = vmax.f32 %v5951, 0.0
        %v6080 = vmax.f32 %v5952, 0.0
        %v6081 = vmax.f32 %v5953, 0.0
        %v6082 = vmax.f32 %v5954, 0.0
        %v6083 = vmax.f32 %v5955, 0.0
        %v6084 = vmax.f32 %v5956, 0.0
        %v6085 = vmax.f32 %v5957, 0.0
        %v6086 = vmax.f32 %v5958, 0.0
        %v6087 = vmax.f32 %v5959, 0.0
        %v6088 = vmax.f32 %v5960, 0.0
        %v6089 = vmax.f32 %v5961, 0.0
        %v6090 = vmax.f32 %v5962, 0.0
        %v6091 = vmax.f32 %v5963, 0.0
        %v6092 = vmax.f32 %v5964, 0.0
        %v6093 = vmax.f32 %v5965, 0.0
        %v6094 = vmax.f32 %v5966, 0.0
        %v6095 = vmax.f32 %v5967, 0.0
        %v6096 = vmax.f32 %v5968, 0.0
        %v6097 = vmax.f32 %v5969, 0.0
        %v6098 = vmax.f32 %v5970, 0.0
        %v6099 = vmax.f32 %v5971, 0.0
        %v6100 = vmax.f32 %v5972, 0.0
        %v6101 = vmax.f32 %v5973, 0.0
        %v6102 = vmax.f32 %v5974, 0.0
        %v6103 = vmax.f32 %v5975, 0.0
        %v6104 = vmax.f32 %v5976, 0.0
        %v6105 = vmax.f32 %v5977, 0.0
        %v6106 = vmax.f32 %v5978, 0.0
        %v6107 = vmax.f32 %v5979, 0.0
        %v6108 = vmax.f32 %v5980, 0.0
        %v6109 = vmax.f32 %v5981, 0.0
        %v6110 = vmax.f32 %v5982, 0.0
        %v6111 = vmax.f32 %v5983, 0.0
        %v6112 = vmax.f32 %v5984, 0.0
        %v6113 = vmax.f32 %v5985, 0.0
        %v6114 = vmax.f32 %v5986, 0.0
        %v6115 = vmax.f32 %v5987, 0.0
        %v6116 = vmax.f32 %v5988, 0.0
        %v6117 = vmax.f32 %v5989, 0.0
        %v6118 = vmax.f32 %v5990, 0.0
        %v6119 = vmax.f32 %v5991, 0.0
        %v6120 = vmax.f32 %v5992, 0.0
        %v6121 = vmax.f32 %v5993, 0.0
        %v6122 = vmax.f32 %v5994, 0.0
        %v6123 = vmax.f32 %v5995, 0.0
        %v6124 = vmax.f32 %v5996, 0.0
        %v6125 = vmax.f32 %v5997, 0.0
        %v6126 = vmax.f32 %v5998, 0.0
        %v6127 = vmax.f32 %v5999, 0.0
        %v6128 = vmax.f32 %v6000, 0.0
        %v6129 = vmax.f32 %v6001, 0.0
        %v6130 = vmax.f32 %v6002, 0.0
        %v6131 = vmax.f32 %v6003, 0.0
        %v6132 = vmax.f32 %v6004, 0.0
        %v6133 = vmax.f32 %v6005, 0.0
        %v6134 = vmax.f32 %v6006, 0.0
        %v6135 = vmax.f32 %v6007, 0.0
        %v6136 = vmax.f32 %v6008, 0.0
        %v6137 = vmax.f32 %v6009, 0.0
        %v6138 = vmax.f32 %v6010, 0.0
        %v6139 = vmax.f32 %v6011, 0.0
        %v6140 = vmax.f32 %v6012, 0.0
        %v6141 = vmax.f32 %v6013, 0.0
        %v6142 = vmax.f32 %v6014, 0.0
        %v6143 = vmax.f32 %v6015, 0.0
        %v6144 = vmax.f32 %v6016, 0.0
        %v6145 = vmax.f32 %v6017, 0.0
        %v6146 = vmax.f32 %v6018, 0.0
        %v6147 = vmax.f32 %v6019, 0.0
        %v6148 = vmax.f32 %v6020, 0.0
        %v6149 = vmax.f32 %v6021, 0.0
        %v6150 = vmax.f32 %v6022, 0.0
        %v6151 = vmax.f32 %v6023, 0.0
        %v6152 = vmax.f32 %v6024, 0.0
        %v6153 = vmax.f32 %v6025, 0.0
        %v6154 = vmax.f32 %v6026, 0.0
        %v6155 = vmax.f32 %v6027, 0.0
        %v6156 = vmax.f32 %v6028, 0.0
        %v6157 = vmax.f32 %v6029, 0.0
        %v6158 = vmax.f32 %v6030, 0.0
        %v6159 = vmax.f32 %v6031, 0.0
        %v6160 = vmax.f32 %v6032, 0.0
        %v6161 = vmax.f32 %v6033, 0.0
        %v6162 = vmax.f32 %v6034, 0.0
        %v6163 = vpack.c.bf16 %v6036, %v6035
        %v6164 = vpack.c.bf16 %v6038, %v6037
        %v6165 = vpack.c.bf16 %v6040, %v6039
        %v6166 = vpack.c.bf16 %v6042, %v6041
        %v6167 = vpack.c.bf16 %v6044, %v6043
        %v6168 = vpack.c.bf16 %v6046, %v6045
        %v6169 = vpack.c.bf16 %v6048, %v6047
        %v6170 = vpack.c.bf16 %v6050, %v6049
        %v6171 = vpack.c.bf16 %v6052, %v6051
        %v6172 = vpack.c.bf16 %v6054, %v6053
        %v6173 = vpack.c.bf16 %v6056, %v6055
        %v6174 = vpack.c.bf16 %v6058, %v6057
        %v6175 = vpack.c.bf16 %v6060, %v6059
        %v6176 = vpack.c.bf16 %v6062, %v6061
        %v6177 = vpack.c.bf16 %v6064, %v6063
        %v6178 = vpack.c.bf16 %v6066, %v6065
        %v6179 = vpack.c.bf16 %v6068, %v6067
        %v6180 = vpack.c.bf16 %v6070, %v6069
        %v6181 = vpack.c.bf16 %v6072, %v6071
        %v6182 = vpack.c.bf16 %v6074, %v6073
        %v6183 = vpack.c.bf16 %v6076, %v6075
        %v6184 = vpack.c.bf16 %v6078, %v6077
        %v6185 = vpack.c.bf16 %v6080, %v6079
        %v6186 = vpack.c.bf16 %v6082, %v6081
        %v6187 = vpack.c.bf16 %v6084, %v6083
        %v6188 = vpack.c.bf16 %v6086, %v6085
        %v6189 = vpack.c.bf16 %v6088, %v6087
        %v6190 = vpack.c.bf16 %v6090, %v6089
        %v6191 = vpack.c.bf16 %v6092, %v6091
        %v6192 = vpack.c.bf16 %v6094, %v6093
        %v6193 = vpack.c.bf16 %v6096, %v6095
        %v6194 = vpack.c.bf16 %v6098, %v6097
        %v6195 = vpack.c.bf16 %v6100, %v6099
        %v6196 = vpack.c.bf16 %v6102, %v6101
        %v6197 = vpack.c.bf16 %v6104, %v6103
        %v6198 = vpack.c.bf16 %v6106, %v6105
        %v6199 = vpack.c.bf16 %v6108, %v6107
        %v6200 = vpack.c.bf16 %v6110, %v6109
        %v6201 = vpack.c.bf16 %v6112, %v6111
        %v6202 = vpack.c.bf16 %v6114, %v6113
        %v6203 = vpack.c.bf16 %v6116, %v6115
        %v6204 = vpack.c.bf16 %v6118, %v6117
        %v6205 = vpack.c.bf16 %v6120, %v6119
        %v6206 = vpack.c.bf16 %v6122, %v6121
        %v6207 = vpack.c.bf16 %v6124, %v6123
        %v6208 = vpack.c.bf16 %v6126, %v6125
        %v6209 = vpack.c.bf16 %v6128, %v6127
        %v6210 = vpack.c.bf16 %v6130, %v6129
        %v6211 = vpack.c.bf16 %v6132, %v6131
        %v6212 = vpack.c.bf16 %v6134, %v6133
        %v6213 = vpack.c.bf16 %v6136, %v6135
        %v6214 = vpack.c.bf16 %v6138, %v6137
        %v6215 = vpack.c.bf16 %v6140, %v6139
        %v6216 = vpack.c.bf16 %v6142, %v6141
        %v6217 = vpack.c.bf16 %v6144, %v6143
        %v6218 = vpack.c.bf16 %v6146, %v6145
        %v6219 = vpack.c.bf16 %v6148, %v6147
        %v6220 = vpack.c.bf16 %v6150, %v6149
        %v6221 = vpack.c.bf16 %v6152, %v6151
        %v6222 = vpack.c.bf16 %v6154, %v6153
        %v6223 = vpack.c.bf16 %v6156, %v6155
        %v6224 = vpack.c.bf16 %v6158, %v6157
        %v6225 = vpack.c.bf16 %v6160, %v6159
        %v6226 = vpack.c.bf16 %v6162, %v6161
        %v6291 = vunpack.c.l.b16 %v6163
        %v6292 = vunpack.c.h.b16 %v6163
        %v6293 = vunpack.c.l.b16 %v6164
        %v6294 = vunpack.c.h.b16 %v6164
        %v6295 = vunpack.c.l.b16 %v6165
        %v6296 = vunpack.c.h.b16 %v6165
        %v6297 = vunpack.c.l.b16 %v6166
        %v6298 = vunpack.c.h.b16 %v6166
        %v6299 = vunpack.c.l.b16 %v6167
        %v6300 = vunpack.c.h.b16 %v6167
        %v6301 = vunpack.c.l.b16 %v6168
        %v6302 = vunpack.c.h.b16 %v6168
        %v6303 = vunpack.c.l.b16 %v6169
        %v6304 = vunpack.c.h.b16 %v6169
        %v6305 = vunpack.c.l.b16 %v6170
        %v6306 = vunpack.c.h.b16 %v6170
        %v6307 = vunpack.c.l.b16 %v6171
        %v6308 = vunpack.c.h.b16 %v6171
        %v6309 = vunpack.c.l.b16 %v6172
        %v6310 = vunpack.c.h.b16 %v6172
        %v6311 = vunpack.c.l.b16 %v6173
        %v6312 = vunpack.c.h.b16 %v6173
        %v6313 = vunpack.c.l.b16 %v6174
        %v6314 = vunpack.c.h.b16 %v6174
        %v6315 = vunpack.c.l.b16 %v6175
        %v6316 = vunpack.c.h.b16 %v6175
        %v6317 = vunpack.c.l.b16 %v6176
        %v6318 = vunpack.c.h.b16 %v6176
        %v6319 = vunpack.c.l.b16 %v6177
        %v6320 = vunpack.c.h.b16 %v6177
        %v6321 = vunpack.c.l.b16 %v6178
        %v6322 = vunpack.c.h.b16 %v6178
        %v6323 = vunpack.c.l.b16 %v6179
        %v6324 = vunpack.c.h.b16 %v6179
        %v6325 = vunpack.c.l.b16 %v6180
        %v6326 = vunpack.c.h.b16 %v6180
        %v6327 = vunpack.c.l.b16 %v6181
        %v6328 = vunpack.c.h.b16 %v6181
        %v6329 = vunpack.c.l.b16 %v6182
        %v6330 = vunpack.c.h.b16 %v6182
        %v6331 = vunpack.c.l.b16 %v6183
        %v6332 = vunpack.c.h.b16 %v6183
        %v6333 = vunpack.c.l.b16 %v6184
        %v6334 = vunpack.c.h.b16 %v6184
        %v6335 = vunpack.c.l.b16 %v6185
        %v6336 = vunpack.c.h.b16 %v6185
        %v6337 = vunpack.c.l.b16 %v6186
        %v6338 = vunpack.c.h.b16 %v6186
        %v6339 = vunpack.c.l.b16 %v6187
        %v6340 = vunpack.c.h.b16 %v6187
        %v6341 = vunpack.c.l.b16 %v6188
        %v6342 = vunpack.c.h.b16 %v6188
        %v6343 = vunpack.c.l.b16 %v6189
        %v6344 = vunpack.c.h.b16 %v6189
        %v6345 = vunpack.c.l.b16 %v6190
        %v6346 = vunpack.c.h.b16 %v6190
        %v6347 = vunpack.c.l.b16 %v6191
        %v6348 = vunpack.c.h.b16 %v6191
        %v6349 = vunpack.c.l.b16 %v6192
        %v6350 = vunpack.c.h.b16 %v6192
        %v6351 = vunpack.c.l.b16 %v6193
        %v6352 = vunpack.c.h.b16 %v6193
        %v6353 = vunpack.c.l.b16 %v6194
        %v6354 = vunpack.c.h.b16 %v6194
        %v6355 = vunpack.c.l.b16 %v6195
        %v6356 = vunpack.c.h.b16 %v6195
        %v6357 = vunpack.c.l.b16 %v6196
        %v6358 = vunpack.c.h.b16 %v6196
        %v6359 = vunpack.c.l.b16 %v6197
        %v6360 = vunpack.c.h.b16 %v6197
        %v6361 = vunpack.c.l.b16 %v6198
        %v6362 = vunpack.c.h.b16 %v6198
        %v6363 = vunpack.c.l.b16 %v6199
        %v6364 = vunpack.c.h.b16 %v6199
        %v6365 = vunpack.c.l.b16 %v6200
        %v6366 = vunpack.c.h.b16 %v6200
        %v6367 = vunpack.c.l.b16 %v6201
        %v6368 = vunpack.c.h.b16 %v6201
        %v6369 = vunpack.c.l.b16 %v6202
        %v6370 = vunpack.c.h.b16 %v6202
        %v6371 = vunpack.c.l.b16 %v6203
        %v6372 = vunpack.c.h.b16 %v6203
        %v6373 = vunpack.c.l.b16 %v6204
        %v6374 = vunpack.c.h.b16 %v6204
        %v6375 = vunpack.c.l.b16 %v6205
        %v6376 = vunpack.c.h.b16 %v6205
        %v6377 = vunpack.c.l.b16 %v6206
        %v6378 = vunpack.c.h.b16 %v6206
        %v6379 = vunpack.c.l.b16 %v6207
        %v6380 = vunpack.c.h.b16 %v6207
        %v6381 = vunpack.c.l.b16 %v6208
        %v6382 = vunpack.c.h.b16 %v6208
        %v6383 = vunpack.c.l.b16 %v6209
        %v6384 = vunpack.c.h.b16 %v6209
        %v6385 = vunpack.c.l.b16 %v6210
        %v6386 = vunpack.c.h.b16 %v6210
        %v6387 = vunpack.c.l.b16 %v6211
        %v6388 = vunpack.c.h.b16 %v6211
        %v6389 = vunpack.c.l.b16 %v6212
        %v6390 = vunpack.c.h.b16 %v6212
        %v6391 = vunpack.c.l.b16 %v6213
        %v6392 = vunpack.c.h.b16 %v6213
        %v6393 = vunpack.c.l.b16 %v6214
        %v6394 = vunpack.c.h.b16 %v6214
        %v6395 = vunpack.c.l.b16 %v6215
        %v6396 = vunpack.c.h.b16 %v6215
        %v6397 = vunpack.c.l.b16 %v6216
        %v6398 = vunpack.c.h.b16 %v6216
        %v6399 = vunpack.c.l.b16 %v6217
        %v6400 = vunpack.c.h.b16 %v6217
        %v6401 = vunpack.c.l.b16 %v6218
        %v6402 = vunpack.c.h.b16 %v6218
        %v6403 = vunpack.c.l.b16 %v6219
        %v6404 = vunpack.c.h.b16 %v6219
        %v6405 = vunpack.c.l.b16 %v6220
        %v6406 = vunpack.c.h.b16 %v6220
        %v6407 = vunpack.c.l.b16 %v6221
        %v6408 = vunpack.c.h.b16 %v6221
        %v6409 = vunpack.c.l.b16 %v6222
        %v6410 = vunpack.c.h.b16 %v6222
        %v6411 = vunpack.c.l.b16 %v6223
        %v6412 = vunpack.c.h.b16 %v6223
        %v6413 = vunpack.c.l.b16 %v6224
        %v6414 = vunpack.c.h.b16 %v6224
        %v6415 = vunpack.c.l.b16 %v6225
        %v6416 = vunpack.c.h.b16 %v6225
        %v6417 = vunpack.c.l.b16 %v6226
        %v6418 = vunpack.c.h.b16 %v6226
        %v6419 = vpack.c.b16 %v6291, %v6291
        %v6420 = vpack.c.b16 %v6292, %v6292
        %v6421 = vpack.c.b16 %v6293, %v6293
        %v6422 = vpack.c.b16 %v6294, %v6294
        %v6423 = vpack.c.b16 %v6295, %v6295
        %v6424 = vpack.c.b16 %v6296, %v6296
        %v6425 = vpack.c.b16 %v6297, %v6297
        %v6426 = vpack.c.b16 %v6298, %v6298
        %v6427 = vpack.c.b16 %v6299, %v6299
        %v6428 = vpack.c.b16 %v6300, %v6300
        %v6429 = vpack.c.b16 %v6301, %v6301
        %v6430 = vpack.c.b16 %v6302, %v6302
        %v6431 = vpack.c.b16 %v6303, %v6303
        %v6432 = vpack.c.b16 %v6304, %v6304
        %v6433 = vpack.c.b16 %v6305, %v6305
        %v6434 = vpack.c.b16 %v6306, %v6306
        %v6435 = vpack.c.b16 %v6307, %v6307
        %v6436 = vpack.c.b16 %v6308, %v6308
        %v6437 = vpack.c.b16 %v6309, %v6309
        %v6438 = vpack.c.b16 %v6310, %v6310
        %v6439 = vpack.c.b16 %v6311, %v6311
        %v6440 = vpack.c.b16 %v6312, %v6312
        %v6441 = vpack.c.b16 %v6313, %v6313
        %v6442 = vpack.c.b16 %v6314, %v6314
        %v6443 = vpack.c.b16 %v6315, %v6315
        %v6444 = vpack.c.b16 %v6316, %v6316
        %v6445 = vpack.c.b16 %v6317, %v6317
        %v6446 = vpack.c.b16 %v6318, %v6318
        %v6447 = vpack.c.b16 %v6319, %v6319
        %v6448 = vpack.c.b16 %v6320, %v6320
        %v6449 = vpack.c.b16 %v6321, %v6321
        %v6450 = vpack.c.b16 %v6322, %v6322
        %v6451 = vpack.c.b16 %v6323, %v6323
        %v6452 = vpack.c.b16 %v6324, %v6324
        %v6453 = vpack.c.b16 %v6325, %v6325
        %v6454 = vpack.c.b16 %v6326, %v6326
        %v6455 = vpack.c.b16 %v6327, %v6327
        %v6456 = vpack.c.b16 %v6328, %v6328
        %v6457 = vpack.c.b16 %v6329, %v6329
        %v6458 = vpack.c.b16 %v6330, %v6330
        %v6459 = vpack.c.b16 %v6331, %v6331
        %v6460 = vpack.c.b16 %v6332, %v6332
        %v6461 = vpack.c.b16 %v6333, %v6333
        %v6462 = vpack.c.b16 %v6334, %v6334
        %v6463 = vpack.c.b16 %v6335, %v6335
        %v6464 = vpack.c.b16 %v6336, %v6336
        %v6465 = vpack.c.b16 %v6337, %v6337
        %v6466 = vpack.c.b16 %v6338, %v6338
        %v6467 = vpack.c.b16 %v6339, %v6339
        %v6468 = vpack.c.b16 %v6340, %v6340
        %v6469 = vpack.c.b16 %v6341, %v6341
        %v6470 = vpack.c.b16 %v6342, %v6342
        %v6471 = vpack.c.b16 %v6343, %v6343
        %v6472 = vpack.c.b16 %v6344, %v6344
        %v6473 = vpack.c.b16 %v6345, %v6345
        %v6474 = vpack.c.b16 %v6346, %v6346
        %v6475 = vpack.c.b16 %v6347, %v6347
        %v6476 = vpack.c.b16 %v6348, %v6348
        %v6477 = vpack.c.b16 %v6349, %v6349
        %v6478 = vpack.c.b16 %v6350, %v6350
        %v6479 = vpack.c.b16 %v6351, %v6351
        %v6480 = vpack.c.b16 %v6352, %v6352
        %v6481 = vpack.c.b16 %v6353, %v6353
        %v6482 = vpack.c.b16 %v6354, %v6354
        %v6483 = vpack.c.b16 %v6355, %v6355
        %v6484 = vpack.c.b16 %v6356, %v6356
        %v6485 = vpack.c.b16 %v6357, %v6357
        %v6486 = vpack.c.b16 %v6358, %v6358
        %v6487 = vpack.c.b16 %v6359, %v6359
        %v6488 = vpack.c.b16 %v6360, %v6360
        %v6489 = vpack.c.b16 %v6361, %v6361
        %v6490 = vpack.c.b16 %v6362, %v6362
        %v6491 = vpack.c.b16 %v6363, %v6363
        %v6492 = vpack.c.b16 %v6364, %v6364
        %v6493 = vpack.c.b16 %v6365, %v6365
        %v6494 = vpack.c.b16 %v6366, %v6366
        %v6495 = vpack.c.b16 %v6367, %v6367
        %v6496 = vpack.c.b16 %v6368, %v6368
        %v6497 = vpack.c.b16 %v6369, %v6369
        %v6498 = vpack.c.b16 %v6370, %v6370
        %v6499 = vpack.c.b16 %v6371, %v6371
        %v6500 = vpack.c.b16 %v6372, %v6372
        %v6501 = vpack.c.b16 %v6373, %v6373
        %v6502 = vpack.c.b16 %v6374, %v6374
        %v6503 = vpack.c.b16 %v6375, %v6375
        %v6504 = vpack.c.b16 %v6376, %v6376
        %v6505 = vpack.c.b16 %v6377, %v6377
        %v6506 = vpack.c.b16 %v6378, %v6378
        %v6507 = vpack.c.b16 %v6379, %v6379
        %v6508 = vpack.c.b16 %v6380, %v6380
        %v6509 = vpack.c.b16 %v6381, %v6381
        %v6510 = vpack.c.b16 %v6382, %v6382
        %v6511 = vpack.c.b16 %v6383, %v6383
        %v6512 = vpack.c.b16 %v6384, %v6384
        %v6513 = vpack.c.b16 %v6385, %v6385
        %v6514 = vpack.c.b16 %v6386, %v6386
        %v6515 = vpack.c.b16 %v6387, %v6387
        %v6516 = vpack.c.b16 %v6388, %v6388
        %v6517 = vpack.c.b16 %v6389, %v6389
        %v6518 = vpack.c.b16 %v6390, %v6390
        %v6519 = vpack.c.b16 %v6391, %v6391
        %v6520 = vpack.c.b16 %v6392, %v6392
        %v6521 = vpack.c.b16 %v6393, %v6393
        %v6522 = vpack.c.b16 %v6394, %v6394
        %v6523 = vpack.c.b16 %v6395, %v6395
        %v6524 = vpack.c.b16 %v6396, %v6396
        %v6525 = vpack.c.b16 %v6397, %v6397
        %v6526 = vpack.c.b16 %v6398, %v6398
        %v6527 = vpack.c.b16 %v6399, %v6399
        %v6528 = vpack.c.b16 %v6400, %v6400
        %v6529 = vpack.c.b16 %v6401, %v6401
        %v6530 = vpack.c.b16 %v6402, %v6402
        %v6531 = vpack.c.b16 %v6403, %v6403
        %v6532 = vpack.c.b16 %v6404, %v6404
        %v6533 = vpack.c.b16 %v6405, %v6405
        %v6534 = vpack.c.b16 %v6406, %v6406
        %v6535 = vpack.c.b16 %v6407, %v6407
        %v6536 = vpack.c.b16 %v6408, %v6408
        %v6537 = vpack.c.b16 %v6409, %v6409
        %v6538 = vpack.c.b16 %v6410, %v6410
        %v6539 = vpack.c.b16 %v6411, %v6411
        %v6540 = vpack.c.b16 %v6412, %v6412
        %v6541 = vpack.c.b16 %v6413, %v6413
        %v6542 = vpack.c.b16 %v6414, %v6414
        %v6543 = vpack.c.b16 %v6415, %v6415
        %v6544 = vpack.c.b16 %v6416, %v6416
        %v6545 = vpack.c.b16 %v6417, %v6417
        %v6546 = vpack.c.b16 %v6418, %v6418
        %vm6675 = vcmask 519168
        %6676 = vst.msk [vmem:[%s201] sm:$0xf] %vm6675, %v6419
        %6677 = vst.msk [vmem:[%s201 + $0x4] sm:$0xf] %vm6675, %v6420
        %6678 = vst.msk [vmem:[%s201 + $0x8] sm:$0xf] %vm6675, %v6421
        %6679 = vst.msk [vmem:[%s201 + $0xc] sm:$0xf] %vm6675, %v6422
        %6680 = vst.msk [vmem:[%s201 + $0x10] sm:$0xf] %vm6675, %v6423
        %6681 = vst.msk [vmem:[%s201 + $0x14] sm:$0xf] %vm6675, %v6424
        %6682 = vst.msk [vmem:[%s201 + $0x18] sm:$0xf] %vm6675, %v6425
        %6683 = vst.msk [vmem:[%s201 + $0x1c] sm:$0xf] %vm6675, %v6426
        %6684 = vst.msk [vmem:[%s201 + $0x20] sm:$0xf] %vm6675, %v6427
        %6685 = vst.msk [vmem:[%s201 + $0x24] sm:$0xf] %vm6675, %v6428
        %6686 = vst.msk [vmem:[%s201 + $0x28] sm:$0xf] %vm6675, %v6429
        %6687 = vst.msk [vmem:[%s201 + $0x2c] sm:$0xf] %vm6675, %v6430
        %6688 = vst.msk [vmem:[%s201 + $0x30] sm:$0xf] %vm6675, %v6431
        %6689 = vst.msk [vmem:[%s201 + $0x34] sm:$0xf] %vm6675, %v6432
        %6690 = vst.msk [vmem:[%s201 + $0x38] sm:$0xf] %vm6675, %v6433
        %6691 = vst.msk [vmem:[%s201 + $0x3c] sm:$0xf] %vm6675, %v6434
        %6692 = vst.msk [vmem:[%s201 + $0x40] sm:$0xf] %vm6675, %v6435
        %6693 = vst.msk [vmem:[%s201 + $0x44] sm:$0xf] %vm6675, %v6436
        %6694 = vst.msk [vmem:[%s201 + $0x48] sm:$0xf] %vm6675, %v6437
        %6695 = vst.msk [vmem:[%s201 + $0x4c] sm:$0xf] %vm6675, %v6438
        %6696 = vst.msk [vmem:[%s201 + $0x50] sm:$0xf] %vm6675, %v6439
        %6697 = vst.msk [vmem:[%s201 + $0x54] sm:$0xf] %vm6675, %v6440
        %6698 = vst.msk [vmem:[%s201 + $0x58] sm:$0xf] %vm6675, %v6441
        %6699 = vst.msk [vmem:[%s201 + $0x5c] sm:$0xf] %vm6675, %v6442
        %6700 = vst.msk [vmem:[%s201 + $0x60] sm:$0xf] %vm6675, %v6443
        %6701 = vst.msk [vmem:[%s201 + $0x64] sm:$0xf] %vm6675, %v6444
        %6702 = vst.msk [vmem:[%s201 + $0x68] sm:$0xf] %vm6675, %v6445
        %6703 = vst.msk [vmem:[%s201 + $0x6c] sm:$0xf] %vm6675, %v6446
        %6704 = vst.msk [vmem:[%s201 + $0x70] sm:$0xf] %vm6675, %v6447
        %6705 = vst.msk [vmem:[%s201 + $0x74] sm:$0xf] %vm6675, %v6448
        %6706 = vst.msk [vmem:[%s201 + $0x78] sm:$0xf] %vm6675, %v6449
        %6707 = vst.msk [vmem:[%s201 + $0x7c] sm:$0xf] %vm6675, %v6450
        %6708 = vst.msk [vmem:[%s201 + $0x80] sm:$0xf] %vm6675, %v6451
        %6709 = vst.msk [vmem:[%s201 + $0x84] sm:$0xf] %vm6675, %v6452
        %6710 = vst.msk [vmem:[%s201 + $0x88] sm:$0xf] %vm6675, %v6453
        %6711 = vst.msk [vmem:[%s201 + $0x8c] sm:$0xf] %vm6675, %v6454
        %6712 = vst.msk [vmem:[%s201 + $0x90] sm:$0xf] %vm6675, %v6455
        %6713 = vst.msk [vmem:[%s201 + $0x94] sm:$0xf] %vm6675, %v6456
        %6714 = vst.msk [vmem:[%s201 + $0x98] sm:$0xf] %vm6675, %v6457
        %6715 = vst.msk [vmem:[%s201 + $0x9c] sm:$0xf] %vm6675, %v6458
        %6716 = vst.msk [vmem:[%s201 + $0xa0] sm:$0xf] %vm6675, %v6459
        %6717 = vst.msk [vmem:[%s201 + $0xa4] sm:$0xf] %vm6675, %v6460
        %6718 = vst.msk [vmem:[%s201 + $0xa8] sm:$0xf] %vm6675, %v6461
        %6719 = vst.msk [vmem:[%s201 + $0xac] sm:$0xf] %vm6675, %v6462
        %6720 = vst.msk [vmem:[%s201 + $0xb0] sm:$0xf] %vm6675, %v6463
        %6721 = vst.msk [vmem:[%s201 + $0xb4] sm:$0xf] %vm6675, %v6464
        %6722 = vst.msk [vmem:[%s201 + $0xb8] sm:$0xf] %vm6675, %v6465
        %6723 = vst.msk [vmem:[%s201 + $0xbc] sm:$0xf] %vm6675, %v6466
        %6724 = vst.msk [vmem:[%s201 + $0xc0] sm:$0xf] %vm6675, %v6467
        %6725 = vst.msk [vmem:[%s201 + $0xc4] sm:$0xf] %vm6675, %v6468
        %6726 = vst.msk [vmem:[%s201 + $0xc8] sm:$0xf] %vm6675, %v6469
        %6727 = vst.msk [vmem:[%s201 + $0xcc] sm:$0xf] %vm6675, %v6470
        %6728 = vst.msk [vmem:[%s201 + $0xd0] sm:$0xf] %vm6675, %v6471
        %6729 = vst.msk [vmem:[%s201 + $0xd4] sm:$0xf] %vm6675, %v6472
        %6730 = vst.msk [vmem:[%s201 + $0xd8] sm:$0xf] %vm6675, %v6473
        %6731 = vst.msk [vmem:[%s201 + $0xdc] sm:$0xf] %vm6675, %v6474
        %6732 = vst.msk [vmem:[%s201 + $0xe0] sm:$0xf] %vm6675, %v6475
        %6733 = vst.msk [vmem:[%s201 + $0xe4] sm:$0xf] %vm6675, %v6476
        %6734 = vst.msk [vmem:[%s201 + $0xe8] sm:$0xf] %vm6675, %v6477
        %6735 = vst.msk [vmem:[%s201 + $0xec] sm:$0xf] %vm6675, %v6478
        %6736 = vst.msk [vmem:[%s201 + $0xf0] sm:$0xf] %vm6675, %v6479
        %6737 = vst.msk [vmem:[%s201 + $0xf4] sm:$0xf] %vm6675, %v6480
        %6738 = vst.msk [vmem:[%s201 + $0xf8] sm:$0xf] %vm6675, %v6481
        %6739 = vst.msk [vmem:[%s201 + $0xfc] sm:$0xf] %vm6675, %v6482
        %6740 = vst.msk [vmem:[%s201 + $0x100] sm:$0xf] %vm6675, %v6483
        %6741 = vst.msk [vmem:[%s201 + $0x104] sm:$0xf] %vm6675, %v6484
        %6742 = vst.msk [vmem:[%s201 + $0x108] sm:$0xf] %vm6675, %v6485
        %6743 = vst.msk [vmem:[%s201 + $0x10c] sm:$0xf] %vm6675, %v6486
        %6744 = vst.msk [vmem:[%s201 + $0x110] sm:$0xf] %vm6675, %v6487
        %6745 = vst.msk [vmem:[%s201 + $0x114] sm:$0xf] %vm6675, %v6488
        %6746 = vst.msk [vmem:[%s201 + $0x118] sm:$0xf] %vm6675, %v6489
        %6747 = vst.msk [vmem:[%s201 + $0x11c] sm:$0xf] %vm6675, %v6490
        %6748 = vst.msk [vmem:[%s201 + $0x120] sm:$0xf] %vm6675, %v6491
        %6749 = vst.msk [vmem:[%s201 + $0x124] sm:$0xf] %vm6675, %v6492
        %6750 = vst.msk [vmem:[%s201 + $0x128] sm:$0xf] %vm6675, %v6493
        %6751 = vst.msk [vmem:[%s201 + $0x12c] sm:$0xf] %vm6675, %v6494
        %6752 = vst.msk [vmem:[%s201 + $0x130] sm:$0xf] %vm6675, %v6495
        %6753 = vst.msk [vmem:[%s201 + $0x134] sm:$0xf] %vm6675, %v6496
        %6754 = vst.msk [vmem:[%s201 + $0x138] sm:$0xf] %vm6675, %v6497
        %6755 = vst.msk [vmem:[%s201 + $0x13c] sm:$0xf] %vm6675, %v6498
        %6756 = vst.msk [vmem:[%s201 + $0x140] sm:$0xf] %vm6675, %v6499
        %6757 = vst.msk [vmem:[%s201 + $0x144] sm:$0xf] %vm6675, %v6500
        %6758 = vst.msk [vmem:[%s201 + $0x148] sm:$0xf] %vm6675, %v6501
        %6759 = vst.msk [vmem:[%s201 + $0x14c] sm:$0xf] %vm6675, %v6502
        %6760 = vst.msk [vmem:[%s201 + $0x150] sm:$0xf] %vm6675, %v6503
        %6761 = vst.msk [vmem:[%s201 + $0x154] sm:$0xf] %vm6675, %v6504
        %6762 = vst.msk [vmem:[%s201 + $0x158] sm:$0xf] %vm6675, %v6505
        %6763 = vst.msk [vmem:[%s201 + $0x15c] sm:$0xf] %vm6675, %v6506
        %6764 = vst.msk [vmem:[%s201 + $0x160] sm:$0xf] %vm6675, %v6507
        %6765 = vst.msk [vmem:[%s201 + $0x164] sm:$0xf] %vm6675, %v6508
        %6766 = vst.msk [vmem:[%s201 + $0x168] sm:$0xf] %vm6675, %v6509
        %6767 = vst.msk [vmem:[%s201 + $0x16c] sm:$0xf] %vm6675, %v6510
        %6768 = vst.msk [vmem:[%s201 + $0x170] sm:$0xf] %vm6675, %v6511
        %6769 = vst.msk [vmem:[%s201 + $0x174] sm:$0xf] %vm6675, %v6512
        %6770 = vst.msk [vmem:[%s201 + $0x178] sm:$0xf] %vm6675, %v6513
        %6771 = vst.msk [vmem:[%s201 + $0x17c] sm:$0xf] %vm6675, %v6514
        %6772 = vst.msk [vmem:[%s201 + $0x180] sm:$0xf] %vm6675, %v6515
        %6773 = vst.msk [vmem:[%s201 + $0x184] sm:$0xf] %vm6675, %v6516
        %6774 = vst.msk [vmem:[%s201 + $0x188] sm:$0xf] %vm6675, %v6517
        %6775 = vst.msk [vmem:[%s201 + $0x18c] sm:$0xf] %vm6675, %v6518
        %6776 = vst.msk [vmem:[%s201 + $0x190] sm:$0xf] %vm6675, %v6519
        %6777 = vst.msk [vmem:[%s201 + $0x194] sm:$0xf] %vm6675, %v6520
        %6778 = vst.msk [vmem:[%s201 + $0x198] sm:$0xf] %vm6675, %v6521
        %6779 = vst.msk [vmem:[%s201 + $0x19c] sm:$0xf] %vm6675, %v6522
        %6780 = vst.msk [vmem:[%s201 + $0x1a0] sm:$0xf] %vm6675, %v6523
        %6781 = vst.msk [vmem:[%s201 + $0x1a4] sm:$0xf] %vm6675, %v6524
        %6782 = vst.msk [vmem:[%s201 + $0x1a8] sm:$0xf] %vm6675, %v6525
        %6783 = vst.msk [vmem:[%s201 + $0x1ac] sm:$0xf] %vm6675, %v6526
        %6784 = vst.msk [vmem:[%s201 + $0x1b0] sm:$0xf] %vm6675, %v6527
        %6785 = vst.msk [vmem:[%s201 + $0x1b4] sm:$0xf] %vm6675, %v6528
        %6786 = vst.msk [vmem:[%s201 + $0x1b8] sm:$0xf] %vm6675, %v6529
        %6787 = vst.msk [vmem:[%s201 + $0x1bc] sm:$0xf] %vm6675, %v6530
        %6788 = vst.msk [vmem:[%s201 + $0x1c0] sm:$0xf] %vm6675, %v6531
        %6789 = vst.msk [vmem:[%s201 + $0x1c4] sm:$0xf] %vm6675, %v6532
        %6790 = vst.msk [vmem:[%s201 + $0x1c8] sm:$0xf] %vm6675, %v6533
        %6791 = vst.msk [vmem:[%s201 + $0x1cc] sm:$0xf] %vm6675, %v6534
        %6792 = vst.msk [vmem:[%s201 + $0x1d0] sm:$0xf] %vm6675, %v6535
        %6793 = vst.msk [vmem:[%s201 + $0x1d4] sm:$0xf] %vm6675, %v6536
        %6794 = vst.msk [vmem:[%s201 + $0x1d8] sm:$0xf] %vm6675, %v6537
        %6795 = vst.msk [vmem:[%s201 + $0x1dc] sm:$0xf] %vm6675, %v6538
        %6796 = vst.msk [vmem:[%s201 + $0x1e0] sm:$0xf] %vm6675, %v6539
        %6797 = vst.msk [vmem:[%s201 + $0x1e4] sm:$0xf] %vm6675, %v6540
        %6798 = vst.msk [vmem:[%s201 + $0x1e8] sm:$0xf] %vm6675, %v6541
        %6799 = vst.msk [vmem:[%s201 + $0x1ec] sm:$0xf] %vm6675, %v6542
        %6800 = vst.msk [vmem:[%s201 + $0x1f0] sm:$0xf] %vm6675, %v6543
        %6801 = vst.msk [vmem:[%s201 + $0x1f4] sm:$0xf] %vm6675, %v6544
        %6802 = vst.msk [vmem:[%s201 + $0x1f8] sm:$0xf] %vm6675, %v6545
        %6803 = vst.msk [vmem:[%s201 + $0x1fc] sm:$0xf] %vm6675, %v6546
        %s6804 = sand.u32 %s117, 1
        %s6805 = scalar_lea.sflag [#allocation3], %s6804
        %s6806 = sand.u32 %s117, 1
        %s6807 = smul.addr %s6806, 512
        %s6808 = scalar_lea.vmem [#allocation2], %s6807
        // Predicated region
        $region33: #{tpu_custom_call.1} parent=31 // pred_check
          %p6809 = pneg %p127
        $region34: #{tpu_custom_call.1} parent=31 // pred_check_branch
          %6811 = sbr.rel (%p6809) target = $region36
        $region35: #{tpu_custom_call.1} parent=31 // pred_region
          %s6813 = ssub.s32 8192, 8192
          %6814 = vsyncadd %s6805, %s6813
          %s6815 = smul.addr %s21, 128
          %s6816 = sadd.s32 %s22, %s6815
          %s6817 = smul.addr %s6816, 64
          %s6818 = scalar_lea.hbm %s3, %s6817
          %s6819 = sshll.u32 %s6808, 4
          %s6820 = int_to_ptr.vmem [resolvable:$true] %s6819
          %6825 = dma.vmem_to_hbm [thread:$0]  %s6820, 8192, %s6818, %s6805, 64, 64, 4
        $region36: #{tpu_custom_call.1} parent=31 // pred_fallthru
          _
      $region32: #{tpu_custom_call.1} parent=5 // pred_fallthru
        _
      %p6826 = scmp.le.s32.totalorder 2, %s12
      // Predicated region
      $region37: #{tpu_custom_call.1} parent=5 // pred_check
        %p6827 = pneg %p6826
      $region38: #{tpu_custom_call.1} parent=5 // pred_check_branch
        %6829 = sbr.rel (%p6827) target = $region40
      $region39: #{tpu_custom_call.1} parent=5 // pred_region
        %s6830 = ssub.s32 %s12, 2
        // Predicated region
        $region41: #{tpu_custom_call.1} parent=39 // pred_check
          %p6831 = pneg %p133
        $region42: #{tpu_custom_call.1} parent=39 // pred_check_branch
          %6833 = sbr.rel (%p6831) target = $region44
        $region43: #{tpu_custom_call.1} parent=39 // pred_region
          %s6834 = sand.u32 %s118, 1
          %s6835 = scalar_lea.sflag [#allocation3], %s6834
          %s6836 = sand.u32 %s118, 1
          %s6837 = smul.addr %s6836, 512
          %s6838 = scalar_lea.vmem [#allocation2], %s6837
          %6839 = dma.done %s6835, 8192
        $region44: #{tpu_custom_call.1} parent=39 // pred_fallthru
          _
      $region40: #{tpu_custom_call.1} parent=5 // pred_fallthru
        _
    $region6: #{tpu_custom_call.1} parent=1 // loop_footer
      %s16 = sadd.s32 1, %s12
    $region7: #{tpu_custom_call.1} parent=1 // loop_footer_branch
      %11 = sbr.rel target = $region3
    $region8: #{tpu_custom_call.1} parent=1 // loop_exit
      _
    %6840 = vsyncpa [#allocation3], 1
    %s6841 = scalar_lea.sflag [#allocation3], 1
    %6842 = vsyncpa %s6841, 1

</llo_original>
